<compile_context>
chip_gen: v6e
topology: v6e:2x2x1
jax: 0.10.0
libtpu: 0.0.40
codegen_flags: <defaults>
</compile_context>

<pallas_src>
import functools
import math

import jax
import jax.numpy as jnp
from jax.experimental import pallas as pl
from jax.experimental.pallas import tpu as pltpu

_NEG = -1e30  # large-negative (finite) mask value


@functools.lru_cache(maxsize=None)
def _vmem_limit():
    """Generation-aware scoped-VMEM budget: ~75% of physical, clamped 32..96 MiB."""
    try:
        cap = int(pltpu.get_tpu_info().vmem_capacity_bytes)
    except Exception:
        cap = 64 * 1024 * 1024  # conservative (v7x-sized) fallback
    return max(32 << 20, min((cap * 3) // 4, 96 << 20))


def _round_up(x, m):
    return ((x + m - 1) // m) * m


def _choose_tile(n, cap, align):
    """Pick a tile that divides n (no padding) whenever possible.

    Returns (tile, padded_n).  tile == n when n <= cap (full-dim blocks are
    always legal); otherwise the largest `align`-multiple <= cap dividing n;
    otherwise fall back to cap with padding.
    """
    if n <= cap:
        return n, n
    t = cap
    while t >= align:
        if n % t == 0:
            return t, n
        t -= align
    return cap, _round_up(n, cap)


# ----------------------------------------------------------------------------
# Tiled linear kernel:  out = x @ W + b  (optional fused ReLU)
# ----------------------------------------------------------------------------


def _linear_kernel(x_ref, w_ref, b_ref, o_ref, acc_ref, *, relu):
    @pl.when(pl.program_id(2) == 0)
    def _init():
        acc_ref[...] = jnp.zeros_like(acc_ref)

    acc_ref[...] += jnp.dot(
        x_ref[...], w_ref[...], preferred_element_type=jnp.float32
    )

    @pl.when(pl.program_id(2) == pl.num_programs(2) - 1)
    def _finalize():
        y = acc_ref[...] + b_ref[...]
        if relu:
            y = jnp.maximum(y, 0.0)
        o_ref[...] = y.astype(o_ref.dtype)


def linear(x, w, b, relu=False, out_dtype=jnp.bfloat16):
    """x: (M, K), w: (K, N) bf16, b: (1, N) f32 -> (M, N) out_dtype."""
    M, K = x.shape
    N = w.shape[1]

    tm, Mp = _choose_tile(M, 512, 8)
    tk, Kp = _choose_tile(K, 512, 128)
    tn, Np = _choose_tile(N, 512, 128)

    xp = x.astype(jnp.bfloat16)              # no-op if already bf16
    wp = w.astype(jnp.bfloat16)              # weights stored bf16 at init
    bp = b
    if Mp != M or Kp != K:
        xp = jnp.pad(xp, ((0, Mp - M), (0, Kp - K)))
    if Kp != K or Np != N:
        wp = jnp.pad(wp, ((0, Kp - K), (0, Np - N)))
    if Np != N:
        bp = jnp.pad(bp, ((0, 0), (0, Np - N)))

    grid = (Mp // tm, Np // tn, Kp // tk)

    out = pl.pallas_call(
        functools.partial(_linear_kernel, relu=relu),
        out_shape=jax.ShapeDtypeStruct((Mp, Np), out_dtype),
        grid=grid,
        in_specs=[
            pl.BlockSpec((tm, tk), lambda i, j, k: (i, k)),
            pl.BlockSpec((tk, tn), lambda i, j, k: (k, j)),
            pl.BlockSpec((1, tn), lambda i, j, k: (0, j)),
        ],
        out_specs=pl.BlockSpec((tm, tn), lambda i, j, k: (i, j)),
        scratch_shapes=[pltpu.VMEM((tm, tn), jnp.float32)],
        compiler_params=pltpu.CompilerParams(
            dimension_semantics=("parallel", "parallel", "arbitrary"),
            vmem_limit_bytes=_vmem_limit(),
        ),
    )(xp, wp, bp)

    if Mp != M or Np != N:
        out = out[:M, :N]
    return out


# ----------------------------------------------------------------------------
# Fused residual-add + LayerNorm kernel (row tiled, bf16 output)
# ----------------------------------------------------------------------------


def _add_ln_kernel(x_ref, r_ref, g_ref, b_ref, o_ref, *, eps):
    x = x_ref[...].astype(jnp.float32) + r_ref[...].astype(jnp.float32)
    mu = jnp.mean(x, axis=-1, keepdims=True)
    var = jnp.mean(jnp.square(x - mu), axis=-1, keepdims=True)
    y = (x - mu) * jax.lax.rsqrt(var + eps)
    o_ref[...] = (y * g_ref[...] + b_ref[...]).astype(o_ref.dtype)


def add_layer_norm(x, res, g, b, eps=1e-5):
    """LayerNorm(x + res) over the last axis.  x, res: (B, L, D) -> bf16."""
    B, L, D = x.shape
    M = B * L
    tm, Mp = _choose_tile(M, 1024, 8)

    xf = x.reshape(M, D)
    rf = res.reshape(M, D)
    if Mp != M:
        xf = jnp.pad(xf, ((0, Mp - M), (0, 0)))
        rf = jnp.pad(rf, ((0, Mp - M), (0, 0)))

    y = pl.pallas_call(
        functools.partial(_add_ln_kernel, eps=eps),
        out_shape=jax.ShapeDtypeStruct((Mp, D), jnp.bfloat16),
        grid=(Mp // tm,),
        in_specs=[
            pl.BlockSpec((tm, D), lambda i: (i, 0)),
            pl.BlockSpec((tm, D), lambda i: (i, 0)),
            pl.BlockSpec((1, D), lambda i: (0, 0)),
            pl.BlockSpec((1, D), lambda i: (0, 0)),
        ],
        out_specs=pl.BlockSpec((tm, D), lambda i: (i, 0)),
        compiler_params=pltpu.CompilerParams(
            dimension_semantics=("parallel",),
            vmem_limit_bytes=_vmem_limit(),
        ),
    )(xf, rf, g, b)

    if Mp != M:
        y = y[:M]
    return y.reshape(B, L, D)


# ----------------------------------------------------------------------------
# Flash-style multi-head attention: grid=(B, H, Lq_tiles, Lk_tiles)
# ----------------------------------------------------------------------------


def _mha_kernel(q_ref, k_ref, v_ref, m_ref, o_ref, m_sc, l_sc, acc_sc, *, causal):
    ki = pl.program_id(3)

    @pl.when(ki == 0)
    def _init():
        m_sc[...] = jnp.full_like(m_sc, _NEG)
        l_sc[...] = jnp.zeros_like(l_sc)
        acc_sc[...] = jnp.zeros_like(acc_sc)

    q = q_ref[0, 0]                       # (tq, dh) bf16 (scale folded into Wq)
    k = k_ref[0, 0]                       # (tk, dh) bf16
    s = jax.lax.dot_general(              # contract last dims: no K transpose
        q, k, (((1,), (1,)), ((), ())), preferred_element_type=jnp.float32
    )                                     # (tq, tk) f32

    attend = m_ref[0] > 0.0               # (1, tk) key-padding mask
    if causal:
        tq, tk = s.shape
        qpos = pl.program_id(2) * tq + jax.lax.broadcasted_iota(jnp.int32, (tq, tk), 0)
        kpos = ki * tk + jax.lax.broadcasted_iota(jnp.int32, (tq, tk), 1)
        attend = jnp.logical_and(attend, kpos <= qpos)
    s = jnp.where(attend, s, _NEG)

    m_prev = m_sc[...]
    m_new = jnp.maximum(m_prev, jnp.max(s, axis=-1, keepdims=True))
    alpha = jnp.exp(m_prev - m_new)
    p = jnp.exp(s - m_new)
    l_sc[...] = alpha * l_sc[...] + jnp.sum(p, axis=-1, keepdims=True)
    acc_sc[...] = alpha * acc_sc[...] + jnp.dot(
        p.astype(v_ref.dtype), v_ref[0, 0], preferred_element_type=jnp.float32
    )
    m_sc[...] = m_new

    @pl.when(ki == pl.num_programs(3) - 1)
    def _finalize():
        inv = pl.reciprocal(l_sc[...], approx=True)
        o_ref[0, 0] = (acc_sc[...] * inv).astype(o_ref.dtype)


def flash_attention(q, k, v, key_mask, *, causal):
    """q: (B,H,Lq,dh) bf16, k/v: (B,H,Lk,dh) bf16, key_mask: (B,1,Lk) f32."""
    B, H, Lq, dh = q.shape
    Lk = k.shape[2]

    tq, Lqp = _choose_tile(Lq, 256, 8)
    tk, Lkp = _choose_tile(Lk, 256, 128)
    if Lqp != Lq:
        q = jnp.pad(q, ((0, 0), (0, 0), (0, Lqp - Lq), (0, 0)))
    if Lkp != Lk:
        k = jnp.pad(k, ((0, 0), (0, 0), (0, Lkp - Lk), (0, 0)))
        v = jnp.pad(v, ((0, 0), (0, 0), (0, Lkp - Lk), (0, 0)))
        key_mask = jnp.pad(key_mask, ((0, 0), (0, 0), (0, Lkp - Lk)))  # pads masked

    grid = (B, H, Lqp // tq, Lkp // tk)

    out = pl.pallas_call(
        functools.partial(_mha_kernel, causal=causal),
        out_shape=jax.ShapeDtypeStruct((B, H, Lqp, dh), jnp.bfloat16),
        grid=grid,
        in_specs=[
            pl.BlockSpec((1, 1, tq, dh), lambda b, h, qi, ki: (b, h, qi, 0)),
            pl.BlockSpec((1, 1, tk, dh), lambda b, h, qi, ki: (b, h, ki, 0)),
            pl.BlockSpec((1, 1, tk, dh), lambda b, h, qi, ki: (b, h, ki, 0)),
            pl.BlockSpec((1, 1, tk), lambda b, h, qi, ki: (b, 0, ki)),
        ],
        out_specs=pl.BlockSpec((1, 1, tq, dh), lambda b, h, qi, ki: (b, h, qi, 0)),
        scratch_shapes=[
            pltpu.VMEM((tq, 1), jnp.float32),   # running max
            pltpu.VMEM((tq, 1), jnp.float32),   # running sum
            pltpu.VMEM((tq, dh), jnp.float32),  # output accumulator
        ],
        compiler_params=pltpu.CompilerParams(
            dimension_semantics=("parallel", "parallel", "parallel", "arbitrary"),
            vmem_limit_bytes=_vmem_limit(),
        ),
    )(q, k, v, key_mask.astype(jnp.float32))

    if Lqp != Lq:
        out = out[:, :, :Lq]
    return out


# ----------------------------------------------------------------------------
# Model glue (plain JAX around the Pallas kernels)
# ----------------------------------------------------------------------------


def sinusoidal_pe(max_len, d_model):
    pos = jnp.arange(max_len, dtype=jnp.float32)[:, None]
    i = jnp.arange(0, d_model, 2, dtype=jnp.float32)
    div = jnp.exp(-math.log(10000.0) * i / d_model)
    pe = jnp.zeros((max_len, d_model), jnp.float32)
    pe = pe.at[:, 0::2].set(jnp.sin(pos * div))
    pe = pe.at[:, 1::2].set(jnp.cos(pos * div))
    return pe


def embed(ids, emb_table, pe, d_model):
    # token embedding (pad row is zero) * sqrt(d_model) + positional encoding
    x = jnp.take(emb_table, ids, axis=0) * jnp.sqrt(jnp.float32(d_model))
    x = x + pe[None, : ids.shape[1], :]
    return x.astype(jnp.bfloat16)  # bf16 residual stream (f32 math inside kernels)


def multi_head_attention(x_q, x_kv, key_mask, p, n_head, self_attn, causal):
    B, Lq, D = x_q.shape
    Lk = x_kv.shape[1]
    dh = D // n_head

    if self_attn:
        # fused Q|K|V projection: x read once; no HBM split (slice of leading axis)
        qkv = linear(x_q.reshape(B * Lq, D), p["wqkv"], p["bqkv"])
        qkv = qkv.reshape(B, Lq, 3, n_head, dh)
        qkv = jnp.transpose(qkv, (2, 0, 3, 1, 4))  # (3, B, H, L, dh) head-major
        q, k, v = qkv[0], qkv[1], qkv[2]
    else:
        q = linear(x_q.reshape(B * Lq, D), p["wq"], p["bq"])
        q = q.reshape(B, Lq, n_head, dh).transpose(0, 2, 1, 3)
        kv = linear(x_kv.reshape(B * Lk, D), p["wkv"], p["bkv"])
        kv = jnp.transpose(kv.reshape(B, Lk, 2, n_head, dh), (2, 0, 3, 1, 4))
        k, v = kv[0], kv[1]

    o = flash_attention(q, k, v, key_mask, causal=causal)      # (B, H, Lq, dh)
    o = o.transpose(0, 2, 1, 3).reshape(B * Lq, D)              # merge heads
    return linear(o, p["wo"], p["bo"]).reshape(B, Lq, D)


def feed_forward(x, p):
    B, L, D = x.shape
    h = linear(x.reshape(B * L, D), p["w1"], p["b1"], relu=True)
    y = linear(h, p["w2"], p["b2"])
    return y.reshape(B, L, D)


def encoder_layer(x, src_key_mask, p, n_head):
    a = multi_head_attention(x, x, src_key_mask, p["self_attn"], n_head,
                             self_attn=True, causal=False)
    x = add_layer_norm(x, a, p["ln1_g"], p["ln1_b"])
    f = feed_forward(x, p["ffn"])
    x = add_layer_norm(x, f, p["ln2_g"], p["ln2_b"])
    return x


def decoder_layer(x, memory, tgt_key_mask, src_key_mask, p, n_head):
    # target look-ahead mask is generated in-kernel (causal=True)
    a = multi_head_attention(x, x, tgt_key_mask, p["self_attn"], n_head,
                             self_attn=True, causal=True)
    x = add_layer_norm(x, a, p["ln1_g"], p["ln1_b"])
    c = multi_head_attention(x, memory, src_key_mask, p["cross_attn"], n_head,
                             self_attn=False, causal=False)
    x = add_layer_norm(x, c, p["ln2_g"], p["ln2_b"])
    f = feed_forward(x, p["ffn"])
    x = add_layer_norm(x, f, p["ln3_g"], p["ln3_b"])
    return x


def transformer_forward(params, src, tgt, src_mask, tgt_mask, cfg):
    """src_mask: (B,1,Ls) key-padding mask; tgt_mask: (B,1,Lt) key-padding mask.

    The decoder's look-ahead component of the usual (B,Lt,Lt) tgt_mask is built
    inside the attention kernel (causal=True), so only the compact padding
    masks travel through HBM.
    """
    d_model, n_head = cfg["d_model"], cfg["n_head"]

    # --- encode ---
    x = embed(src, params["src_emb"], params["pe_src"], d_model)
    for lp in params["enc_layers"]:
        x = encoder_layer(x, src_mask, lp, n_head)
    memory = x

    # --- decode ---
    y = embed(tgt, params["tgt_emb"], params["pe_tgt"], d_model)
    for lp in params["dec_layers"]:
        y = decoder_layer(y, memory, tgt_mask, src_mask, lp, n_head)

    # --- generator (logits over target vocab) ---
    B, Lt, D = y.shape
    logits = linear(y.reshape(B * Lt, D), params["gen_w"], params["gen_b"],
                    out_dtype=jnp.float32)
    # TODO(synk): reference Generator may apply log_softmax; we return raw logits.
    return logits.reshape(B, Lt, cfg["tgt_vocab_size"])


# ----------------------------------------------------------------------------
# Deterministic parameter init (weights stored bf16; score scale folded into Wq)
# ----------------------------------------------------------------------------


def init_params(key, cfg):
    d, ffn, n_head = cfg["d_model"], cfg["d_ffn_hidden"], cfg["n_head"]
    dh = d // n_head
    q_scale = 1.0 / math.sqrt(dh)
    keys = iter(jax.random.split(key, 512))

    def dense(shape, scale=0.02):
        return scale * jax.random.normal(next(keys), shape, dtype=jnp.float32)

    def bf16(x):
        return x.astype(jnp.bfloat16)

    def attn_self():
        wqkv = dense((d, 3 * d))
        wqkv = wqkv.at[:, :d].multiply(q_scale)   # fold 1/sqrt(dh) into Q proj
        return dict(
            wqkv=bf16(wqkv), bqkv=jnp.zeros((1, 3 * d), jnp.float32),
            wo=bf16(dense((d, d))), bo=jnp.zeros((1, d), jnp.float32),
        )

    def attn_cross():
        return dict(
            wq=bf16(dense((d, d)) * q_scale), bq=jnp.zeros((1, d), jnp.float32),
            wkv=bf16(dense((d, 2 * d))), bkv=jnp.zeros((1, 2 * d), jnp.float32),
            wo=bf16(dense((d, d))), bo=jnp.zeros((1, d), jnp.float32),
        )

    def ffn_block():
        return dict(
            w1=bf16(dense((d, ffn))), b1=jnp.zeros((1, ffn), jnp.float32),
            w2=bf16(dense((ffn, d))), b2=jnp.zeros((1, d), jnp.float32),
        )

    def ln():
        return jnp.ones((1, d), jnp.float32), jnp.zeros((1, d), jnp.float32)

    enc_layers = []
    for _ in range(cfg["n_stack"]):
        g1, b1 = ln(); g2, b2 = ln()
        enc_layers.append(dict(self_attn=attn_self(), ffn=ffn_block(),
                               ln1_g=g1, ln1_b=b1, ln2_g=g2, ln2_b=b2))

    dec_layers = []
    for _ in range(cfg["n_stack"]):
        g1, b1 = ln(); g2, b2 = ln(); g3, b3 = ln()
        dec_layers.append(dict(self_attn=attn_self(), cross_attn=attn_cross(),
                               ffn=ffn_block(),
                               ln1_g=g1, ln1_b=b1, ln2_g=g2, ln2_b=b2,
                               ln3_g=g3, ln3_b=b3))

    src_emb = dense((cfg["src_vocab_size"], d), scale=0.1)
    tgt_emb = dense((cfg["tgt_vocab_size"], d), scale=0.1)
    src_emb = src_emb.at[cfg["pad_idx"]].set(0.0)   # padding_idx row zeroed
    tgt_emb = tgt_emb.at[cfg["pad_idx"]].set(0.0)

    return dict(
        src_emb=src_emb,
        tgt_emb=tgt_emb,
        pe_src=sinusoidal_pe(cfg["src_max_len"], d),
        pe_tgt=sinusoidal_pe(cfg["tgt_max_len"], d),
        enc_layers=enc_layers,
        dec_layers=dec_layers,
        gen_w=bf16(dense((d, cfg["tgt_vocab_size"]))),
        gen_b=jnp.zeros((1, cfg["tgt_vocab_size"]), jnp.float32),
    )


# ----------------------------------------------------------------------------
# Main
# ----------------------------------------------------------------------------

if __name__ == "__main__":
    cfg = dict(
        src_vocab_size=64,
        tgt_vocab_size=64,
        d_model=32,
        n_stack=2,
        n_head=4,
        d_ffn_hidden=64,
        dropout=0.0,          # eval-mode: dropout is identity
        pad_idx=0,
        src_max_len=16,
        tgt_max_len=16,
    )

    B, Ls, Lt = 2, 8, 8
    key = jax.random.PRNGKey(0)
    k_param, k_src, k_tgt = jax.random.split(key, 3)

    params = init_params(k_param, cfg)

    src = jax.random.randint(k_src, (B, Ls), 1, cfg["src_vocab_size"], dtype=jnp.int32)
    tgt = jax.random.randint(k_tgt, (B, Lt), 1, cfg["tgt_vocab_size"], dtype=jnp.int32)

    # compact key-padding masks (1 = attend, 0 = masked); the decoder look-ahead
    # component is generated inside the attention kernel.
    src_mask = (src != cfg["pad_idx"]).astype(jnp.float32)[:, None, :]   # (B,1,Ls)
    tgt_mask = (tgt != cfg["pad_idx"]).astype(jnp.float32)[:, None, :]   # (B,1,Lt)

    fwd = jax.jit(functools.partial(transformer_forward, cfg=cfg))
    logits = fwd(params, src, tgt, src_mask, tgt_mask)
    logits = jax.block_until_ready(logits)

    assert logits.shape == (B, Lt, cfg["tgt_vocab_size"])
    assert bool(jnp.all(jnp.isfinite(logits)))
    print("KERNEL_OK")
</pallas_src>

<mosaic_0001>
module attributes {stable_mosaic.version = 11 : i64} {
  func.func @_linear_kernel(%arg0: i32, %arg1: i32, %arg2: i32, %arg3: memref<16x32xbf16, #tpu.memory_space<vmem>>, %arg4: memref<32x96xbf16, #tpu.memory_space<vmem>>, %arg5: memref<1x96xf32, #tpu.memory_space<vmem>>, %arg6: memref<16x96xbf16, #tpu.memory_space<vmem>>, %arg7: memref<16x96xf32, #tpu.memory_space<vmem>>) attributes {dimension_semantics = [#tpu.dimension_semantics<parallel>, #tpu.dimension_semantics<parallel>, #tpu.dimension_semantics<arbitrary>], iteration_bounds = array<i64: 1, 1, 1>, scalar_prefetch = 0 : i64, scratch_operands = 1 : i64, tpu.core_type = #tpu.core_type<tc>, window_params = [{transform_indices = @transform_0, window_bounds = array<i64: 16, 32>}, {transform_indices = @transform_1, window_bounds = array<i64: 32, 96>}, {transform_indices = @transform_2, window_bounds = array<i64: 1, 96>}, {transform_indices = @transform_3, window_bounds = array<i64: 16, 96>}]} {
    %c0_i32 = arith.constant 0 : i32
    %0 = arith.cmpi eq, %arg2, %c0_i32 : i32
    %1 = arith.extui %0 : i1 to i32
    %c0_i32_0 = arith.constant 0 : i32
    %2 = arith.cmpi ne, %1, %c0_i32_0 : i32
    scf.if %2 {
      %cst_10 = arith.constant 0.000000e+00 : f32
      %12 = vector.broadcast %cst_10 : f32 to vector<16x96xf32>
      %c0_11 = arith.constant 0 : index
      %c0_12 = arith.constant 0 : index
      %13 = vector.load %arg7[%c0_11, %c0_12] : memref<16x96xf32, #tpu.memory_space<vmem>>, vector<16x96xf32>
      tpu.vector_store %arg7[%c0_11, %c0_12], %12 {strides = array<i32>} : memref<16x96xf32, #tpu.memory_space<vmem>>, vector<16x96xf32>,
    } else {
    }
    %c0 = arith.constant 0 : index
    %c0_1 = arith.constant 0 : index
    %3 = vector.load %arg7[%c0, %c0_1] : memref<16x96xf32, #tpu.memory_space<vmem>>, vector<16x96xf32>
    %c0_2 = arith.constant 0 : index
    %c0_3 = arith.constant 0 : index
    %4 = vector.load %arg3[%c0_2, %c0_3] : memref<16x32xbf16, #tpu.memory_space<vmem>>, vector<16x32xbf16>
    %c0_4 = arith.constant 0 : index
    %c0_5 = arith.constant 0 : index
    %5 = vector.load %arg4[%c0_4, %c0_5] : memref<32x96xbf16, #tpu.memory_space<vmem>>, vector<32x96xbf16>
    %cst = arith.constant dense<0.000000e+00> : vector<16x96xf32>
    %6 = tpu.matmul %4, %5, %cst {dimension_numbers = #tpu.dot_dimension_numbers<[1], [0], [0], [1], [0, 0, 1, 1], [], []>} : vector<16x32xbf16>, vector<32x96xbf16>, vector<16x96xf32> -> vector<16x96xf32>
    %7 = arith.addf %3, %6 : vector<16x96xf32>
    %c0_6 = arith.constant 0 : index
    %c0_7 = arith.constant 0 : index
    %8 = vector.load %arg7[%c0_6, %c0_7] : memref<16x96xf32, #tpu.memory_space<vmem>>, vector<16x96xf32>
    tpu.vector_store %arg7[%c0_6, %c0_7], %7 {strides = array<i32>} : memref<16x96xf32, #tpu.memory_space<vmem>>, vector<16x96xf32>,
    %c0_i32_8 = arith.constant 0 : i32
    %9 = arith.cmpi eq, %arg2, %c0_i32_8 : i32
    %10 = arith.extui %9 : i1 to i32
    %c0_i32_9 = arith.constant 0 : i32
    %11 = arith.cmpi ne, %10, %c0_i32_9 : i32
    scf.if %11 {
      %c0_10 = arith.constant 0 : index
      %c0_11 = arith.constant 0 : index
      %12 = vector.load %arg7[%c0_10, %c0_11] : memref<16x96xf32, #tpu.memory_space<vmem>>, vector<16x96xf32>
      %c0_12 = arith.constant 0 : index
      %c0_13 = arith.constant 0 : index
      %13 = vector.load %arg5[%c0_12, %c0_13] : memref<1x96xf32, #tpu.memory_space<vmem>>, vector<1x96xf32>
      %14 = vector.broadcast %13 : vector<1x96xf32> to vector<16x96xf32>
      %15 = arith.addf %12, %14 : vector<16x96xf32>
      %16 = arith.truncf %15 : vector<16x96xf32> to vector<16x96xbf16>
      %c0_14 = arith.constant 0 : index
      %c0_15 = arith.constant 0 : index
      %17 = vector.load %arg6[%c0_14, %c0_15] : memref<16x96xbf16, #tpu.memory_space<vmem>>, vector<16x96xbf16>
      tpu.vector_store %arg6[%c0_14, %c0_15], %16 {strides = array<i32>} : memref<16x96xbf16, #tpu.memory_space<vmem>>, vector<16x96xbf16>,
    } else {
    }
    return
  }
  func.func @transform_0(%arg0: i32, %arg1: i32, %arg2: i32) -> (i32, i32) {
    %c0_i32 = arith.constant 0 : i32
    return %arg0, %arg2 : i32, i32
  }
  func.func @transform_1(%arg0: i32, %arg1: i32, %arg2: i32) -> (i32, i32) {
    %c0_i32 = arith.constant 0 : i32
    return %arg2, %arg1 : i32, i32
  }
  func.func @transform_2(%arg0: i32, %arg1: i32, %arg2: i32) -> (i32, i32) {
    %c0_i32 = arith.constant 0 : i32
    %c0_i32_0 = arith.constant 0 : i32
    return %c0_i32, %arg1 : i32, i32
  }
  func.func @transform_3(%arg0: i32, %arg1: i32, %arg2: i32) -> (i32, i32) {
    %c0_i32 = arith.constant 0 : i32
    return %arg0, %arg1 : i32, i32
  }
}

module attributes {stable_mosaic.version = 11 : i64} {
  func.func @_mha_kernel(%arg0: i32, %arg1: i32, %arg2: i32, %arg3: i32, %arg4: memref<1x1x8x8xbf16, #tpu.memory_space<vmem>>, %arg5: memref<1x1x8x8xbf16, #tpu.memory_space<vmem>>, %arg6: memref<1x1x8x8xbf16, #tpu.memory_space<vmem>>, %arg7: memref<1x1x8xf32, #tpu.memory_space<vmem>>, %arg8: memref<1x1x8x8xbf16, #tpu.memory_space<vmem>>, %arg9: memref<8x1xf32, #tpu.memory_space<vmem>>, %arg10: memref<8x1xf32, #tpu.memory_space<vmem>>, %arg11: memref<8x8xf32, #tpu.memory_space<vmem>>) attributes {dimension_semantics = [#tpu.dimension_semantics<parallel>, #tpu.dimension_semantics<parallel>, #tpu.dimension_semantics<parallel>, #tpu.dimension_semantics<arbitrary>], iteration_bounds = array<i64: 2, 4, 1, 1>, scalar_prefetch = 0 : i64, scratch_operands = 3 : i64, tpu.core_type = #tpu.core_type<tc>, window_params = [{transform_indices = @transform_0, window_bounds = array<i64: 1, 1, 8, 8>}, {transform_indices = @transform_1, window_bounds = array<i64: 1, 1, 8, 8>}, {transform_indices = @transform_2, window_bounds = array<i64: 1, 1, 8, 8>}, {transform_indices = @transform_3, window_bounds = array<i64: 1, 1, 8>}, {transform_indices = @transform_4, window_bounds = array<i64: 1, 1, 8, 8>}]} {
    %c0_i32 = arith.constant 0 : i32
    %0 = arith.cmpi eq, %arg3, %c0_i32 : i32
    %1 = arith.extui %0 : i1 to i32
    %c0_i32_0 = arith.constant 0 : i32
    %2 = arith.cmpi ne, %1, %c0_i32_0 : i32
    scf.if %2 {
      %cst_35 = arith.constant -1.000000e+30 : f32
      %53 = vector.broadcast %cst_35 : f32 to vector<8x1xf32>
      %c0_36 = arith.constant 0 : index
      %c0_37 = arith.constant 0 : index
      %54 = vector.load %arg9[%c0_36, %c0_37] : memref<8x1xf32, #tpu.memory_space<vmem>>, vector<8x1xf32>
      tpu.vector_store %arg9[%c0_36, %c0_37], %53 {strides = array<i32>} : memref<8x1xf32, #tpu.memory_space<vmem>>, vector<8x1xf32>,
      %cst_38 = arith.constant 0.000000e+00 : f32
      %55 = vector.broadcast %cst_38 : f32 to vector<8x1xf32>
      %c0_39 = arith.constant 0 : index
      %c0_40 = arith.constant 0 : index
      %56 = vector.load %arg10[%c0_39, %c0_40] : memref<8x1xf32, #tpu.memory_space<vmem>>, vector<8x1xf32>
      tpu.vector_store %arg10[%c0_39, %c0_40], %55 {strides = array<i32>} : memref<8x1xf32, #tpu.memory_space<vmem>>, vector<8x1xf32>,
      %cst_41 = arith.constant 0.000000e+00 : f32
      %57 = vector.broadcast %cst_41 : f32 to vector<8x8xf32>
      %c0_42 = arith.constant 0 : index
      %c0_43 = arith.constant 0 : index
      %58 = vector.load %arg11[%c0_42, %c0_43] : memref<8x8xf32, #tpu.memory_space<vmem>>, vector<8x8xf32>
      tpu.vector_store %arg11[%c0_42, %c0_43], %57 {strides = array<i32>} : memref<8x8xf32, #tpu.memory_space<vmem>>, vector<8x8xf32>,
    } else {
    }
    %c0 = arith.constant 0 : index
    %c0_1 = arith.constant 0 : index
    %c0_2 = arith.constant 0 : index
    %c0_3 = arith.constant 0 : index
    %3 = vector.load %arg4[%c0, %c0_1, %c0_2, %c0_3] : memref<1x1x8x8xbf16, #tpu.memory_space<vmem>>, vector<1x1x8x8xbf16>
    %4 = vector.shape_cast %3 : vector<1x1x8x8xbf16> to vector<8x8xbf16>
    %c0_4 = arith.constant 0 : index
    %c0_5 = arith.constant 0 : index
    %c0_6 = arith.constant 0 : index
    %c0_7 = arith.constant 0 : index
    %5 = vector.load %arg5[%c0_4, %c0_5, %c0_6, %c0_7] : memref<1x1x8x8xbf16, #tpu.memory_space<vmem>>, vector<1x1x8x8xbf16>
    %6 = vector.shape_cast %5 : vector<1x1x8x8xbf16> to vector<8x8xbf16>
    %cst = arith.constant dense<0.000000e+00> : vector<8x8xf32>
    %7 = tpu.matmul %4, %6, %cst {dimension_numbers = #tpu.dot_dimension_numbers<[1], [1], [0], [0], [0, 0, 1, 0], [], []>} : vector<8x8xbf16>, vector<8x8xbf16>, vector<8x8xf32> -> vector<8x8xf32>
    %c0_8 = arith.constant 0 : index
    %c0_9 = arith.constant 0 : index
    %c0_10 = arith.constant 0 : index
    %8 = vector.load %arg7[%c0_8, %c0_9, %c0_10] : memref<1x1x8xf32, #tpu.memory_space<vmem>>, vector<1x1x8xf32>
    %9 = vector.shape_cast %8 : vector<1x1x8xf32> to vector<1x8xf32>
    %cst_11 = arith.constant 0.000000e+00 : f32
    %10 = vector.broadcast %cst_11 : f32 to vector<1x8xf32>
    %11 = arith.cmpf ogt, %9, %10 : vector<1x8xf32>
    %c8_i32 = arith.constant 8 : i32
    %12 = arith.muli %arg2, %c8_i32 : i32
    %13 = tpu.iota {dimensions = array<i32: 0>} : vector<8x8xi32>
    %14 = vector.broadcast %12 : i32 to vector<8x8xi32>
    %15 = arith.addi %14, %13 : vector<8x8xi32>
    %c8_i32_12 = arith.constant 8 : i32
    %16 = arith.muli %arg3, %c8_i32_12 : i32
    %17 = tpu.iota {dimensions = array<i32: 1>} : vector<8x8xi32>
    %18 = vector.broadcast %16 : i32 to vector<8x8xi32>
    %19 = arith.addi %18, %17 : vector<8x8xi32>
    %20 = arith.cmpi sle, %19, %15 : vector<8x8xi32>
    %21 = vector.broadcast %11 : vector<1x8xi1> to vector<8x8xi1>
    %22 = arith.andi %21, %20 : vector<8x8xi1>
    %cst_13 = arith.constant -1.000000e+30 : f32
    %23 = vector.broadcast %cst_13 : f32 to vector<8x8xf32>
    %24 = arith.select %22, %7, %23 : vector<8x8xi1>, vector<8x8xf32>
    %c0_14 = arith.constant 0 : index
    %c0_15 = arith.constant 0 : index
    %25 = vector.load %arg9[%c0_14, %c0_15] : memref<8x1xf32, #tpu.memory_space<vmem>>, vector<8x1xf32>
    %cst_16 = arith.constant dense<0xFF800000> : vector<8xf32>
    %26 = vector.multi_reduction <maximumf>, %24, %cst_16 [1] : vector<8x8xf32> to vector<8xf32>
    %27 = vector.shape_cast %26 : vector<8xf32> to vector<8x1xf32>
    %28 = arith.maximumf %25, %27 : vector<8x1xf32>
    %29 = arith.subf %25, %28 : vector<8x1xf32>
    %30 = math.exp %29 : vector<8x1xf32>
    %31 = vector.broadcast %28 : vector<8x1xf32> to vector<8x8xf32>
    %32 = arith.subf %24, %31 : vector<8x8xf32>
    %33 = math.exp %32 : vector<8x8xf32>
    %c0_17 = arith.constant 0 : index
    %c0_18 = arith.constant 0 : index
    %34 = vector.load %arg10[%c0_17, %c0_18] : memref<8x1xf32, #tpu.memory_space<vmem>>, vector<8x1xf32>
    %35 = arith.mulf %30, %34 : vector<8x1xf32>
    %cst_19 = arith.constant dense<0.000000e+00> : vector<8xf32>
    %36 = vector.multi_reduction <add>, %33, %cst_19 [1] : vector<8x8xf32> to vector<8xf32>
    %37 = vector.shape_cast %36 : vector<8xf32> to vector<8x1xf32>
    %38 = arith.addf %35, %37 : vector<8x1xf32>
    %c0_20 = arith.constant 0 : index
    %c0_21 = arith.constant 0 : index
    %39 = vector.load %arg10[%c0_20, %c0_21] : memref<8x1xf32, #tpu.memory_space<vmem>>, vector<8x1xf32>
    tpu.vector_store %arg10[%c0_20, %c0_21], %38 {strides = array<i32>} : memref<8x1xf32, #tpu.memory_space<vmem>>, vector<8x1xf32>,
    %c0_22 = arith.constant 0 : index
    %c0_23 = arith.constant 0 : index
    %40 = vector.load %arg11[%c0_22, %c0_23] : memref<8x8xf32, #tpu.memory_space<vmem>>, vector<8x8xf32>
    %41 = vector.broadcast %30 : vector<8x1xf32> to vector<8x8xf32>
    %42 = arith.mulf %41, %40 : vector<8x8xf32>
    %43 = arith.truncf %33 : vector<8x8xf32> to vector<8x8xbf16>
    %c0_24 = arith.constant 0 : index
    %c0_25 = arith.constant 0 : index
    %c0_26 = arith.constant 0 : index
    %c0_27 = arith.constant 0 : index
    %44 = vector.load %arg6[%c0_24, %c0_25, %c0_26, %c0_27] : memref<1x1x8x8xbf16, #tpu.memory_space<vmem>>, vector<1x1x8x8xbf16>
    %45 = vector.shape_cast %44 : vector<1x1x8x8xbf16> to vector<8x8xbf16>
    %cst_28 = arith.constant dense<0.000000e+00> : vector<8x8xf32>
    %46 = tpu.matmul %43, %45, %cst_28 {dimension_numbers = #tpu.dot_dimension_numbers<[1], [0], [0], [1], [0, 0, 1, 1], [], []>} : vector<8x8xbf16>, vector<8x8xbf16>, vector<8x8xf32> -> vector<8x8xf32>
    %47 = arith.addf %42, %46 : vector<8x8xf32>
    %c0_29 = arith.constant 0 : index
    %c0_30 = arith.constant 0 : index
    %48 = vector.load %arg11[%c0_29, %c0_30] : memref<8x8xf32, #tpu.memory_space<vmem>>, vector<8x8xf32>
    tpu.vector_store %arg11[%c0_29, %c0_30], %47 {strides = array<i32>} : memref<8x8xf32, #tpu.memory_space<vmem>>, vector<8x8xf32>,
    %c0_31 = arith.constant 0 : index
    %c0_32 = arith.constant 0 : index
    %49 = vector.load %arg9[%c0_31, %c0_32] : memref<8x1xf32, #tpu.memory_space<vmem>>, vector<8x1xf32>
    tpu.vector_store %arg9[%c0_31, %c0_32], %28 {strides = array<i32>} : memref<8x1xf32, #tpu.memory_space<vmem>>, vector<8x1xf32>,
    %c0_i32_33 = arith.constant 0 : i32
    %50 = arith.cmpi eq, %arg3, %c0_i32_33 : i32
    %51 = arith.extui %50 : i1 to i32
    %c0_i32_34 = arith.constant 0 : i32
    %52 = arith.cmpi ne, %51, %c0_i32_34 : i32
    scf.if %52 {
      %c0_35 = arith.constant 0 : index
      %c0_36 = arith.constant 0 : index
      %53 = vector.load %arg10[%c0_35, %c0_36] : memref<8x1xf32, #tpu.memory_space<vmem>>, vector<8x1xf32>
      %54 = tpu.reciprocal %53 {approx = true} : vector<8x1xf32> -> vector<8x1xf32>
      %c0_37 = arith.constant 0 : index
      %c0_38 = arith.constant 0 : index
      %55 = vector.load %arg11[%c0_37, %c0_38] : memref<8x8xf32, #tpu.memory_space<vmem>>, vector<8x8xf32>
      %56 = vector.broadcast %54 : vector<8x1xf32> to vector<8x8xf32>
      %57 = arith.mulf %55, %56 : vector<8x8xf32>
      %58 = arith.truncf %57 : vector<8x8xf32> to vector<8x8xbf16>
      %c0_39 = arith.constant 0 : index
      %c0_40 = arith.constant 0 : index
      %c0_41 = arith.constant 0 : index
      %c0_42 = arith.constant 0 : index
      %59 = vector.load %arg8[%c0_39, %c0_40, %c0_41, %c0_42] : memref<1x1x8x8xbf16, #tpu.memory_space<vmem>>, vector<1x1x8x8xbf16>
      %60 = vector.shape_cast %59 : vector<1x1x8x8xbf16> to vector<8x8xbf16>
      %61 = vector.shape_cast %58 : vector<8x8xbf16> to vector<1x1x8x8xbf16>
      tpu.vector_store %arg8[%c0_39, %c0_40, %c0_41, %c0_42], %61 {strides = array<i32>} : memref<1x1x8x8xbf16, #tpu.memory_space<vmem>>, vector<1x1x8x8xbf16>,
    } else {
    }
    return
  }
  func.func @transform_0(%arg0: i32, %arg1: i32, %arg2: i32, %arg3: i32) -> (i32, i32, i32, i32) {
    %c0_i32 = arith.constant 0 : i32
    %c0_i32_0 = arith.constant 0 : i32
    return %arg0, %arg1, %arg2, %c0_i32 : i32, i32, i32, i32
  }
  func.func @transform_1(%arg0: i32, %arg1: i32, %arg2: i32, %arg3: i32) -> (i32, i32, i32, i32) {
    %c0_i32 = arith.constant 0 : i32
    %c0_i32_0 = arith.constant 0 : i32
    return %arg0, %arg1, %arg3, %c0_i32 : i32, i32, i32, i32
  }
  func.func @transform_2(%arg0: i32, %arg1: i32, %arg2: i32, %arg3: i32) -> (i32, i32, i32, i32) {
    %c0_i32 = arith.constant 0 : i32
    %c0_i32_0 = arith.constant 0 : i32
    return %arg0, %arg1, %arg3, %c0_i32 : i32, i32, i32, i32
  }
  func.func @transform_3(%arg0: i32, %arg1: i32, %arg2: i32, %arg3: i32) -> (i32, i32, i32) {
    %c0_i32 = arith.constant 0 : i32
    %c0_i32_0 = arith.constant 0 : i32
    return %arg0, %c0_i32, %arg3 : i32, i32, i32
  }
  func.func @transform_4(%arg0: i32, %arg1: i32, %arg2: i32, %arg3: i32) -> (i32, i32, i32, i32) {
    %c0_i32 = arith.constant 0 : i32
    %c0_i32_0 = arith.constant 0 : i32
    return %arg0, %arg1, %arg2, %c0_i32 : i32, i32, i32, i32
  }
}

module attributes {stable_mosaic.version = 11 : i64} {
  func.func @_linear_kernel(%arg0: i32, %arg1: i32, %arg2: i32, %arg3: memref<16x32xbf16, #tpu.memory_space<vmem>>, %arg4: memref<32x32xbf16, #tpu.memory_space<vmem>>, %arg5: memref<1x32xf32, #tpu.memory_space<vmem>>, %arg6: memref<16x32xbf16, #tpu.memory_space<vmem>>, %arg7: memref<16x32xf32, #tpu.memory_space<vmem>>) attributes {dimension_semantics = [#tpu.dimension_semantics<parallel>, #tpu.dimension_semantics<parallel>, #tpu.dimension_semantics<arbitrary>], iteration_bounds = array<i64: 1, 1, 1>, scalar_prefetch = 0 : i64, scratch_operands = 1 : i64, tpu.core_type = #tpu.core_type<tc>, window_params = [{transform_indices = @transform_0, window_bounds = array<i64: 16, 32>}, {transform_indices = @transform_1, window_bounds = array<i64: 32, 32>}, {transform_indices = @transform_2, window_bounds = array<i64: 1, 32>}, {transform_indices = @transform_3, window_bounds = array<i64: 16, 32>}]} {
    %c0_i32 = arith.constant 0 : i32
    %0 = arith.cmpi eq, %arg2, %c0_i32 : i32
    %1 = arith.extui %0 : i1 to i32
    %c0_i32_0 = arith.constant 0 : i32
    %2 = arith.cmpi ne, %1, %c0_i32_0 : i32
    scf.if %2 {
      %cst_10 = arith.constant 0.000000e+00 : f32
      %12 = vector.broadcast %cst_10 : f32 to vector<16x32xf32>
      %c0_11 = arith.constant 0 : index
      %c0_12 = arith.constant 0 : index
      %13 = vector.load %arg7[%c0_11, %c0_12] : memref<16x32xf32, #tpu.memory_space<vmem>>, vector<16x32xf32>
      tpu.vector_store %arg7[%c0_11, %c0_12], %12 {strides = array<i32>} : memref<16x32xf32, #tpu.memory_space<vmem>>, vector<16x32xf32>,
    } else {
    }
    %c0 = arith.constant 0 : index
    %c0_1 = arith.constant 0 : index
    %3 = vector.load %arg7[%c0, %c0_1] : memref<16x32xf32, #tpu.memory_space<vmem>>, vector<16x32xf32>
    %c0_2 = arith.constant 0 : index
    %c0_3 = arith.constant 0 : index
    %4 = vector.load %arg3[%c0_2, %c0_3] : memref<16x32xbf16, #tpu.memory_space<vmem>>, vector<16x32xbf16>
    %c0_4 = arith.constant 0 : index
    %c0_5 = arith.constant 0 : index
    %5 = vector.load %arg4[%c0_4, %c0_5] : memref<32x32xbf16, #tpu.memory_space<vmem>>, vector<32x32xbf16>
    %cst = arith.constant dense<0.000000e+00> : vector<16x32xf32>
    %6 = tpu.matmul %4, %5, %cst {dimension_numbers = #tpu.dot_dimension_numbers<[1], [0], [0], [1], [0, 0, 1, 1], [], []>} : vector<16x32xbf16>, vector<32x32xbf16>, vector<16x32xf32> -> vector<16x32xf32>
    %7 = arith.addf %3, %6 : vector<16x32xf32>
    %c0_6 = arith.constant 0 : index
    %c0_7 = arith.constant 0 : index
    %8 = vector.load %arg7[%c0_6, %c0_7] : memref<16x32xf32, #tpu.memory_space<vmem>>, vector<16x32xf32>
    tpu.vector_store %arg7[%c0_6, %c0_7], %7 {strides = array<i32>} : memref<16x32xf32, #tpu.memory_space<vmem>>, vector<16x32xf32>,
    %c0_i32_8 = arith.constant 0 : i32
    %9 = arith.cmpi eq, %arg2, %c0_i32_8 : i32
    %10 = arith.extui %9 : i1 to i32
    %c0_i32_9 = arith.constant 0 : i32
    %11 = arith.cmpi ne, %10, %c0_i32_9 : i32
    scf.if %11 {
      %c0_10 = arith.constant 0 : index
      %c0_11 = arith.constant 0 : index
      %12 = vector.load %arg7[%c0_10, %c0_11] : memref<16x32xf32, #tpu.memory_space<vmem>>, vector<16x32xf32>
      %c0_12 = arith.constant 0 : index
      %c0_13 = arith.constant 0 : index
      %13 = vector.load %arg5[%c0_12, %c0_13] : memref<1x32xf32, #tpu.memory_space<vmem>>, vector<1x32xf32>
      %14 = vector.broadcast %13 : vector<1x32xf32> to vector<16x32xf32>
      %15 = arith.addf %12, %14 : vector<16x32xf32>
      %16 = arith.truncf %15 : vector<16x32xf32> to vector<16x32xbf16>
      %c0_14 = arith.constant 0 : index
      %c0_15 = arith.constant 0 : index
      %17 = vector.load %arg6[%c0_14, %c0_15] : memref<16x32xbf16, #tpu.memory_space<vmem>>, vector<16x32xbf16>
      tpu.vector_store %arg6[%c0_14, %c0_15], %16 {strides = array<i32>} : memref<16x32xbf16, #tpu.memory_space<vmem>>, vector<16x32xbf16>,
    } else {
    }
    return
  }
  func.func @transform_0(%arg0: i32, %arg1: i32, %arg2: i32) -> (i32, i32) {
    %c0_i32 = arith.constant 0 : i32
    return %arg0, %arg2 : i32, i32
  }
  func.func @transform_1(%arg0: i32, %arg1: i32, %arg2: i32) -> (i32, i32) {
    %c0_i32 = arith.constant 0 : i32
    return %arg2, %arg1 : i32, i32
  }
  func.func @transform_2(%arg0: i32, %arg1: i32, %arg2: i32) -> (i32, i32) {
    %c0_i32 = arith.constant 0 : i32
    %c0_i32_0 = arith.constant 0 : i32
    return %c0_i32, %arg1 : i32, i32
  }
  func.func @transform_3(%arg0: i32, %arg1: i32, %arg2: i32) -> (i32, i32) {
    %c0_i32 = arith.constant 0 : i32
    return %arg0, %arg1 : i32, i32
  }
}

module attributes {stable_mosaic.version = 11 : i64} {
  func.func @_add_ln_kernel(%arg0: i32, %arg1: memref<16x32xbf16, #tpu.memory_space<vmem>>, %arg2: memref<16x32xbf16, #tpu.memory_space<vmem>>, %arg3: memref<1x32xf32, #tpu.memory_space<vmem>>, %arg4: memref<1x32xf32, #tpu.memory_space<vmem>>, %arg5: memref<16x32xbf16, #tpu.memory_space<vmem>>) attributes {dimension_semantics = [#tpu.dimension_semantics<parallel>], iteration_bounds = array<i64: 1>, scalar_prefetch = 0 : i64, scratch_operands = 0 : i64, tpu.core_type = #tpu.core_type<tc>, window_params = [{transform_indices = @transform_0, window_bounds = array<i64: 16, 32>}, {transform_indices = @transform_1, window_bounds = array<i64: 16, 32>}, {pipeline_mode = #tpu.pipeline_mode<synchronous>, transform_indices = @transform_2, window_bounds = array<i64: 1, 32>}, {pipeline_mode = #tpu.pipeline_mode<synchronous>, transform_indices = @transform_3, window_bounds = array<i64: 1, 32>}, {transform_indices = @transform_4, window_bounds = array<i64: 16, 32>}]} {
    %c0 = arith.constant 0 : index
    %c0_0 = arith.constant 0 : index
    %0 = vector.load %arg1[%c0, %c0_0] : memref<16x32xbf16, #tpu.memory_space<vmem>>, vector<16x32xbf16>
    %1 = arith.extf %0 : vector<16x32xbf16> to vector<16x32xf32>
    %c0_1 = arith.constant 0 : index
    %c0_2 = arith.constant 0 : index
    %2 = vector.load %arg2[%c0_1, %c0_2] : memref<16x32xbf16, #tpu.memory_space<vmem>>, vector<16x32xbf16>
    %3 = arith.extf %2 : vector<16x32xbf16> to vector<16x32xf32>
    %4 = arith.addf %1, %3 : vector<16x32xf32>
    %cst = arith.constant dense<0.000000e+00> : vector<16xf32>
    %5 = vector.multi_reduction <add>, %4, %cst [1] : vector<16x32xf32> to vector<16xf32>
    %6 = vector.shape_cast %5 : vector<16xf32> to vector<16x1xf32>
    %cst_3 = arith.constant 3.200000e+01 : f32
    %7 = vector.broadcast %cst_3 : f32 to vector<16x1xf32>
    %8 = arith.divf %6, %7 : vector<16x1xf32>
    %9 = vector.broadcast %8 : vector<16x1xf32> to vector<16x32xf32>
    %10 = arith.subf %4, %9 : vector<16x32xf32>
    %11 = arith.mulf %10, %10 : vector<16x32xf32>
    %cst_4 = arith.constant dense<0.000000e+00> : vector<16xf32>
    %12 = vector.multi_reduction <add>, %11, %cst_4 [1] : vector<16x32xf32> to vector<16xf32>
    %13 = vector.shape_cast %12 : vector<16xf32> to vector<16x1xf32>
    %cst_5 = arith.constant 3.200000e+01 : f32
    %14 = vector.broadcast %cst_5 : f32 to vector<16x1xf32>
    %15 = arith.divf %13, %14 : vector<16x1xf32>
    %16 = vector.broadcast %8 : vector<16x1xf32> to vector<16x32xf32>
    %17 = arith.subf %4, %16 : vector<16x32xf32>
    %cst_6 = arith.constant 9.99999974E-6 : f32
    %18 = vector.broadcast %cst_6 : f32 to vector<16x1xf32>
    %19 = arith.addf %15, %18 : vector<16x1xf32>
    %20 = math.rsqrt %19 : vector<16x1xf32>
    %21 = vector.broadcast %20 : vector<16x1xf32> to vector<16x32xf32>
    %22 = arith.mulf %17, %21 : vector<16x32xf32>
    %c0_7 = arith.constant 0 : index
    %c0_8 = arith.constant 0 : index
    %23 = vector.load %arg3[%c0_7, %c0_8] : memref<1x32xf32, #tpu.memory_space<vmem>>, vector<1x32xf32>
    %24 = vector.broadcast %23 : vector<1x32xf32> to vector<16x32xf32>
    %25 = arith.mulf %22, %24 : vector<16x32xf32>
    %c0_9 = arith.constant 0 : index
    %c0_10 = arith.constant 0 : index
    %26 = vector.load %arg4[%c0_9, %c0_10] : memref<1x32xf32, #tpu.memory_space<vmem>>, vector<1x32xf32>
    %27 = vector.broadcast %26 : vector<1x32xf32> to vector<16x32xf32>
    %28 = arith.addf %25, %27 : vector<16x32xf32>
    %29 = arith.truncf %28 : vector<16x32xf32> to vector<16x32xbf16>
    %c0_11 = arith.constant 0 : index
    %c0_12 = arith.constant 0 : index
    %30 = vector.load %arg5[%c0_11, %c0_12] : memref<16x32xbf16, #tpu.memory_space<vmem>>, vector<16x32xbf16>
    tpu.vector_store %arg5[%c0_11, %c0_12], %29 {strides = array<i32>} : memref<16x32xbf16, #tpu.memory_space<vmem>>, vector<16x32xbf16>,
    return
  }
  func.func @transform_0(%arg0: i32) -> (i32, i32) {
    %c0_i32 = arith.constant 0 : i32
    %c0_i32_0 = arith.constant 0 : i32
    return %arg0, %c0_i32 : i32, i32
  }
  func.func @transform_1(%arg0: i32) -> (i32, i32) {
    %c0_i32 = arith.constant 0 : i32
    %c0_i32_0 = arith.constant 0 : i32
    return %arg0, %c0_i32 : i32, i32
  }
  func.func @transform_2(%arg0: i32) -> (i32, i32) {
    %c0_i32 = arith.constant 0 : i32
    %c0_i32_0 = arith.constant 0 : i32
    %c0_i32_1 = arith.constant 0 : i32
    return %c0_i32, %c0_i32_0 : i32, i32
  }
  func.func @transform_3(%arg0: i32) -> (i32, i32) {
    %c0_i32 = arith.constant 0 : i32
    %c0_i32_0 = arith.constant 0 : i32
    %c0_i32_1 = arith.constant 0 : i32
    return %c0_i32, %c0_i32_0 : i32, i32
  }
  func.func @transform_4(%arg0: i32) -> (i32, i32) {
    %c0_i32 = arith.constant 0 : i32
    %c0_i32_0 = arith.constant 0 : i32
    return %arg0, %c0_i32 : i32, i32
  }
}

module attributes {stable_mosaic.version = 11 : i64} {
  func.func @_linear_kernel(%arg0: i32, %arg1: i32, %arg2: i32, %arg3: memref<16x32xbf16, #tpu.memory_space<vmem>>, %arg4: memref<32x64xbf16, #tpu.memory_space<vmem>>, %arg5: memref<1x64xf32, #tpu.memory_space<vmem>>, %arg6: memref<16x64xbf16, #tpu.memory_space<vmem>>, %arg7: memref<16x64xf32, #tpu.memory_space<vmem>>) attributes {dimension_semantics = [#tpu.dimension_semantics<parallel>, #tpu.dimension_semantics<parallel>, #tpu.dimension_semantics<arbitrary>], iteration_bounds = array<i64: 1, 1, 1>, scalar_prefetch = 0 : i64, scratch_operands = 1 : i64, tpu.core_type = #tpu.core_type<tc>, window_params = [{transform_indices = @transform_0, window_bounds = array<i64: 16, 32>}, {transform_indices = @transform_1, window_bounds = array<i64: 32, 64>}, {transform_indices = @transform_2, window_bounds = array<i64: 1, 64>}, {transform_indices = @transform_3, window_bounds = array<i64: 16, 64>}]} {
    %c0_i32 = arith.constant 0 : i32
    %0 = arith.cmpi eq, %arg2, %c0_i32 : i32
    %1 = arith.extui %0 : i1 to i32
    %c0_i32_0 = arith.constant 0 : i32
    %2 = arith.cmpi ne, %1, %c0_i32_0 : i32
    scf.if %2 {
      %cst_10 = arith.constant 0.000000e+00 : f32
      %12 = vector.broadcast %cst_10 : f32 to vector<16x64xf32>
      %c0_11 = arith.constant 0 : index
      %c0_12 = arith.constant 0 : index
      %13 = vector.load %arg7[%c0_11, %c0_12] : memref<16x64xf32, #tpu.memory_space<vmem>>, vector<16x64xf32>
      tpu.vector_store %arg7[%c0_11, %c0_12], %12 {strides = array<i32>} : memref<16x64xf32, #tpu.memory_space<vmem>>, vector<16x64xf32>,
    } else {
    }
    %c0 = arith.constant 0 : index
    %c0_1 = arith.constant 0 : index
    %3 = vector.load %arg7[%c0, %c0_1] : memref<16x64xf32, #tpu.memory_space<vmem>>, vector<16x64xf32>
    %c0_2 = arith.constant 0 : index
    %c0_3 = arith.constant 0 : index
    %4 = vector.load %arg3[%c0_2, %c0_3] : memref<16x32xbf16, #tpu.memory_space<vmem>>, vector<16x32xbf16>
    %c0_4 = arith.constant 0 : index
    %c0_5 = arith.constant 0 : index
    %5 = vector.load %arg4[%c0_4, %c0_5] : memref<32x64xbf16, #tpu.memory_space<vmem>>, vector<32x64xbf16>
    %cst = arith.constant dense<0.000000e+00> : vector<16x64xf32>
    %6 = tpu.matmul %4, %5, %cst {dimension_numbers = #tpu.dot_dimension_numbers<[1], [0], [0], [1], [0, 0, 1, 1], [], []>} : vector<16x32xbf16>, vector<32x64xbf16>, vector<16x64xf32> -> vector<16x64xf32>
    %7 = arith.addf %3, %6 : vector<16x64xf32>
    %c0_6 = arith.constant 0 : index
    %c0_7 = arith.constant 0 : index
    %8 = vector.load %arg7[%c0_6, %c0_7] : memref<16x64xf32, #tpu.memory_space<vmem>>, vector<16x64xf32>
    tpu.vector_store %arg7[%c0_6, %c0_7], %7 {strides = array<i32>} : memref<16x64xf32, #tpu.memory_space<vmem>>, vector<16x64xf32>,
    %c0_i32_8 = arith.constant 0 : i32
    %9 = arith.cmpi eq, %arg2, %c0_i32_8 : i32
    %10 = arith.extui %9 : i1 to i32
    %c0_i32_9 = arith.constant 0 : i32
    %11 = arith.cmpi ne, %10, %c0_i32_9 : i32
    scf.if %11 {
      %c0_10 = arith.constant 0 : index
      %c0_11 = arith.constant 0 : index
      %12 = vector.load %arg7[%c0_10, %c0_11] : memref<16x64xf32, #tpu.memory_space<vmem>>, vector<16x64xf32>
      %c0_12 = arith.constant 0 : index
      %c0_13 = arith.constant 0 : index
      %13 = vector.load %arg5[%c0_12, %c0_13] : memref<1x64xf32, #tpu.memory_space<vmem>>, vector<1x64xf32>
      %14 = vector.broadcast %13 : vector<1x64xf32> to vector<16x64xf32>
      %15 = arith.addf %12, %14 : vector<16x64xf32>
      %cst_14 = arith.constant 0.000000e+00 : f32
      %16 = vector.broadcast %cst_14 : f32 to vector<16x64xf32>
      %17 = arith.maximumf %15, %16 : vector<16x64xf32>
      %18 = arith.truncf %17 : vector<16x64xf32> to vector<16x64xbf16>
      %c0_15 = arith.constant 0 : index
      %c0_16 = arith.constant 0 : index
      %19 = vector.load %arg6[%c0_15, %c0_16] : memref<16x64xbf16, #tpu.memory_space<vmem>>, vector<16x64xbf16>
      tpu.vector_store %arg6[%c0_15, %c0_16], %18 {strides = array<i32>} : memref<16x64xbf16, #tpu.memory_space<vmem>>, vector<16x64xbf16>,
    } else {
    }
    return
  }
  func.func @transform_0(%arg0: i32, %arg1: i32, %arg2: i32) -> (i32, i32) {
    %c0_i32 = arith.constant 0 : i32
    return %arg0, %arg2 : i32, i32
  }
  func.func @transform_1(%arg0: i32, %arg1: i32, %arg2: i32) -> (i32, i32) {
    %c0_i32 = arith.constant 0 : i32
    return %arg2, %arg1 : i32, i32
  }
  func.func @transform_2(%arg0: i32, %arg1: i32, %arg2: i32) -> (i32, i32) {
    %c0_i32 = arith.constant 0 : i32
    %c0_i32_0 = arith.constant 0 : i32
    return %c0_i32, %arg1 : i32, i32
  }
  func.func @transform_3(%arg0: i32, %arg1: i32, %arg2: i32) -> (i32, i32) {
    %c0_i32 = arith.constant 0 : i32
    return %arg0, %arg1 : i32, i32
  }
}

module attributes {stable_mosaic.version = 11 : i64} {
  func.func @_linear_kernel(%arg0: i32, %arg1: i32, %arg2: i32, %arg3: memref<16x64xbf16, #tpu.memory_space<vmem>>, %arg4: memref<64x32xbf16, #tpu.memory_space<vmem>>, %arg5: memref<1x32xf32, #tpu.memory_space<vmem>>, %arg6: memref<16x32xbf16, #tpu.memory_space<vmem>>, %arg7: memref<16x32xf32, #tpu.memory_space<vmem>>) attributes {dimension_semantics = [#tpu.dimension_semantics<parallel>, #tpu.dimension_semantics<parallel>, #tpu.dimension_semantics<arbitrary>], iteration_bounds = array<i64: 1, 1, 1>, scalar_prefetch = 0 : i64, scratch_operands = 1 : i64, tpu.core_type = #tpu.core_type<tc>, window_params = [{transform_indices = @transform_0, window_bounds = array<i64: 16, 64>}, {transform_indices = @transform_1, window_bounds = array<i64: 64, 32>}, {transform_indices = @transform_2, window_bounds = array<i64: 1, 32>}, {transform_indices = @transform_3, window_bounds = array<i64: 16, 32>}]} {
    %c0_i32 = arith.constant 0 : i32
    %0 = arith.cmpi eq, %arg2, %c0_i32 : i32
    %1 = arith.extui %0 : i1 to i32
    %c0_i32_0 = arith.constant 0 : i32
    %2 = arith.cmpi ne, %1, %c0_i32_0 : i32
    scf.if %2 {
      %cst_10 = arith.constant 0.000000e+00 : f32
      %12 = vector.broadcast %cst_10 : f32 to vector<16x32xf32>
      %c0_11 = arith.constant 0 : index
      %c0_12 = arith.constant 0 : index
      %13 = vector.load %arg7[%c0_11, %c0_12] : memref<16x32xf32, #tpu.memory_space<vmem>>, vector<16x32xf32>
      tpu.vector_store %arg7[%c0_11, %c0_12], %12 {strides = array<i32>} : memref<16x32xf32, #tpu.memory_space<vmem>>, vector<16x32xf32>,
    } else {
    }
    %c0 = arith.constant 0 : index
    %c0_1 = arith.constant 0 : index
    %3 = vector.load %arg7[%c0, %c0_1] : memref<16x32xf32, #tpu.memory_space<vmem>>, vector<16x32xf32>
    %c0_2 = arith.constant 0 : index
    %c0_3 = arith.constant 0 : index
    %4 = vector.load %arg3[%c0_2, %c0_3] : memref<16x64xbf16, #tpu.memory_space<vmem>>, vector<16x64xbf16>
    %c0_4 = arith.constant 0 : index
    %c0_5 = arith.constant 0 : index
    %5 = vector.load %arg4[%c0_4, %c0_5] : memref<64x32xbf16, #tpu.memory_space<vmem>>, vector<64x32xbf16>
    %cst = arith.constant dense<0.000000e+00> : vector<16x32xf32>
    %6 = tpu.matmul %4, %5, %cst {dimension_numbers = #tpu.dot_dimension_numbers<[1], [0], [0], [1], [0, 0, 1, 1], [], []>} : vector<16x64xbf16>, vector<64x32xbf16>, vector<16x32xf32> -> vector<16x32xf32>
    %7 = arith.addf %3, %6 : vector<16x32xf32>
    %c0_6 = arith.constant 0 : index
    %c0_7 = arith.constant 0 : index
    %8 = vector.load %arg7[%c0_6, %c0_7] : memref<16x32xf32, #tpu.memory_space<vmem>>, vector<16x32xf32>
    tpu.vector_store %arg7[%c0_6, %c0_7], %7 {strides = array<i32>} : memref<16x32xf32, #tpu.memory_space<vmem>>, vector<16x32xf32>,
    %c0_i32_8 = arith.constant 0 : i32
    %9 = arith.cmpi eq, %arg2, %c0_i32_8 : i32
    %10 = arith.extui %9 : i1 to i32
    %c0_i32_9 = arith.constant 0 : i32
    %11 = arith.cmpi ne, %10, %c0_i32_9 : i32
    scf.if %11 {
      %c0_10 = arith.constant 0 : index
      %c0_11 = arith.constant 0 : index
      %12 = vector.load %arg7[%c0_10, %c0_11] : memref<16x32xf32, #tpu.memory_space<vmem>>, vector<16x32xf32>
      %c0_12 = arith.constant 0 : index
      %c0_13 = arith.constant 0 : index
      %13 = vector.load %arg5[%c0_12, %c0_13] : memref<1x32xf32, #tpu.memory_space<vmem>>, vector<1x32xf32>
      %14 = vector.broadcast %13 : vector<1x32xf32> to vector<16x32xf32>
      %15 = arith.addf %12, %14 : vector<16x32xf32>
      %16 = arith.truncf %15 : vector<16x32xf32> to vector<16x32xbf16>
      %c0_14 = arith.constant 0 : index
      %c0_15 = arith.constant 0 : index
      %17 = vector.load %arg6[%c0_14, %c0_15] : memref<16x32xbf16, #tpu.memory_space<vmem>>, vector<16x32xbf16>
      tpu.vector_store %arg6[%c0_14, %c0_15], %16 {strides = array<i32>} : memref<16x32xbf16, #tpu.memory_space<vmem>>, vector<16x32xbf16>,
    } else {
    }
    return
  }
  func.func @transform_0(%arg0: i32, %arg1: i32, %arg2: i32) -> (i32, i32) {
    %c0_i32 = arith.constant 0 : i32
    return %arg0, %arg2 : i32, i32
  }
  func.func @transform_1(%arg0: i32, %arg1: i32, %arg2: i32) -> (i32, i32) {
    %c0_i32 = arith.constant 0 : i32
    return %arg2, %arg1 : i32, i32
  }
  func.func @transform_2(%arg0: i32, %arg1: i32, %arg2: i32) -> (i32, i32) {
    %c0_i32 = arith.constant 0 : i32
    %c0_i32_0 = arith.constant 0 : i32
    return %c0_i32, %arg1 : i32, i32
  }
  func.func @transform_3(%arg0: i32, %arg1: i32, %arg2: i32) -> (i32, i32) {
    %c0_i32 = arith.constant 0 : i32
    return %arg0, %arg1 : i32, i32
  }
}

module attributes {stable_mosaic.version = 11 : i64} {
  func.func @_linear_kernel(%arg0: i32, %arg1: i32, %arg2: i32, %arg3: memref<16x32xbf16, #tpu.memory_space<vmem>>, %arg4: memref<32x64xbf16, #tpu.memory_space<vmem>>, %arg5: memref<1x64xf32, #tpu.memory_space<vmem>>, %arg6: memref<16x64xbf16, #tpu.memory_space<vmem>>, %arg7: memref<16x64xf32, #tpu.memory_space<vmem>>) attributes {dimension_semantics = [#tpu.dimension_semantics<parallel>, #tpu.dimension_semantics<parallel>, #tpu.dimension_semantics<arbitrary>], iteration_bounds = array<i64: 1, 1, 1>, scalar_prefetch = 0 : i64, scratch_operands = 1 : i64, tpu.core_type = #tpu.core_type<tc>, window_params = [{transform_indices = @transform_0, window_bounds = array<i64: 16, 32>}, {transform_indices = @transform_1, window_bounds = array<i64: 32, 64>}, {transform_indices = @transform_2, window_bounds = array<i64: 1, 64>}, {transform_indices = @transform_3, window_bounds = array<i64: 16, 64>}]} {
    %c0_i32 = arith.constant 0 : i32
    %0 = arith.cmpi eq, %arg2, %c0_i32 : i32
    %1 = arith.extui %0 : i1 to i32
    %c0_i32_0 = arith.constant 0 : i32
    %2 = arith.cmpi ne, %1, %c0_i32_0 : i32
    scf.if %2 {
      %cst_10 = arith.constant 0.000000e+00 : f32
      %12 = vector.broadcast %cst_10 : f32 to vector<16x64xf32>
      %c0_11 = arith.constant 0 : index
      %c0_12 = arith.constant 0 : index
      %13 = vector.load %arg7[%c0_11, %c0_12] : memref<16x64xf32, #tpu.memory_space<vmem>>, vector<16x64xf32>
      tpu.vector_store %arg7[%c0_11, %c0_12], %12 {strides = array<i32>} : memref<16x64xf32, #tpu.memory_space<vmem>>, vector<16x64xf32>,
    } else {
    }
    %c0 = arith.constant 0 : index
    %c0_1 = arith.constant 0 : index
    %3 = vector.load %arg7[%c0, %c0_1] : memref<16x64xf32, #tpu.memory_space<vmem>>, vector<16x64xf32>
    %c0_2 = arith.constant 0 : index
    %c0_3 = arith.constant 0 : index
    %4 = vector.load %arg3[%c0_2, %c0_3] : memref<16x32xbf16, #tpu.memory_space<vmem>>, vector<16x32xbf16>
    %c0_4 = arith.constant 0 : index
    %c0_5 = arith.constant 0 : index
    %5 = vector.load %arg4[%c0_4, %c0_5] : memref<32x64xbf16, #tpu.memory_space<vmem>>, vector<32x64xbf16>
    %cst = arith.constant dense<0.000000e+00> : vector<16x64xf32>
    %6 = tpu.matmul %4, %5, %cst {dimension_numbers = #tpu.dot_dimension_numbers<[1], [0], [0], [1], [0, 0, 1, 1], [], []>} : vector<16x32xbf16>, vector<32x64xbf16>, vector<16x64xf32> -> vector<16x64xf32>
    %7 = arith.addf %3, %6 : vector<16x64xf32>
    %c0_6 = arith.constant 0 : index
    %c0_7 = arith.constant 0 : index
    %8 = vector.load %arg7[%c0_6, %c0_7] : memref<16x64xf32, #tpu.memory_space<vmem>>, vector<16x64xf32>
    tpu.vector_store %arg7[%c0_6, %c0_7], %7 {strides = array<i32>} : memref<16x64xf32, #tpu.memory_space<vmem>>, vector<16x64xf32>,
    %c0_i32_8 = arith.constant 0 : i32
    %9 = arith.cmpi eq, %arg2, %c0_i32_8 : i32
    %10 = arith.extui %9 : i1 to i32
    %c0_i32_9 = arith.constant 0 : i32
    %11 = arith.cmpi ne, %10, %c0_i32_9 : i32
    scf.if %11 {
      %c0_10 = arith.constant 0 : index
      %c0_11 = arith.constant 0 : index
      %12 = vector.load %arg7[%c0_10, %c0_11] : memref<16x64xf32, #tpu.memory_space<vmem>>, vector<16x64xf32>
      %c0_12 = arith.constant 0 : index
      %c0_13 = arith.constant 0 : index
      %13 = vector.load %arg5[%c0_12, %c0_13] : memref<1x64xf32, #tpu.memory_space<vmem>>, vector<1x64xf32>
      %14 = vector.broadcast %13 : vector<1x64xf32> to vector<16x64xf32>
      %15 = arith.addf %12, %14 : vector<16x64xf32>
      %16 = arith.truncf %15 : vector<16x64xf32> to vector<16x64xbf16>
      %c0_14 = arith.constant 0 : index
      %c0_15 = arith.constant 0 : index
      %17 = vector.load %arg6[%c0_14, %c0_15] : memref<16x64xbf16, #tpu.memory_space<vmem>>, vector<16x64xbf16>
      tpu.vector_store %arg6[%c0_14, %c0_15], %16 {strides = array<i32>} : memref<16x64xbf16, #tpu.memory_space<vmem>>, vector<16x64xbf16>,
    } else {
    }
    return
  }
  func.func @transform_0(%arg0: i32, %arg1: i32, %arg2: i32) -> (i32, i32) {
    %c0_i32 = arith.constant 0 : i32
    return %arg0, %arg2 : i32, i32
  }
  func.func @transform_1(%arg0: i32, %arg1: i32, %arg2: i32) -> (i32, i32) {
    %c0_i32 = arith.constant 0 : i32
    return %arg2, %arg1 : i32, i32
  }
  func.func @transform_2(%arg0: i32, %arg1: i32, %arg2: i32) -> (i32, i32) {
    %c0_i32 = arith.constant 0 : i32
    %c0_i32_0 = arith.constant 0 : i32
    return %c0_i32, %arg1 : i32, i32
  }
  func.func @transform_3(%arg0: i32, %arg1: i32, %arg2: i32) -> (i32, i32) {
    %c0_i32 = arith.constant 0 : i32
    return %arg0, %arg1 : i32, i32
  }
}

module attributes {stable_mosaic.version = 11 : i64} {
  func.func @_mha_kernel(%arg0: i32, %arg1: i32, %arg2: i32, %arg3: i32, %arg4: memref<1x1x8x8xbf16, #tpu.memory_space<vmem>>, %arg5: memref<1x1x8x8xbf16, #tpu.memory_space<vmem>>, %arg6: memref<1x1x8x8xbf16, #tpu.memory_space<vmem>>, %arg7: memref<1x1x8xf32, #tpu.memory_space<vmem>>, %arg8: memref<1x1x8x8xbf16, #tpu.memory_space<vmem>>, %arg9: memref<8x1xf32, #tpu.memory_space<vmem>>, %arg10: memref<8x1xf32, #tpu.memory_space<vmem>>, %arg11: memref<8x8xf32, #tpu.memory_space<vmem>>) attributes {dimension_semantics = [#tpu.dimension_semantics<parallel>, #tpu.dimension_semantics<parallel>, #tpu.dimension_semantics<parallel>, #tpu.dimension_semantics<arbitrary>], iteration_bounds = array<i64: 2, 4, 1, 1>, scalar_prefetch = 0 : i64, scratch_operands = 3 : i64, tpu.core_type = #tpu.core_type<tc>, window_params = [{transform_indices = @transform_0, window_bounds = array<i64: 1, 1, 8, 8>}, {transform_indices = @transform_1, window_bounds = array<i64: 1, 1, 8, 8>}, {transform_indices = @transform_2, window_bounds = array<i64: 1, 1, 8, 8>}, {transform_indices = @transform_3, window_bounds = array<i64: 1, 1, 8>}, {transform_indices = @transform_4, window_bounds = array<i64: 1, 1, 8, 8>}]} {
    %c0_i32 = arith.constant 0 : i32
    %0 = arith.cmpi eq, %arg3, %c0_i32 : i32
    %1 = arith.extui %0 : i1 to i32
    %c0_i32_0 = arith.constant 0 : i32
    %2 = arith.cmpi ne, %1, %c0_i32_0 : i32
    scf.if %2 {
      %cst_34 = arith.constant -1.000000e+30 : f32
      %44 = vector.broadcast %cst_34 : f32 to vector<8x1xf32>
      %c0_35 = arith.constant 0 : index
      %c0_36 = arith.constant 0 : index
      %45 = vector.load %arg9[%c0_35, %c0_36] : memref<8x1xf32, #tpu.memory_space<vmem>>, vector<8x1xf32>
      tpu.vector_store %arg9[%c0_35, %c0_36], %44 {strides = array<i32>} : memref<8x1xf32, #tpu.memory_space<vmem>>, vector<8x1xf32>,
      %cst_37 = arith.constant 0.000000e+00 : f32
      %46 = vector.broadcast %cst_37 : f32 to vector<8x1xf32>
      %c0_38 = arith.constant 0 : index
      %c0_39 = arith.constant 0 : index
      %47 = vector.load %arg10[%c0_38, %c0_39] : memref<8x1xf32, #tpu.memory_space<vmem>>, vector<8x1xf32>
      tpu.vector_store %arg10[%c0_38, %c0_39], %46 {strides = array<i32>} : memref<8x1xf32, #tpu.memory_space<vmem>>, vector<8x1xf32>,
      %cst_40 = arith.constant 0.000000e+00 : f32
      %48 = vector.broadcast %cst_40 : f32 to vector<8x8xf32>
      %c0_41 = arith.constant 0 : index
      %c0_42 = arith.constant 0 : index
      %49 = vector.load %arg11[%c0_41, %c0_42] : memref<8x8xf32, #tpu.memory_space<vmem>>, vector<8x8xf32>
      tpu.vector_store %arg11[%c0_41, %c0_42], %48 {strides = array<i32>} : memref<8x8xf32, #tpu.memory_space<vmem>>, vector<8x8xf32>,
    } else {
    }
    %c0 = arith.constant 0 : index
    %c0_1 = arith.constant 0 : index
    %c0_2 = arith.constant 0 : index
    %c0_3 = arith.constant 0 : index
    %3 = vector.load %arg4[%c0, %c0_1, %c0_2, %c0_3] : memref<1x1x8x8xbf16, #tpu.memory_space<vmem>>, vector<1x1x8x8xbf16>
    %4 = vector.shape_cast %3 : vector<1x1x8x8xbf16> to vector<8x8xbf16>
    %c0_4 = arith.constant 0 : index
    %c0_5 = arith.constant 0 : index
    %c0_6 = arith.constant 0 : index
    %c0_7 = arith.constant 0 : index
    %5 = vector.load %arg5[%c0_4, %c0_5, %c0_6, %c0_7] : memref<1x1x8x8xbf16, #tpu.memory_space<vmem>>, vector<1x1x8x8xbf16>
    %6 = vector.shape_cast %5 : vector<1x1x8x8xbf16> to vector<8x8xbf16>
    %cst = arith.constant dense<0.000000e+00> : vector<8x8xf32>
    %7 = tpu.matmul %4, %6, %cst {dimension_numbers = #tpu.dot_dimension_numbers<[1], [1], [0], [0], [0, 0, 1, 0], [], []>} : vector<8x8xbf16>, vector<8x8xbf16>, vector<8x8xf32> -> vector<8x8xf32>
    %c0_8 = arith.constant 0 : index
    %c0_9 = arith.constant 0 : index
    %c0_10 = arith.constant 0 : index
    %8 = vector.load %arg7[%c0_8, %c0_9, %c0_10] : memref<1x1x8xf32, #tpu.memory_space<vmem>>, vector<1x1x8xf32>
    %9 = vector.shape_cast %8 : vector<1x1x8xf32> to vector<1x8xf32>
    %cst_11 = arith.constant 0.000000e+00 : f32
    %10 = vector.broadcast %cst_11 : f32 to vector<1x8xf32>
    %11 = arith.cmpf ogt, %9, %10 : vector<1x8xf32>
    %cst_12 = arith.constant -1.000000e+30 : f32
    %12 = vector.shape_cast %11 : vector<1x8xi1> to vector<1x8xi1>
    %13 = vector.broadcast %12 : vector<1x8xi1> to vector<8x8xi1>
    %14 = vector.broadcast %cst_12 : f32 to vector<8x8xf32>
    %15 = arith.select %13, %7, %14 : vector<8x8xi1>, vector<8x8xf32>
    %c0_13 = arith.constant 0 : index
    %c0_14 = arith.constant 0 : index
    %16 = vector.load %arg9[%c0_13, %c0_14] : memref<8x1xf32, #tpu.memory_space<vmem>>, vector<8x1xf32>
    %cst_15 = arith.constant dense<0xFF800000> : vector<8xf32>
    %17 = vector.multi_reduction <maximumf>, %15, %cst_15 [1] : vector<8x8xf32> to vector<8xf32>
    %18 = vector.shape_cast %17 : vector<8xf32> to vector<8x1xf32>
    %19 = arith.maximumf %16, %18 : vector<8x1xf32>
    %20 = arith.subf %16, %19 : vector<8x1xf32>
    %21 = math.exp %20 : vector<8x1xf32>
    %22 = vector.broadcast %19 : vector<8x1xf32> to vector<8x8xf32>
    %23 = arith.subf %15, %22 : vector<8x8xf32>
    %24 = math.exp %23 : vector<8x8xf32>
    %c0_16 = arith.constant 0 : index
    %c0_17 = arith.constant 0 : index
    %25 = vector.load %arg10[%c0_16, %c0_17] : memref<8x1xf32, #tpu.memory_space<vmem>>, vector<8x1xf32>
    %26 = arith.mulf %21, %25 : vector<8x1xf32>
    %cst_18 = arith.constant dense<0.000000e+00> : vector<8xf32>
    %27 = vector.multi_reduction <add>, %24, %cst_18 [1] : vector<8x8xf32> to vector<8xf32>
    %28 = vector.shape_cast %27 : vector<8xf32> to vector<8x1xf32>
    %29 = arith.addf %26, %28 : vector<8x1xf32>
    %c0_19 = arith.constant 0 : index
    %c0_20 = arith.constant 0 : index
    %30 = vector.load %arg10[%c0_19, %c0_20] : memref<8x1xf32, #tpu.memory_space<vmem>>, vector<8x1xf32>
    tpu.vector_store %arg10[%c0_19, %c0_20], %29 {strides = array<i32>} : memref<8x1xf32, #tpu.memory_space<vmem>>, vector<8x1xf32>,
    %c0_21 = arith.constant 0 : index
    %c0_22 = arith.constant 0 : index
    %31 = vector.load %arg11[%c0_21, %c0_22] : memref<8x8xf32, #tpu.memory_space<vmem>>, vector<8x8xf32>
    %32 = vector.broadcast %21 : vector<8x1xf32> to vector<8x8xf32>
    %33 = arith.mulf %32, %31 : vector<8x8xf32>
    %34 = arith.truncf %24 : vector<8x8xf32> to vector<8x8xbf16>
    %c0_23 = arith.constant 0 : index
    %c0_24 = arith.constant 0 : index
    %c0_25 = arith.constant 0 : index
    %c0_26 = arith.constant 0 : index
    %35 = vector.load %arg6[%c0_23, %c0_24, %c0_25, %c0_26] : memref<1x1x8x8xbf16, #tpu.memory_space<vmem>>, vector<1x1x8x8xbf16>
    %36 = vector.shape_cast %35 : vector<1x1x8x8xbf16> to vector<8x8xbf16>
    %cst_27 = arith.constant dense<0.000000e+00> : vector<8x8xf32>
    %37 = tpu.matmul %34, %36, %cst_27 {dimension_numbers = #tpu.dot_dimension_numbers<[1], [0], [0], [1], [0, 0, 1, 1], [], []>} : vector<8x8xbf16>, vector<8x8xbf16>, vector<8x8xf32> -> vector<8x8xf32>
    %38 = arith.addf %33, %37 : vector<8x8xf32>
    %c0_28 = arith.constant 0 : index
    %c0_29 = arith.constant 0 : index
    %39 = vector.load %arg11[%c0_28, %c0_29] : memref<8x8xf32, #tpu.memory_space<vmem>>, vector<8x8xf32>
    tpu.vector_store %arg11[%c0_28, %c0_29], %38 {strides = array<i32>} : memref<8x8xf32, #tpu.memory_space<vmem>>, vector<8x8xf32>,
    %c0_30 = arith.constant 0 : index
    %c0_31 = arith.constant 0 : index
    %40 = vector.load %arg9[%c0_30, %c0_31] : memref<8x1xf32, #tpu.memory_space<vmem>>, vector<8x1xf32>
    tpu.vector_store %arg9[%c0_30, %c0_31], %19 {strides = array<i32>} : memref<8x1xf32, #tpu.memory_space<vmem>>, vector<8x1xf32>,
    %c0_i32_32 = arith.constant 0 : i32
    %41 = arith.cmpi eq, %arg3, %c0_i32_32 : i32
    %42 = arith.extui %41 : i1 to i32
    %c0_i32_33 = arith.constant 0 : i32
    %43 = arith.cmpi ne, %42, %c0_i32_33 : i32
    scf.if %43 {
      %c0_34 = arith.constant 0 : index
      %c0_35 = arith.constant 0 : index
      %44 = vector.load %arg10[%c0_34, %c0_35] : memref<8x1xf32, #tpu.memory_space<vmem>>, vector<8x1xf32>
      %45 = tpu.reciprocal %44 {approx = true} : vector<8x1xf32> -> vector<8x1xf32>
      %c0_36 = arith.constant 0 : index
      %c0_37 = arith.constant 0 : index
      %46 = vector.load %arg11[%c0_36, %c0_37] : memref<8x8xf32, #tpu.memory_space<vmem>>, vector<8x8xf32>
      %47 = vector.broadcast %45 : vector<8x1xf32> to vector<8x8xf32>
      %48 = arith.mulf %46, %47 : vector<8x8xf32>
      %49 = arith.truncf %48 : vector<8x8xf32> to vector<8x8xbf16>
      %c0_38 = arith.constant 0 : index
      %c0_39 = arith.constant 0 : index
      %c0_40 = arith.constant 0 : index
      %c0_41 = arith.constant 0 : index
      %50 = vector.load %arg8[%c0_38, %c0_39, %c0_40, %c0_41] : memref<1x1x8x8xbf16, #tpu.memory_space<vmem>>, vector<1x1x8x8xbf16>
      %51 = vector.shape_cast %50 : vector<1x1x8x8xbf16> to vector<8x8xbf16>
      %52 = vector.shape_cast %49 : vector<8x8xbf16> to vector<1x1x8x8xbf16>
      tpu.vector_store %arg8[%c0_38, %c0_39, %c0_40, %c0_41], %52 {strides = array<i32>} : memref<1x1x8x8xbf16, #tpu.memory_space<vmem>>, vector<1x1x8x8xbf16>,
    } else {
    }
    return
  }
  func.func @transform_0(%arg0: i32, %arg1: i32, %arg2: i32, %arg3: i32) -> (i32, i32, i32, i32) {
    %c0_i32 = arith.constant 0 : i32
    %c0_i32_0 = arith.constant 0 : i32
    return %arg0, %arg1, %arg2, %c0_i32 : i32, i32, i32, i32
  }
  func.func @transform_1(%arg0: i32, %arg1: i32, %arg2: i32, %arg3: i32) -> (i32, i32, i32, i32) {
    %c0_i32 = arith.constant 0 : i32
    %c0_i32_0 = arith.constant 0 : i32
    return %arg0, %arg1, %arg3, %c0_i32 : i32, i32, i32, i32
  }
  func.func @transform_2(%arg0: i32, %arg1: i32, %arg2: i32, %arg3: i32) -> (i32, i32, i32, i32) {
    %c0_i32 = arith.constant 0 : i32
    %c0_i32_0 = arith.constant 0 : i32
    return %arg0, %arg1, %arg3, %c0_i32 : i32, i32, i32, i32
  }
  func.func @transform_3(%arg0: i32, %arg1: i32, %arg2: i32, %arg3: i32) -> (i32, i32, i32) {
    %c0_i32 = arith.constant 0 : i32
    %c0_i32_0 = arith.constant 0 : i32
    return %arg0, %c0_i32, %arg3 : i32, i32, i32
  }
  func.func @transform_4(%arg0: i32, %arg1: i32, %arg2: i32, %arg3: i32) -> (i32, i32, i32, i32) {
    %c0_i32 = arith.constant 0 : i32
    %c0_i32_0 = arith.constant 0 : i32
    return %arg0, %arg1, %arg2, %c0_i32 : i32, i32, i32, i32
  }
}

module attributes {stable_mosaic.version = 11 : i64} {
  func.func @_linear_kernel(%arg0: i32, %arg1: i32, %arg2: i32, %arg3: memref<16x32xbf16, #tpu.memory_space<vmem>>, %arg4: memref<32x64xbf16, #tpu.memory_space<vmem>>, %arg5: memref<1x64xf32, #tpu.memory_space<vmem>>, %arg6: memref<16x64xf32, #tpu.memory_space<vmem>>, %arg7: memref<16x64xf32, #tpu.memory_space<vmem>>) attributes {dimension_semantics = [#tpu.dimension_semantics<parallel>, #tpu.dimension_semantics<parallel>, #tpu.dimension_semantics<arbitrary>], iteration_bounds = array<i64: 1, 1, 1>, scalar_prefetch = 0 : i64, scratch_operands = 1 : i64, tpu.core_type = #tpu.core_type<tc>, window_params = [{transform_indices = @transform_0, window_bounds = array<i64: 16, 32>}, {transform_indices = @transform_1, window_bounds = array<i64: 32, 64>}, {transform_indices = @transform_2, window_bounds = array<i64: 1, 64>}, {transform_indices = @transform_3, window_bounds = array<i64: 16, 64>}]} {
    %c0_i32 = arith.constant 0 : i32
    %0 = arith.cmpi eq, %arg2, %c0_i32 : i32
    %1 = arith.extui %0 : i1 to i32
    %c0_i32_0 = arith.constant 0 : i32
    %2 = arith.cmpi ne, %1, %c0_i32_0 : i32
    scf.if %2 {
      %cst_10 = arith.constant 0.000000e+00 : f32
      %12 = vector.broadcast %cst_10 : f32 to vector<16x64xf32>
      %c0_11 = arith.constant 0 : index
      %c0_12 = arith.constant 0 : index
      %13 = vector.load %arg7[%c0_11, %c0_12] : memref<16x64xf32, #tpu.memory_space<vmem>>, vector<16x64xf32>
      tpu.vector_store %arg7[%c0_11, %c0_12], %12 {strides = array<i32>} : memref<16x64xf32, #tpu.memory_space<vmem>>, vector<16x64xf32>,
    } else {
    }
    %c0 = arith.constant 0 : index
    %c0_1 = arith.constant 0 : index
    %3 = vector.load %arg7[%c0, %c0_1] : memref<16x64xf32, #tpu.memory_space<vmem>>, vector<16x64xf32>
    %c0_2 = arith.constant 0 : index
    %c0_3 = arith.constant 0 : index
    %4 = vector.load %arg3[%c0_2, %c0_3] : memref<16x32xbf16, #tpu.memory_space<vmem>>, vector<16x32xbf16>
    %c0_4 = arith.constant 0 : index
    %c0_5 = arith.constant 0 : index
    %5 = vector.load %arg4[%c0_4, %c0_5] : memref<32x64xbf16, #tpu.memory_space<vmem>>, vector<32x64xbf16>
    %cst = arith.constant dense<0.000000e+00> : vector<16x64xf32>
    %6 = tpu.matmul %4, %5, %cst {dimension_numbers = #tpu.dot_dimension_numbers<[1], [0], [0], [1], [0, 0, 1, 1], [], []>} : vector<16x32xbf16>, vector<32x64xbf16>, vector<16x64xf32> -> vector<16x64xf32>
    %7 = arith.addf %3, %6 : vector<16x64xf32>
    %c0_6 = arith.constant 0 : index
    %c0_7 = arith.constant 0 : index
    %8 = vector.load %arg7[%c0_6, %c0_7] : memref<16x64xf32, #tpu.memory_space<vmem>>, vector<16x64xf32>
    tpu.vector_store %arg7[%c0_6, %c0_7], %7 {strides = array<i32>} : memref<16x64xf32, #tpu.memory_space<vmem>>, vector<16x64xf32>,
    %c0_i32_8 = arith.constant 0 : i32
    %9 = arith.cmpi eq, %arg2, %c0_i32_8 : i32
    %10 = arith.extui %9 : i1 to i32
    %c0_i32_9 = arith.constant 0 : i32
    %11 = arith.cmpi ne, %10, %c0_i32_9 : i32
    scf.if %11 {
      %c0_10 = arith.constant 0 : index
      %c0_11 = arith.constant 0 : index
      %12 = vector.load %arg7[%c0_10, %c0_11] : memref<16x64xf32, #tpu.memory_space<vmem>>, vector<16x64xf32>
      %c0_12 = arith.constant 0 : index
      %c0_13 = arith.constant 0 : index
      %13 = vector.load %arg5[%c0_12, %c0_13] : memref<1x64xf32, #tpu.memory_space<vmem>>, vector<1x64xf32>
      %14 = vector.broadcast %13 : vector<1x64xf32> to vector<16x64xf32>
      %15 = arith.addf %12, %14 : vector<16x64xf32>
      %c0_14 = arith.constant 0 : index
      %c0_15 = arith.constant 0 : index
      %16 = vector.load %arg6[%c0_14, %c0_15] : memref<16x64xf32, #tpu.memory_space<vmem>>, vector<16x64xf32>
      tpu.vector_store %arg6[%c0_14, %c0_15], %15 {strides = array<i32>} : memref<16x64xf32, #tpu.memory_space<vmem>>, vector<16x64xf32>,
    } else {
    }
    return
  }
  func.func @transform_0(%arg0: i32, %arg1: i32, %arg2: i32) -> (i32, i32) {
    %c0_i32 = arith.constant 0 : i32
    return %arg0, %arg2 : i32, i32
  }
  func.func @transform_1(%arg0: i32, %arg1: i32, %arg2: i32) -> (i32, i32) {
    %c0_i32 = arith.constant 0 : i32
    return %arg2, %arg1 : i32, i32
  }
  func.func @transform_2(%arg0: i32, %arg1: i32, %arg2: i32) -> (i32, i32) {
    %c0_i32 = arith.constant 0 : i32
    %c0_i32_0 = arith.constant 0 : i32
    return %c0_i32, %arg1 : i32, i32
  }
  func.func @transform_3(%arg0: i32, %arg1: i32, %arg2: i32) -> (i32, i32) {
    %c0_i32 = arith.constant 0 : i32
    return %arg0, %arg1 : i32, i32
  }
}

</mosaic_0001>

<llo_original>
// kernel: transformer_forward.53
$region0: #{transformer_forward.53}
  #allocation0 [shape = 'u32[]', space=smem, size = 0x4, offset = 0x4, fixed_abs, tag = 'smem constant byte address 0x4 - core index']
  #allocation1 [shape = 'u32[144,128]{1,0:T(1,128)}', space=vmem, size = 0x12000, scoped, tag = 'internal scratch']
  #allocation2 [shape = 'f32[16,96]{1,0:T(8,128)}', space=vmem, size = 0x2000, scoped, tag = 'scratch operand']
  %s0 = inlined_call_operand.vmem [shape: bf16[16,32], index: 0, kind: input, shape index: {}]
  %s1 = inlined_call_operand.vmem [shape: bf16[32,96], index: 1, kind: input, shape index: {}]
  %s2 = inlined_call_operand.vmem [shape: f32[1,96], index: 2, kind: input, shape index: {}]
  %s3 = inlined_call_operand.vmem [shape: bf16[16,96], index: 3, kind: output, shape index: {}]
  %s4 = sld [smem:[#allocation0]]
  $region30: #{transformer_forward.53} parent=0
    _
  %s6 = ssub.s32 1, %s4
  %s7 = scalar_select 0, %s6, %s4
  // Predicated region
  $region2: #{transformer_forward.53} parent=0 // pred_check
    _
  $region3: #{transformer_forward.53} parent=0 // pred_check_branch
    %9 = sbr.rel (0) target = $region5
  $region4: #{transformer_forward.53} parent=0 // pred_region
    _
  $region5: #{transformer_forward.53} parent=0 // pred_fallthru
    _
  // Predicated region
  $region6: #{transformer_forward.53} parent=0 // pred_check
    _
  $region7: #{transformer_forward.53} parent=0 // pred_check_branch
    %11 = sbr.rel (0) target = $region9
  $region8: #{transformer_forward.53} parent=0 // pred_region
    _
  $region9: #{transformer_forward.53} parent=0 // pred_fallthru
    _
  // Predicated region
  $region10: #{transformer_forward.53} parent=0 // pred_check
    _
  $region11: #{transformer_forward.53} parent=0 // pred_check_branch
    %13 = sbr.rel (0) target = $region13
  $region12: #{transformer_forward.53} parent=0 // pred_region
    _
  $region13: #{transformer_forward.53} parent=0 // pred_fallthru
    _
  %p15 = scmp.eq.s32.totalorder 0, 0
  // Predicated region
  $region14: #{transformer_forward.53} parent=0 // pred_check
    %p16 = pneg %p15
  $region15: #{transformer_forward.53} parent=0 // pred_check_branch
    %18 = sbr.rel (%p16) target = $region17
  $region16: #{transformer_forward.53} parent=0 // pred_region
    %vm19 = vcmask 785408
    %20 = vst.msk [vmem:[#allocation2] sm:$0xff] %vm19, 0.0
    %21 = vst.msk [vmem:[#allocation2 + $0x8] sm:$0xff] %vm19, 0.0
  $region17: #{transformer_forward.53} parent=0 // pred_fallthru
    _
  %v22 = vld [vmem:[#allocation2] sm:$0xff]
  %v23 = vld [vmem:[#allocation2 + $0x8] sm:$0xff]
  %v24 = vld [vmem:[%s0] sm:$0xf]
  %v25 = vld [vmem:[%s0 + $0x4] sm:$0xf]
  %v26 = vld [vmem:[%s1] sm:$0xf]
  %v27 = vld [vmem:[%s1 + $0x4] sm:$0xf]
  %v28 = vld [vmem:[%s1 + $0x8] sm:$0xf]
  %v29 = vld [vmem:[%s1 + $0xc] sm:$0xf]
  %v32 = vunpack.c.l.b16 %v24
  %v33 = vunpack.c.l.b16 %v25
  %v34 = vpack.c.b16 %v33, %v32
  %v39 = vunpack.c.l.b16 %v26
  %v40 = vunpack.c.l.b16 %v27
  %v41 = vunpack.c.l.b16 %v28
  %v42 = vunpack.c.l.b16 %v29
  %v43 = vpack.c.b16 %v40, %v39
  %v44 = vpack.c.b16 %v42, %v41
  %vm47 = vcmask 261120
  %v49 = vsel %vm47, %v34, 0
  %51 = vmatprep.subr.bf16.mxu0 0
  %52 = vmatpush1.bf16.msra.mxu0 0
  %53 = vmatprep.subr.bf16.mxu0 0
  %54 = vmatpush1.bf16.msra.mxu0 0
  %55 = vmatprep.subr.bf16.mxu0 0
  %56 = vmatpush1.bf16.msra.mxu0 0
  %57 = vmatprep.subr.bf16.mxu0 0
  %58 = vmatpush1.bf16.msra.mxu0 0
  %59 = vmatprep.subr.bf16.mxu0 0
  %60 = vmatpush1.bf16.msra.mxu0 0
  %61 = vmatprep.subr.bf16.mxu0 0
  %62 = vmatpush1.bf16.msra.mxu0 0
  %63 = vmatprep.subr.bf16.mxu0 0
  %64 = vmatpush1.bf16.msra.mxu0 %v44
  %65 = vmatprep.subr.bf16.mxu0 0
  %66 = vmatpush1.bf16.msra.mxu0 %v43
  %67 = vmatprep.subr.bf16.mxu0 0
  %68 = vmatpush2.bf16.msra.mxu0 0
  %69 = vmatprep.subr.bf16.mxu0 0
  %70 = vmatpush2.bf16.msra.mxu0 0
  %71 = vmatprep.subr.bf16.mxu0 0
  %72 = vmatpush2.bf16.msra.mxu0 0
  %73 = vmatprep.subr.bf16.mxu0 0
  %74 = vmatpush2.bf16.msra.mxu0 0
  %75 = vmatprep.subr.bf16.mxu0 0
  %76 = vmatpush2.bf16.msra.mxu0 0
  %77 = vmatprep.subr.bf16.mxu0 0
  %78 = vmatpush2.bf16.msra.mxu0 0
  %79 = vmatprep.subr.bf16.mxu0 0
  %80 = vmatpush2.bf16.msra.mxu0 0
  %81 = vmatprep.subr.bf16.mxu0 0
  %82 = vmatpush2.bf16.msra.mxu0 0
  %83 = vmatprep.mubr.bf16.mxu0 0
  %84 = vmatmul.mubr.bf16.gmra.mxu0 %v49
  %v85 = vpop.f32.mrf.mxu0
  %v86 = vadd.f32 0.0, %v85
  %v87 = vpop.f32.mrf.mxu0
  %v88 = vpop.f32.mrf.mxu0
  %v89 = vadd.f32 0.0, %v88
  %v90 = vpop.f32.mrf.mxu0
  %91 = vdwg.mxu0
  %v92 = vadd.f32 %v22, %v86
  %v93 = vadd.f32 %v23, %v89
  %vm94 = vcmask 785408
  %95 = vst.msk [vmem:[#allocation2] sm:$0xff] %vm94, %v92
  %96 = vst.msk [vmem:[#allocation2 + $0x8] sm:$0xff] %vm94, %v93
  // Predicated region
  $region18: #{transformer_forward.53} parent=0 // pred_check
    %p97 = pneg %p15
  $region19: #{transformer_forward.53} parent=0 // pred_check_branch
    %99 = sbr.rel (%p97) target = $region21
  $region20: #{transformer_forward.53} parent=0 // pred_region
    %v100 = vld [vmem:[#allocation2] sm:$0xff]
    %v101 = vld [vmem:[#allocation2 + $0x8] sm:$0xff]
    %v102 = vld [vmem:[%s2] sm:$0x1]
    %v104 = vlaneseq
    %v105 = vshrl.u32 %v104, 7
    %v106 = vsub.s32 0, %v105
    %v107 = vrot.slane %v102, %v106
    %v109 = vadd.f32 %v100, %v107
    %v110 = vadd.f32 %v101, %v107
    %v111 = vpack.c.bf16 %v110, %v109
    %v113 = vunpack.c.l.b16 %v111
    %v114 = vunpack.c.h.b16 %v111
    %v115 = vpack.c.b16 %v113, %v113
    %v116 = vpack.c.b16 %v114, %v114
    %vm119 = vcmask 781312
    %120 = vst.msk [vmem:[%s3] sm:$0xf] %vm119, %v115
    %121 = vst.msk [vmem:[%s3 + $0x4] sm:$0xf] %vm119, %v116
  $region21: #{transformer_forward.53} parent=0 // pred_fallthru
    _
  // Predicated region
  $region22: #{transformer_forward.53} parent=0 // pred_check
    _
  $region23: #{transformer_forward.53} parent=0 // pred_check_branch
    %123 = sbr.rel (0) target = $region25
  $region24: #{transformer_forward.53} parent=0 // pred_region
    _
  $region25: #{transformer_forward.53} parent=0 // pred_fallthru
    _
  // Predicated region
  $region26: #{transformer_forward.53} parent=0 // pred_check
    _
  $region27: #{transformer_forward.53} parent=0 // pred_check_branch
    %125 = sbr.rel (0) target = $region29
  $region28: #{transformer_forward.53} parent=0 // pred_region
    _
  $region29: #{transformer_forward.53} parent=0 // pred_fallthru
    _

// kernel: transformer_forward.56
$region0: #{transformer_forward.56}
  #allocation0 [shape = 'u32[]', space=smem, size = 0x4, offset = 0x4, fixed_abs, tag = 'smem constant byte address 0x4 - core index']
  #allocation1 [shape = 'u32[144,128]{1,0:T(1,128)}', space=vmem, size = 0x12000, scoped, tag = 'internal scratch']
  %s0 = inlined_call_operand.vmem [shape: bf16[16,32], index: 0, kind: input, shape index: {}]
  %s1 = inlined_call_operand.vmem [shape: bf16[16,32], index: 1, kind: input, shape index: {}]
  %s2 = inlined_call_operand.vmem [shape: f32[1,32], index: 2, kind: input, shape index: {}]
  %s3 = inlined_call_operand.vmem [shape: f32[1,32], index: 3, kind: input, shape index: {}]
  %s4 = inlined_call_operand.vmem [shape: bf16[16,32], index: 4, kind: output, shape index: {}]
  %s5 = sld [smem:[#allocation0]]
  $region26: #{transformer_forward.56} parent=0
    _
  %s7 = ssub.s32 1, %s5
  %s8 = scalar_select 0, %s7, %s5
  // Predicated region
  $region2: #{transformer_forward.56} parent=0 // pred_check
    _
  $region3: #{transformer_forward.56} parent=0 // pred_check_branch
    %10 = sbr.rel (0) target = $region5
  $region4: #{transformer_forward.56} parent=0 // pred_region
    _
  $region5: #{transformer_forward.56} parent=0 // pred_fallthru
    _
  // Predicated region
  $region6: #{transformer_forward.56} parent=0 // pred_check
    _
  $region7: #{transformer_forward.56} parent=0 // pred_check_branch
    %12 = sbr.rel (0) target = $region9
  $region8: #{transformer_forward.56} parent=0 // pred_region
    _
  $region9: #{transformer_forward.56} parent=0 // pred_fallthru
    _
  // Predicated region
  $region10: #{transformer_forward.56} parent=0 // pred_check
    _
  $region11: #{transformer_forward.56} parent=0 // pred_check_branch
    %14 = sbr.rel (0) target = $region13
  $region12: #{transformer_forward.56} parent=0 // pred_region
    _
  $region13: #{transformer_forward.56} parent=0 // pred_fallthru
    _
  // Predicated region
  $region14: #{transformer_forward.56} parent=0 // pred_check
    _
  $region15: #{transformer_forward.56} parent=0 // pred_check_branch
    %16 = sbr.rel (0) target = $region17
  $region16: #{transformer_forward.56} parent=0 // pred_region
    _
  $region17: #{transformer_forward.56} parent=0 // pred_fallthru
    _
  %v17 = vld [vmem:[%s0] sm:$0xf]
  %v18 = vld [vmem:[%s0 + $0x4] sm:$0xf]
  %v19 = vunpack.c.l.bf16 %v17
  %v20 = vunpack.c.l.bf16 %v18
  %v21 = vld [vmem:[%s1] sm:$0xf]
  %v22 = vld [vmem:[%s1 + $0x4] sm:$0xf]
  %v23 = vunpack.c.l.bf16 %v21
  %v24 = vunpack.c.l.bf16 %v22
  %v25 = vadd.f32 %v19, %v23
  %v26 = vadd.f32 %v20, %v24
  %vm27 = vcmask 261120
  %v28 = vsel %vm27, %v25, 0.0
  %29 = vadd.xlane.f32.xlu0 %v28
  %v30 = vpop.xlane.xlu0 %29
  %v31 = vsel %vm27, %v26, 0.0
  %32 = vadd.xlane.f32.xlu0 %v31
  %v33 = vpop.xlane.xlu0 %32
  %v34 = vrcp.pop 32.0
  %v35 = vmul.f32 %v30, %v34
  %v36 = vmul.f32 %v33, %v34
  %v37 = vsub.f32 %v25, %v35
  %v38 = vsub.f32 %v26, %v36
  %v39 = vmul.f32 %v37, %v37
  %v40 = vmul.f32 %v38, %v38
  %v41 = vsel %vm27, %v39, 0.0
  %42 = vadd.xlane.f32.xlu0 %v41
  %v43 = vpop.xlane.xlu0 %42
  %v44 = vsel %vm27, %v40, 0.0
  %45 = vadd.xlane.f32.xlu0 %v44
  %v46 = vpop.xlane.xlu0 %45
  %v47 = vmul.f32 %v43, %v34
  %v48 = vmul.f32 %v46, %v34
  %v49 = vadd.f32 %v47, 1e-05
  %v50 = vadd.f32 %v48, 1e-05
  %v51 = vrsqrt.pop %v49
  %v52 = vrsqrt.pop %v50
  %v53 = vmul.f32 %v37, %v51
  %v54 = vmul.f32 %v38, %v52
  %v55 = vld [vmem:[%s2] sm:$0x1]
  %v57 = vlaneseq
  %v58 = vshrl.u32 %v57, 7
  %v59 = vsub.s32 0, %v58
  %v60 = vrot.slane %v55, %v59
  %v62 = vmul.f32 %v53, %v60
  %v63 = vmul.f32 %v54, %v60
  %v64 = vld [vmem:[%s3] sm:$0x1]
  %v66 = vlaneseq
  %v67 = vshrl.u32 %v66, 7
  %v68 = vsub.s32 0, %v67
  %v69 = vrot.slane %v64, %v68
  %v71 = vadd.f32 %v62, %v69
  %v72 = vadd.f32 %v63, %v69
  %v73 = vpack.c.bf16 %v72, %v71
  %v75 = vunpack.c.l.b16 %v73
  %v76 = vunpack.c.h.b16 %v73
  %v77 = vpack.c.b16 %v75, %v75
  %v78 = vpack.c.b16 %v76, %v76
  %vm81 = vcmask 257024
  %82 = vst.msk [vmem:[%s4] sm:$0xf] %vm81, %v77
  %83 = vst.msk [vmem:[%s4 + $0x4] sm:$0xf] %vm81, %v78
  // Predicated region
  $region18: #{transformer_forward.56} parent=0 // pred_check
    _
  $region19: #{transformer_forward.56} parent=0 // pred_check_branch
    %85 = sbr.rel (0) target = $region21
  $region20: #{transformer_forward.56} parent=0 // pred_region
    _
  $region21: #{transformer_forward.56} parent=0 // pred_fallthru
    _
  // Predicated region
  $region22: #{transformer_forward.56} parent=0 // pred_check
    _
  $region23: #{transformer_forward.56} parent=0 // pred_check_branch
    %87 = sbr.rel (0) target = $region25
  $region24: #{transformer_forward.56} parent=0 // pred_region
    _
  $region25: #{transformer_forward.56} parent=0 // pred_fallthru
    _

// kernel: transformer_forward.55
$region0: #{transformer_forward.55}
  #allocation0 [shape = 'u32[]', space=smem, size = 0x4, offset = 0x4, fixed_abs, tag = 'smem constant byte address 0x4 - core index']
  #allocation1 [shape = 'u32[144,128]{1,0:T(1,128)}', space=vmem, size = 0x12000, scoped, tag = 'internal scratch']
  #allocation2 [shape = 'f32[16,32]{1,0:T(8,128)}', space=vmem, size = 0x2000, scoped, tag = 'scratch operand']
  %s0 = inlined_call_operand.vmem [shape: bf16[16,32], index: 0, kind: input, shape index: {}]
  %s1 = inlined_call_operand.vmem [shape: bf16[32,32], index: 1, kind: input, shape index: {}]
  %s2 = inlined_call_operand.vmem [shape: f32[1,32], index: 2, kind: input, shape index: {}]
  %s3 = inlined_call_operand.vmem [shape: bf16[16,32], index: 3, kind: output, shape index: {}]
  %s4 = sld [smem:[#allocation0]]
  $region30: #{transformer_forward.55} parent=0
    _
  %s6 = ssub.s32 1, %s4
  %s7 = scalar_select 0, %s6, %s4
  // Predicated region
  $region2: #{transformer_forward.55} parent=0 // pred_check
    _
  $region3: #{transformer_forward.55} parent=0 // pred_check_branch
    %9 = sbr.rel (0) target = $region5
  $region4: #{transformer_forward.55} parent=0 // pred_region
    _
  $region5: #{transformer_forward.55} parent=0 // pred_fallthru
    _
  // Predicated region
  $region6: #{transformer_forward.55} parent=0 // pred_check
    _
  $region7: #{transformer_forward.55} parent=0 // pred_check_branch
    %11 = sbr.rel (0) target = $region9
  $region8: #{transformer_forward.55} parent=0 // pred_region
    _
  $region9: #{transformer_forward.55} parent=0 // pred_fallthru
    _
  // Predicated region
  $region10: #{transformer_forward.55} parent=0 // pred_check
    _
  $region11: #{transformer_forward.55} parent=0 // pred_check_branch
    %13 = sbr.rel (0) target = $region13
  $region12: #{transformer_forward.55} parent=0 // pred_region
    _
  $region13: #{transformer_forward.55} parent=0 // pred_fallthru
    _
  %p15 = scmp.eq.s32.totalorder 0, 0
  // Predicated region
  $region14: #{transformer_forward.55} parent=0 // pred_check
    %p16 = pneg %p15
  $region15: #{transformer_forward.55} parent=0 // pred_check_branch
    %18 = sbr.rel (%p16) target = $region17
  $region16: #{transformer_forward.55} parent=0 // pred_region
    %vm19 = vcmask 261120
    %20 = vst.msk [vmem:[#allocation2] sm:$0xff] %vm19, 0.0
    %21 = vst.msk [vmem:[#allocation2 + $0x8] sm:$0xff] %vm19, 0.0
  $region17: #{transformer_forward.55} parent=0 // pred_fallthru
    _
  %v22 = vld [vmem:[#allocation2] sm:$0xff]
  %v23 = vld [vmem:[#allocation2 + $0x8] sm:$0xff]
  %v24 = vld [vmem:[%s0] sm:$0xf]
  %v25 = vld [vmem:[%s0 + $0x4] sm:$0xf]
  %v26 = vld [vmem:[%s1] sm:$0xf]
  %v27 = vld [vmem:[%s1 + $0x4] sm:$0xf]
  %v28 = vld [vmem:[%s1 + $0x8] sm:$0xf]
  %v29 = vld [vmem:[%s1 + $0xc] sm:$0xf]
  %v32 = vunpack.c.l.b16 %v24
  %v33 = vunpack.c.l.b16 %v25
  %v34 = vpack.c.b16 %v33, %v32
  %v39 = vunpack.c.l.b16 %v26
  %v40 = vunpack.c.l.b16 %v27
  %v41 = vunpack.c.l.b16 %v28
  %v42 = vunpack.c.l.b16 %v29
  %v43 = vpack.c.b16 %v40, %v39
  %v44 = vpack.c.b16 %v42, %v41
  %vm47 = vcmask 261120
  %v49 = vsel %vm47, %v34, 0
  %51 = vmatprep.subr.bf16.mxu0 0
  %52 = vmatpush1.bf16.msra.mxu0 0
  %53 = vmatprep.subr.bf16.mxu0 0
  %54 = vmatpush1.bf16.msra.mxu0 0
  %55 = vmatprep.subr.bf16.mxu0 0
  %56 = vmatpush1.bf16.msra.mxu0 0
  %57 = vmatprep.subr.bf16.mxu0 0
  %58 = vmatpush1.bf16.msra.mxu0 0
  %59 = vmatprep.subr.bf16.mxu0 0
  %60 = vmatpush1.bf16.msra.mxu0 0
  %61 = vmatprep.subr.bf16.mxu0 0
  %62 = vmatpush1.bf16.msra.mxu0 0
  %63 = vmatprep.subr.bf16.mxu0 0
  %64 = vmatpush1.bf16.msra.mxu0 %v44
  %65 = vmatprep.subr.bf16.mxu0 0
  %66 = vmatpush1.bf16.msra.mxu0 %v43
  %67 = vmatprep.subr.bf16.mxu0 0
  %68 = vmatpush2.bf16.msra.mxu0 0
  %69 = vmatprep.subr.bf16.mxu0 0
  %70 = vmatpush2.bf16.msra.mxu0 0
  %71 = vmatprep.subr.bf16.mxu0 0
  %72 = vmatpush2.bf16.msra.mxu0 0
  %73 = vmatprep.subr.bf16.mxu0 0
  %74 = vmatpush2.bf16.msra.mxu0 0
  %75 = vmatprep.subr.bf16.mxu0 0
  %76 = vmatpush2.bf16.msra.mxu0 0
  %77 = vmatprep.subr.bf16.mxu0 0
  %78 = vmatpush2.bf16.msra.mxu0 0
  %79 = vmatprep.subr.bf16.mxu0 0
  %80 = vmatpush2.bf16.msra.mxu0 0
  %81 = vmatprep.subr.bf16.mxu0 0
  %82 = vmatpush2.bf16.msra.mxu0 0
  %83 = vmatprep.mubr.bf16.mxu0 0
  %84 = vmatmul.mubr.bf16.gmra.mxu0 %v49
  %v85 = vpop.f32.mrf.mxu0
  %v86 = vadd.f32 0.0, %v85
  %v87 = vpop.f32.mrf.mxu0
  %v88 = vpop.f32.mrf.mxu0
  %v89 = vadd.f32 0.0, %v88
  %v90 = vpop.f32.mrf.mxu0
  %91 = vdwg.mxu0
  %v92 = vadd.f32 %v22, %v86
  %v93 = vadd.f32 %v23, %v89
  %94 = vst.msk [vmem:[#allocation2] sm:$0xff] %vm47, %v92
  %95 = vst.msk [vmem:[#allocation2 + $0x8] sm:$0xff] %vm47, %v93
  // Predicated region
  $region18: #{transformer_forward.55} parent=0 // pred_check
    %p96 = pneg %p15
  $region19: #{transformer_forward.55} parent=0 // pred_check_branch
    %98 = sbr.rel (%p96) target = $region21
  $region20: #{transformer_forward.55} parent=0 // pred_region
    %v99 = vld [vmem:[#allocation2] sm:$0xff]
    %v100 = vld [vmem:[#allocation2 + $0x8] sm:$0xff]
    %v101 = vld [vmem:[%s2] sm:$0x1]
    %v103 = vlaneseq
    %v104 = vshrl.u32 %v103, 7
    %v105 = vsub.s32 0, %v104
    %v106 = vrot.slane %v101, %v105
    %v108 = vadd.f32 %v99, %v106
    %v109 = vadd.f32 %v100, %v106
    %v110 = vpack.c.bf16 %v109, %v108
    %v112 = vunpack.c.l.b16 %v110
    %v113 = vunpack.c.h.b16 %v110
    %v114 = vpack.c.b16 %v112, %v112
    %v115 = vpack.c.b16 %v113, %v113
    %vm118 = vcmask 257024
    %119 = vst.msk [vmem:[%s3] sm:$0xf] %vm118, %v114
    %120 = vst.msk [vmem:[%s3 + $0x4] sm:$0xf] %vm118, %v115
  $region21: #{transformer_forward.55} parent=0 // pred_fallthru
    _
  // Predicated region
  $region22: #{transformer_forward.55} parent=0 // pred_check
    _
  $region23: #{transformer_forward.55} parent=0 // pred_check_branch
    %122 = sbr.rel (0) target = $region25
  $region24: #{transformer_forward.55} parent=0 // pred_region
    _
  $region25: #{transformer_forward.55} parent=0 // pred_fallthru
    _
  // Predicated region
  $region26: #{transformer_forward.55} parent=0 // pred_check
    _
  $region27: #{transformer_forward.55} parent=0 // pred_check_branch
    %124 = sbr.rel (0) target = $region29
  $region28: #{transformer_forward.55} parent=0 // pred_region
    _
  $region29: #{transformer_forward.55} parent=0 // pred_fallthru
    _

// kernel: transformer_forward.54
$region0: #{transformer_forward.54}
  #allocation0 [shape = 'u32[]', space=smem, size = 0x4, offset = 0x4, fixed_abs, tag = 'smem constant byte address 0x4 - core index']
  #allocation1 [shape = 'u32[144,128]{1,0:T(1,128)}', space=vmem, size = 0x12000, scoped, tag = 'internal scratch']
  #allocation2 [shape = 'f32[8,1]{1,0:T(8,128)}', space=vmem, size = 0x1000, scoped, tag = 'scratch operand']
  #allocation3 [shape = 'f32[8,1]{1,0:T(8,128)}', space=vmem, size = 0x1000, scoped, tag = 'scratch operand']
  #allocation4 [shape = 'f32[8,8]{1,0:T(8,128)}', space=vmem, size = 0x1000, scoped, tag = 'scratch operand']
  %s0 = inlined_call_operand.vmem [shape: bf16[2,4,8,8], index: 0, kind: input, shape index: {}]
  %s1 = inlined_call_operand.vmem [shape: bf16[2,4,8,8], index: 1, kind: input, shape index: {}]
  %s2 = inlined_call_operand.vmem [shape: bf16[2,4,8,8], index: 2, kind: input, shape index: {}]
  %s3 = inlined_call_operand.vmem [shape: f32[2,1,8], index: 3, kind: input, shape index: {}]
  %s4 = inlined_call_operand.vmem [shape: bf16[2,4,8,8], index: 4, kind: output, shape index: {}]
  %s5 = sld [smem:[#allocation0]]
  $region57: #{transformer_forward.54} parent=0
    _
  %s7 = ssub.s32 1, %s5
  %s8 = scalar_select 0, %s7, %s5
  loop: start=0, step=1, limit=10
  $region2: #{transformer_forward.54} parent=0 // loop_pre_header
    _
  $region3: #{transformer_forward.54} parent=0 // loop_header
    %s10 = sphi 0, %s14
    %p11 = scmp.ge.s32.totalorder %s10, 10
    %s17 = sphi 0, %s43
    %s18 = sphi 0, %s39
    %s19 = sphi 0, %s35
    %s20 = sphi 0, %s31
    %s21 = sphi 0, %s17
    %s22 = sphi 0, %s18
    %s23 = sphi 0, %s19
    %s24 = sphi 0, %s20
    %s25 = sphi 0, %s21
    %s26 = sphi 0, %s22
    %s27 = sphi 0, %s23
    %s28 = sphi 0, %s24
    %s50 = sphi 0, %s52
    %s53 = sphi 0, %s50
    %s54 = sphi 0, %s53
    %s70 = sphi 0, %s54
    %s80 = sphi 0, %s82
    %s83 = sphi 0, %s80
    %s84 = sphi 0, %s83
    %s100 = sphi 0, %s84
    %s110 = sphi 0, %s112
    %s113 = sphi 0, %s110
    %s114 = sphi 0, %s113
    %s130 = sphi 0, %s114
    %s138 = sphi 0, %s140
    %s141 = sphi 0, %s138
    %s142 = sphi 0, %s141
    %s158 = sphi 0, %s142
    %s168 = sphi 0, %s170
    %s171 = sphi 0, %s168
    %s172 = sphi 0, %s171
    %s188 = sphi 0, %s172
  $region4: #{transformer_forward.54} parent=0 // loop_header_branch
    %13 = sbr.rel (%p11) target = $region8
  $region5: #{transformer_forward.54} parent=0 // loop_body
    %s15 = ssub.s32 %s10, 1
    %s16 = ssub.s32 %s10, 2
    %s29 = sadd.s32 1, %s20
    %p30 = scmp.ge.s32.totalorder %s29, 1
    %s31 = scalar_select %p30, 0, %s29
    %s32 = sadd.s32 1, %s19
    %s33 = scalar_select %p30, %s32, %s19
    %p34 = scmp.ge.s32.totalorder %s33, 1
    %s35 = scalar_select %p34, 0, %s33
    %s36 = sadd.s32 1, %s18
    %s37 = scalar_select %p34, %s36, %s18
    %p38 = scmp.ge.s32.totalorder %s37, 4
    %s39 = scalar_select %p38, 0, %s37
    %s40 = sadd.s32 1, %s17
    %s41 = scalar_select %p38, %s40, %s17
    %p42 = scmp.ge.s32.totalorder %s41, 2
    %s43 = scalar_select %p42, 0, %s41
    %s44 = ssub.s32 %s17, %s43
    %s45 = ssub.s32 %s18, %s39
    %s46 = sor.u32 %s44, %s45
    %s47 = ssub.s32 %s19, %s35
    %s48 = sor.u32 %s46, %s47
    %p49 = scmp.eq.s32.totalorder %s48, 0
    %s51 = sadd.s32 %s50, 1
    %s52 = scalar_select %p49, %s50, %s51
    %p55 = pneg %p49
    %p56 = scmp.eq.s32.totalorder %s10, 7
    %p57 = por %p55, %p56
    %p58 = scmp.ne.s32.totalorder %s50, %s53
    %p59 = scmp.eq.s32.totalorder %s10, 0
    %p60 = por %p58, %p59
    %p61 = scmp.ne.s32.totalorder %s50, %s53
    %p62 = scmp.eq.s32.totalorder %s15, 7
    %p63 = por %p61, %p62
    %p64 = scmp.ne.s32.totalorder %s53, %s54
    %p65 = scmp.eq.s32.totalorder %s15, 0
    %p66 = por %p64, %p65
    %p67 = scmp.ne.s32.totalorder %s53, %s54
    %p68 = scmp.eq.s32.totalorder %s16, 7
    %p69 = por %p67, %p68
    %p71 = scmp.ne.s32.totalorder %s54, %s70
    %p72 = scmp.eq.s32.totalorder %s16, 0
    %p73 = por %p71, %p72
    %s74 = ssub.s32 %s17, %s43
    %s75 = ssub.s32 %s18, %s39
    %s76 = sor.u32 %s74, %s75
    %s77 = ssub.s32 %s20, %s31
    %s78 = sor.u32 %s76, %s77
    %p79 = scmp.eq.s32.totalorder %s78, 0
    %s81 = sadd.s32 %s80, 1
    %s82 = scalar_select %p79, %s80, %s81
    %p85 = pneg %p79
    %p86 = scmp.eq.s32.totalorder %s10, 7
    %p87 = por %p85, %p86
    %p88 = scmp.ne.s32.totalorder %s80, %s83
    %p89 = scmp.eq.s32.totalorder %s10, 0
    %p90 = por %p88, %p89
    %p91 = scmp.ne.s32.totalorder %s80, %s83
    %p92 = scmp.eq.s32.totalorder %s15, 7
    %p93 = por %p91, %p92
    %p94 = scmp.ne.s32.totalorder %s83, %s84
    %p95 = scmp.eq.s32.totalorder %s15, 0
    %p96 = por %p94, %p95
    %p97 = scmp.ne.s32.totalorder %s83, %s84
    %p98 = scmp.eq.s32.totalorder %s16, 7
    %p99 = por %p97, %p98
    %p101 = scmp.ne.s32.totalorder %s84, %s100
    %p102 = scmp.eq.s32.totalorder %s16, 0
    %p103 = por %p101, %p102
    %s104 = ssub.s32 %s17, %s43
    %s105 = ssub.s32 %s18, %s39
    %s106 = sor.u32 %s104, %s105
    %s107 = ssub.s32 %s20, %s31
    %s108 = sor.u32 %s106, %s107
    %p109 = scmp.eq.s32.totalorder %s108, 0
    %s111 = sadd.s32 %s110, 1
    %s112 = scalar_select %p109, %s110, %s111
    %p115 = pneg %p109
    %p116 = scmp.eq.s32.totalorder %s10, 7
    %p117 = por %p115, %p116
    %p118 = scmp.ne.s32.totalorder %s110, %s113
    %p119 = scmp.eq.s32.totalorder %s10, 0
    %p120 = por %p118, %p119
    %p121 = scmp.ne.s32.totalorder %s110, %s113
    %p122 = scmp.eq.s32.totalorder %s15, 7
    %p123 = por %p121, %p122
    %p124 = scmp.ne.s32.totalorder %s113, %s114
    %p125 = scmp.eq.s32.totalorder %s15, 0
    %p126 = por %p124, %p125
    %p127 = scmp.ne.s32.totalorder %s113, %s114
    %p128 = scmp.eq.s32.totalorder %s16, 7
    %p129 = por %p127, %p128
    %p131 = scmp.ne.s32.totalorder %s114, %s130
    %p132 = scmp.eq.s32.totalorder %s16, 0
    %p133 = por %p131, %p132
    %s134 = ssub.s32 %s17, %s43
    %s135 = ssub.s32 %s20, %s31
    %s136 = sor.u32 %s134, %s135
    %p137 = scmp.eq.s32.totalorder %s136, 0
    %s139 = sadd.s32 %s138, 1
    %s140 = scalar_select %p137, %s138, %s139
    %p143 = pneg %p137
    %p144 = scmp.eq.s32.totalorder %s10, 7
    %p145 = por %p143, %p144
    %p146 = scmp.ne.s32.totalorder %s138, %s141
    %p147 = scmp.eq.s32.totalorder %s10, 0
    %p148 = por %p146, %p147
    %p149 = scmp.ne.s32.totalorder %s138, %s141
    %p150 = scmp.eq.s32.totalorder %s15, 7
    %p151 = por %p149, %p150
    %p152 = scmp.ne.s32.totalorder %s141, %s142
    %p153 = scmp.eq.s32.totalorder %s15, 0
    %p154 = por %p152, %p153
    %p155 = scmp.ne.s32.totalorder %s141, %s142
    %p156 = scmp.eq.s32.totalorder %s16, 7
    %p157 = por %p155, %p156
    %p159 = scmp.ne.s32.totalorder %s142, %s158
    %p160 = scmp.eq.s32.totalorder %s16, 0
    %p161 = por %p159, %p160
    %s162 = ssub.s32 %s17, %s43
    %s163 = ssub.s32 %s18, %s39
    %s164 = sor.u32 %s162, %s163
    %s165 = ssub.s32 %s19, %s35
    %s166 = sor.u32 %s164, %s165
    %p167 = scmp.eq.s32.totalorder %s166, 0
    %s169 = sadd.s32 %s168, 1
    %s170 = scalar_select %p167, %s168, %s169
    %p173 = pneg %p167
    %p174 = scmp.eq.s32.totalorder %s10, 7
    %p175 = por %p173, %p174
    %p176 = scmp.ne.s32.totalorder %s168, %s171
    %p177 = scmp.eq.s32.totalorder %s10, 0
    %p178 = por %p176, %p177
    %p179 = scmp.ne.s32.totalorder %s168, %s171
    %p180 = scmp.eq.s32.totalorder %s15, 7
    %p181 = por %p179, %p180
    %p182 = scmp.ne.s32.totalorder %s171, %s172
    %p183 = scmp.eq.s32.totalorder %s15, 0
    %p184 = por %p182, %p183
    %p185 = scmp.ne.s32.totalorder %s171, %s172
    %p186 = scmp.eq.s32.totalorder %s16, 7
    %p187 = por %p185, %p186
    %p189 = scmp.ne.s32.totalorder %s172, %s188
    %p190 = scmp.eq.s32.totalorder %s16, 0
    %p191 = por %p189, %p190
    %p192 = scmp.le.s32.totalorder 1, %s10
    %p193 = scmp.lt.s32.totalorder %s10, 9
    %p194 = pnand %p192, %p193
    %p195 = pneg %p194
    // Predicated region
    $region9: #{transformer_forward.54} parent=5 // pred_check
      _
    $region10: #{transformer_forward.54} parent=5 // pred_check_branch
      %197 = sbr.rel (%p194) target = $region12
    $region11: #{transformer_forward.54} parent=5 // pred_region
      %s198 = ssub.s32 %s10, 1
    $region12: #{transformer_forward.54} parent=5 // pred_fallthru
      _
    %p199 = scmp.lt.s32.totalorder %s10, 8
    // Predicated region
    $region13: #{transformer_forward.54} parent=5 // pred_check
      %p200 = pneg %p199
    $region14: #{transformer_forward.54} parent=5 // pred_check_branch
      %202 = sbr.rel (%p200) target = $region16
    $region15: #{transformer_forward.54} parent=5 // pred_region
      // Predicated region
      $region17: #{transformer_forward.54} parent=15 // pred_check
        %p203 = pneg %p60
      $region18: #{transformer_forward.54} parent=15 // pred_check_branch
        %205 = sbr.rel (%p203) target = $region20
      $region19: #{transformer_forward.54} parent=15 // pred_region
        %p206 = scmp.lt.s32.totalorder %s17, 1
        %s207 = scalar_select %p206, %s17, 1
        %p208 = scmp.lt.s32.totalorder %s18, 3
        %s209 = scalar_select %p208, %s18, 3
        %p210 = scmp.lt.s32.totalorder %s19, 0
        %s211 = scalar_select %p210, %s19, 0
        %s212 = sadd.s32 %s211, %s209
        %s213 = smul.addr %s207, 4
        %s214 = sadd.s32 %s212, %s213
        %s215 = smul.addr %s214, 4
        %s216 = scalar_lea.vmem %s0, %s215
      $region20: #{transformer_forward.54} parent=15 // pred_fallthru
        _
      // Predicated region
      $region21: #{transformer_forward.54} parent=15 // pred_check
        %p217 = pneg %p90
      $region22: #{transformer_forward.54} parent=15 // pred_check_branch
        %219 = sbr.rel (%p217) target = $region24
      $region23: #{transformer_forward.54} parent=15 // pred_region
        %p220 = scmp.lt.s32.totalorder %s17, 1
        %s221 = scalar_select %p220, %s17, 1
        %p222 = scmp.lt.s32.totalorder %s18, 3
        %s223 = scalar_select %p222, %s18, 3
        %p224 = scmp.lt.s32.totalorder %s20, 0
        %s225 = scalar_select %p224, %s20, 0
        %s226 = sadd.s32 %s225, %s223
        %s227 = smul.addr %s221, 4
        %s228 = sadd.s32 %s226, %s227
        %s229 = smul.addr %s228, 4
        %s230 = scalar_lea.vmem %s1, %s229
      $region24: #{transformer_forward.54} parent=15 // pred_fallthru
        _
      // Predicated region
      $region25: #{transformer_forward.54} parent=15 // pred_check
        %p231 = pneg %p120
      $region26: #{transformer_forward.54} parent=15 // pred_check_branch
        %233 = sbr.rel (%p231) target = $region28
      $region27: #{transformer_forward.54} parent=15 // pred_region
        %p234 = scmp.lt.s32.totalorder %s17, 1
        %s235 = scalar_select %p234, %s17, 1
        %p236 = scmp.lt.s32.totalorder %s18, 3
        %s237 = scalar_select %p236, %s18, 3
        %p238 = scmp.lt.s32.totalorder %s20, 0
        %s239 = scalar_select %p238, %s20, 0
        %s240 = sadd.s32 %s239, %s237
        %s241 = smul.addr %s235, 4
        %s242 = sadd.s32 %s240, %s241
        %s243 = smul.addr %s242, 4
        %s244 = scalar_lea.vmem %s2, %s243
      $region28: #{transformer_forward.54} parent=15 // pred_fallthru
        _
      // Predicated region
      $region29: #{transformer_forward.54} parent=15 // pred_check
        %p245 = pneg %p148
      $region30: #{transformer_forward.54} parent=15 // pred_check_branch
        %247 = sbr.rel (%p245) target = $region32
      $region31: #{transformer_forward.54} parent=15 // pred_region
        %p248 = scmp.lt.s32.totalorder %s17, 1
        %s249 = scalar_select %p248, %s17, 1
        %p250 = scmp.lt.s32.totalorder %s20, 0
        %s251 = scalar_select %p250, %s20, 0
        %s252 = sadd.s32 %s251, %s249
        %s253 = scalar_lea.vmem %s3, %s252
      $region32: #{transformer_forward.54} parent=15 // pred_fallthru
        _
    $region16: #{transformer_forward.54} parent=5 // pred_fallthru
      _
    %p254 = scmp.le.s32.totalorder 1, %s10
    %p255 = scmp.lt.s32.totalorder %s10, 9
    %p256 = pnand %p254, %p255
    %p257 = pneg %p256
    // Predicated region
    $region33: #{transformer_forward.54} parent=5 // pred_check
      _
    $region34: #{transformer_forward.54} parent=5 // pred_check_branch
      %259 = sbr.rel (%p256) target = $region36
    $region35: #{transformer_forward.54} parent=5 // pred_region
      %s260 = ssub.s32 %s10, 1
      %p261 = scmp.lt.s32.totalorder %s21, 1
      %s262 = scalar_select %p261, %s21, 1
      %p263 = scmp.lt.s32.totalorder %s22, 3
      %s264 = scalar_select %p263, %s22, 3
      %p265 = scmp.lt.s32.totalorder %s23, 0
      %s266 = scalar_select %p265, %s23, 0
      %s267 = sadd.s32 %s266, %s264
      %s268 = smul.addr %s262, 4
      %s269 = sadd.s32 %s267, %s268
      %s270 = smul.addr %s269, 4
      %s271 = scalar_lea.vmem %s0, %s270
      %p272 = pneg %p66
      %p273 = pneg %p63
      %p274 = scmp.lt.s32.totalorder %s21, 1
      %s275 = scalar_select %p274, %s21, 1
      %p276 = scmp.lt.s32.totalorder %s22, 3
      %s277 = scalar_select %p276, %s22, 3
      %p278 = scmp.lt.s32.totalorder %s24, 0
      %s279 = scalar_select %p278, %s24, 0
      %s280 = sadd.s32 %s279, %s277
      %s281 = smul.addr %s275, 4
      %s282 = sadd.s32 %s280, %s281
      %s283 = smul.addr %s282, 4
      %s284 = scalar_lea.vmem %s1, %s283
      %p285 = pneg %p96
      %p286 = pneg %p93
      %p287 = scmp.lt.s32.totalorder %s21, 1
      %s288 = scalar_select %p287, %s21, 1
      %p289 = scmp.lt.s32.totalorder %s22, 3
      %s290 = scalar_select %p289, %s22, 3
      %p291 = scmp.lt.s32.totalorder %s24, 0
      %s292 = scalar_select %p291, %s24, 0
      %s293 = sadd.s32 %s292, %s290
      %s294 = smul.addr %s288, 4
      %s295 = sadd.s32 %s293, %s294
      %s296 = smul.addr %s295, 4
      %s297 = scalar_lea.vmem %s2, %s296
      %p298 = pneg %p126
      %p299 = pneg %p123
      %p300 = scmp.lt.s32.totalorder %s21, 1
      %s301 = scalar_select %p300, %s21, 1
      %p302 = scmp.lt.s32.totalorder %s24, 0
      %s303 = scalar_select %p302, %s24, 0
      %s304 = sadd.s32 %s303, %s301
      %s305 = scalar_lea.vmem %s3, %s304
      %p306 = pneg %p154
      %p307 = pneg %p151
      %p308 = pneg %p184
      %p309 = pneg %p181
      %p310 = scmp.lt.s32.totalorder %s21, 1
      %s311 = scalar_select %p310, %s21, 1
      %p312 = scmp.lt.s32.totalorder %s22, 3
      %s313 = scalar_select %p312, %s22, 3
      %p314 = scmp.lt.s32.totalorder %s23, 0
      %s315 = scalar_select %p314, %s23, 0
      %s316 = sadd.s32 %s315, %s313
      %s317 = smul.addr %s311, 4
      %s318 = sadd.s32 %s316, %s317
      %s319 = smul.addr %s318, 4
      %s320 = scalar_lea.vmem %s4, %s319
      %p321 = scmp.lt.s32.totalorder %s21, 1
      %s322 = scalar_select %p321, %s21, 1
      %p323 = scmp.lt.s32.totalorder %s22, 3
      %s324 = scalar_select %p323, %s22, 3
      %p325 = scmp.lt.s32.totalorder %s23, 0
      %s326 = scalar_select %p325, %s23, 0
      %s327 = sadd.s32 %s326, %s324
      %s328 = smul.addr %s322, 4
      %s329 = sadd.s32 %s327, %s328
      %s330 = smul.addr %s329, 4
      %s331 = scalar_lea.vmem %s0, %s330
      %p332 = scmp.lt.s32.totalorder %s21, 1
      %s333 = scalar_select %p332, %s21, 1
      %p334 = scmp.lt.s32.totalorder %s22, 3
      %s335 = scalar_select %p334, %s22, 3
      %p336 = scmp.lt.s32.totalorder %s24, 0
      %s337 = scalar_select %p336, %s24, 0
      %s338 = sadd.s32 %s337, %s335
      %s339 = smul.addr %s333, 4
      %s340 = sadd.s32 %s338, %s339
      %s341 = smul.addr %s340, 4
      %s342 = scalar_lea.vmem %s1, %s341
      %p343 = scmp.lt.s32.totalorder %s21, 1
      %s344 = scalar_select %p343, %s21, 1
      %p345 = scmp.lt.s32.totalorder %s22, 3
      %s346 = scalar_select %p345, %s22, 3
      %p347 = scmp.lt.s32.totalorder %s24, 0
      %s348 = scalar_select %p347, %s24, 0
      %s349 = sadd.s32 %s348, %s346
      %s350 = smul.addr %s344, 4
      %s351 = sadd.s32 %s349, %s350
      %s352 = smul.addr %s351, 4
      %s353 = scalar_lea.vmem %s2, %s352
      %p354 = scmp.lt.s32.totalorder %s21, 1
      %s355 = scalar_select %p354, %s21, 1
      %p356 = scmp.lt.s32.totalorder %s24, 0
      %s357 = scalar_select %p356, %s24, 0
      %s358 = sadd.s32 %s357, %s355
      %s359 = scalar_lea.vmem %s3, %s358
      %p360 = scmp.lt.s32.totalorder %s21, 1
      %s361 = scalar_select %p360, %s21, 1
      %p362 = scmp.lt.s32.totalorder %s22, 3
      %s363 = scalar_select %p362, %s22, 3
      %p364 = scmp.lt.s32.totalorder %s23, 0
      %s365 = scalar_select %p364, %s23, 0
      %s366 = sadd.s32 %s365, %s363
      %s367 = smul.addr %s361, 4
      %s368 = sadd.s32 %s366, %s367
      %s369 = smul.addr %s368, 4
      %s370 = scalar_lea.vmem %s4, %s369
      %p372 = scmp.eq.s32.totalorder %s24, 0
      // Predicated region
      $region37: #{transformer_forward.54} parent=35 // pred_check
        %p373 = pneg %p372
      $region38: #{transformer_forward.54} parent=35 // pred_check_branch
        %375 = sbr.rel (%p373) target = $region40
      $region39: #{transformer_forward.54} parent=35 // pred_region
        %vm376 = vcmask 7168
        %377 = vst.msk [vmem:[#allocation2] sm:$0xff] %vm376, -1e+30
        %378 = vst.msk [vmem:[#allocation3] sm:$0xff] %vm376, 0.0
        %vm379 = vcmask 64512
        %380 = vst.msk [vmem:[#allocation4] sm:$0xff] %vm379, 0.0
      $region40: #{transformer_forward.54} parent=35 // pred_fallthru
        _
      %v381 = vld [vmem:[%s331] sm:$0xf]
      %v382 = vld [vmem:[%s342] sm:$0xf]
      %vm383 = vcmask 64512
      %v385 = vsel %vm383, %v381, 0
      %v388 = vsel %vm383, %v382, 0
      %390 = vmatprep.subr.bf16.mxu0 0
      %391 = vmatpush1.bf16.xpose.msra.mxu0 0
      %392 = vmatprep.subr.bf16.mxu0 0
      %393 = vmatpush1.bf16.xpose.msra.mxu0 0
      %394 = vmatprep.subr.bf16.mxu0 0
      %395 = vmatpush1.bf16.xpose.msra.mxu0 0
      %396 = vmatprep.subr.bf16.mxu0 0
      %397 = vmatpush1.bf16.xpose.msra.mxu0 0
      %398 = vmatprep.subr.bf16.mxu0 0
      %399 = vmatpush1.bf16.xpose.msra.mxu0 0
      %400 = vmatprep.subr.bf16.mxu0 0
      %401 = vmatpush1.bf16.xpose.msra.mxu0 0
      %402 = vmatprep.subr.bf16.mxu0 0
      %403 = vmatpush1.bf16.xpose.msra.mxu0 0
      %404 = vmatprep.subr.bf16.mxu0 0
      %405 = vmatpush1.bf16.xpose.msra.mxu0 %v388
      %406 = vmatprep.subr.bf16.mxu0 0
      %407 = vmatpush2.bf16.xpose.msra.mxu0 0
      %408 = vmatprep.subr.bf16.mxu0 0
      %409 = vmatpush2.bf16.xpose.msra.mxu0 0
      %410 = vmatprep.subr.bf16.mxu0 0
      %411 = vmatpush2.bf16.xpose.msra.mxu0 0
      %412 = vmatprep.subr.bf16.mxu0 0
      %413 = vmatpush2.bf16.xpose.msra.mxu0 0
      %414 = vmatprep.subr.bf16.mxu0 0
      %415 = vmatpush2.bf16.xpose.msra.mxu0 0
      %416 = vmatprep.subr.bf16.mxu0 0
      %417 = vmatpush2.bf16.xpose.msra.mxu0 0
      %418 = vmatprep.subr.bf16.mxu0 0
      %419 = vmatpush2.bf16.xpose.msra.mxu0 0
      %420 = vmatprep.subr.bf16.mxu0 0
      %421 = vmatpush2.bf16.xpose.msra.mxu0 0
      %422 = vmatprep.mubr.bf16.mxu0 0
      %423 = vmatmul.mubr.bf16.gmra.mxu0 %v385
      %v424 = vpop.f32.mrf.mxu0
      %v425 = vadd.f32 0.0, %v424
      %v426 = vpop.f32.mrf.mxu0
      %v427 = vpop.f32.mrf.mxu0
      %v428 = vpop.f32.mrf.mxu0
      %429 = vdwg.mxu0
      %v430 = vld [vmem:[%s359] sm:$0x1]
      %vm431 = vcmp.gt.f32.partialorder %v430, 0.0
      %s432 = smul.u32 %s23, 8
      %v433 = vlaneseq
      %v434 = vshrl.u32 %v433, 7
      %v435 = vstv %s432
      %v436 = vadd.s32 %v435, %v434
      %s437 = smul.u32 %s24, 8
      %v438 = vlaneseq
      %v439 = vand.u32 %v438, 127
      %v440 = vstv %s437
      %v441 = vadd.s32 %v440, %v439
      %vm442 = vcmp.le.s32.totalorder %v441, %v436
      %v443 = vsel %vm431, 1, 0
      %v444 = vlaneseq
      %v445 = vshrl.u32 %v444, 7
      %v446 = vsub.s32 0, %v445
      %v447 = vrot.slane %v443, %v446
      %vm448 = vcmp.eq.s32.totalorder %v447, 1
      %vm449 = vmand %vm448, %vm442
      %v450 = vsel %vm449, %v425, -1e+30
      %v451 = vld [vmem:[#allocation2] sm:$0xff]
      %v452 = vsel %vm383, %v450, -inf
      %453 = vmax.xlane.f32.xlu0 %v452
      %v454 = vpop.xlane.xlu0 %453
      %v455 = vmax.f32 %v451, %v454
      %v456 = vsub.f32 %v451, %v455
      %v457 = vmul.f32 %v456, 1.442695
      %v458 = vpow.pop %v457
      %460 = vset.pattern.permute.xlu0 0
      %461 = vperm.xlu0 %460, %v455
      %v462 = vpop.permute.xlu0 %461
      %v464 = vsub.f32 %v450, %v462
      %v465 = vmul.f32 %v464, 1.442695
      %v466 = vpow.pop %v465
      %v467 = vld [vmem:[#allocation3] sm:$0xff]
      %v468 = vmul.f32 %v458, %v467
      %v469 = vsel %vm383, %v466, 0.0
      %470 = vadd.xlane.f32.xlu0 %v469
      %v471 = vpop.xlane.xlu0 %470
      %v472 = vadd.f32 %v468, %v471
      %vm473 = vcmask 7168
      %474 = vst.msk [vmem:[#allocation3] sm:$0xff] %vm473, %v472
      %v475 = vld [vmem:[#allocation4] sm:$0xff]
      %477 = vset.pattern.permute.xlu0 0
      %478 = vperm.xlu0 %477, %v458
      %v479 = vpop.permute.xlu0 %478
      %v481 = vmul.f32 %v479, %v475
      %v482 = vpack.c.bf16 %v466, %v466
      %v483 = vld [vmem:[%s353] sm:$0xf]
      %v485 = vsel %vm383, %v482, 0
      %vm487 = vcmask 1043456
      %v489 = vsel %vm487, %v483, 0
      %491 = vmatprep.subr.bf16.mxu0 0
      %492 = vmatpush1.bf16.msra.mxu0 0
      %493 = vmatprep.subr.bf16.mxu0 0
      %494 = vmatpush1.bf16.msra.mxu0 0
      %495 = vmatprep.subr.bf16.mxu0 0
      %496 = vmatpush1.bf16.msra.mxu0 0
      %497 = vmatprep.subr.bf16.mxu0 0
      %498 = vmatpush1.bf16.msra.mxu0 0
      %499 = vmatprep.subr.bf16.mxu0 0
      %500 = vmatpush1.bf16.msra.mxu0 0
      %501 = vmatprep.subr.bf16.mxu0 0
      %502 = vmatpush1.bf16.msra.mxu0 0
      %503 = vmatprep.subr.bf16.mxu0 0
      %504 = vmatpush1.bf16.msra.mxu0 0
      %505 = vmatprep.subr.bf16.mxu0 0
      %506 = vmatpush1.bf16.msra.mxu0 %v489
      %507 = vmatprep.subr.bf16.mxu0 0
      %508 = vmatpush2.bf16.msra.mxu0 0
      %509 = vmatprep.subr.bf16.mxu0 0
      %510 = vmatpush2.bf16.msra.mxu0 0
      %511 = vmatprep.subr.bf16.mxu0 0
      %512 = vmatpush2.bf16.msra.mxu0 0
      %513 = vmatprep.subr.bf16.mxu0 0
      %514 = vmatpush2.bf16.msra.mxu0 0
      %515 = vmatprep.subr.bf16.mxu0 0
      %516 = vmatpush2.bf16.msra.mxu0 0
      %517 = vmatprep.subr.bf16.mxu0 0
      %518 = vmatpush2.bf16.msra.mxu0 0
      %519 = vmatprep.subr.bf16.mxu0 0
      %520 = vmatpush2.bf16.msra.mxu0 0
      %521 = vmatprep.subr.bf16.mxu0 0
      %522 = vmatpush2.bf16.msra.mxu0 0
      %523 = vmatprep.mubr.bf16.mxu0 0
      %524 = vmatmul.mubr.bf16.gmra.mxu0 %v485
      %v525 = vpop.f32.mrf.mxu0
      %v526 = vadd.f32 0.0, %v525
      %v527 = vpop.f32.mrf.mxu0
      %v528 = vpop.f32.mrf.mxu0
      %v529 = vpop.f32.mrf.mxu0
      %530 = vdwg.mxu0
      %v531 = vadd.f32 %v481, %v526
      %532 = vst.msk [vmem:[#allocation4] sm:$0xff] %vm383, %v531
      %533 = vst.msk [vmem:[#allocation2] sm:$0xff] %vm473, %v455
      // Predicated region
      $region41: #{transformer_forward.54} parent=35 // pred_check
        %p534 = pneg %p372
      $region42: #{transformer_forward.54} parent=35 // pred_check_branch
        %536 = sbr.rel (%p534) target = $region44
      $region43: #{transformer_forward.54} parent=35 // pred_region
        %v537 = vld [vmem:[#allocation3] sm:$0xff]
        %v538 = vrcp.pop %v537
        %v539 = vld [vmem:[#allocation4] sm:$0xff]
        %541 = vset.pattern.permute.xlu0 0
        %542 = vperm.xlu0 %541, %v538
        %v543 = vpop.permute.xlu0 %542
        %v545 = vmul.f32 %v539, %v543
        %v546 = vpack.c.bf16 %v545, %v545
        %vm547 = vcmask 60416
        %548 = vst.msk [vmem:[%s370] sm:$0xf] %vm547, %v546
      $region44: #{transformer_forward.54} parent=35 // pred_fallthru
        _
      %p549 = scmp.lt.s32.totalorder %s21, 1
      %s550 = scalar_select %p549, %s21, 1
      %p551 = scmp.lt.s32.totalorder %s22, 3
      %s552 = scalar_select %p551, %s22, 3
      %p553 = scmp.lt.s32.totalorder %s23, 0
      %s554 = scalar_select %p553, %s23, 0
      %s555 = sadd.s32 %s554, %s552
      %s556 = smul.addr %s550, 4
      %s557 = sadd.s32 %s555, %s556
      %s558 = smul.addr %s557, 4
      %s559 = scalar_lea.vmem %s4, %s558
      // Predicated region
      $region45: #{transformer_forward.54} parent=35 // pred_check
        %p560 = pneg %p181
      $region46: #{transformer_forward.54} parent=35 // pred_check_branch
        %562 = sbr.rel (%p560) target = $region48
      $region47: #{transformer_forward.54} parent=35 // pred_region
        _
      $region48: #{transformer_forward.54} parent=35 // pred_fallthru
        _
    $region36: #{transformer_forward.54} parent=5 // pred_fallthru
      _
    %p563 = scmp.le.s32.totalorder 2, %s10
    // Predicated region
    $region49: #{transformer_forward.54} parent=5 // pred_check
      %p564 = pneg %p563
    $region50: #{transformer_forward.54} parent=5 // pred_check_branch
      %566 = sbr.rel (%p564) target = $region52
    $region51: #{transformer_forward.54} parent=5 // pred_region
      %s567 = ssub.s32 %s10, 2
      // Predicated region
      $region53: #{transformer_forward.54} parent=51 // pred_check
        %p568 = pneg %p187
      $region54: #{transformer_forward.54} parent=51 // pred_check_branch
        %570 = sbr.rel (%p568) target = $region56
      $region55: #{transformer_forward.54} parent=51 // pred_region
        %p571 = scmp.lt.s32.totalorder %s25, 1
        %s572 = scalar_select %p571, %s25, 1
        %p573 = scmp.lt.s32.totalorder %s26, 3
        %s574 = scalar_select %p573, %s26, 3
        %p575 = scmp.lt.s32.totalorder %s27, 0
        %s576 = scalar_select %p575, %s27, 0
        %s577 = sadd.s32 %s576, %s574
        %s578 = smul.addr %s572, 4
        %s579 = sadd.s32 %s577, %s578
        %s580 = smul.addr %s579, 4
        %s581 = scalar_lea.vmem %s4, %s580
      $region56: #{transformer_forward.54} parent=51 // pred_fallthru
        _
    $region52: #{transformer_forward.54} parent=5 // pred_fallthru
      _
  $region6: #{transformer_forward.54} parent=0 // loop_footer
    %s14 = sadd.s32 1, %s10
  $region7: #{transformer_forward.54} parent=0 // loop_footer_branch
    %9 = sbr.rel target = $region3
  $region8: #{transformer_forward.54} parent=0 // loop_exit
    _

// kernel: transformer_forward.43
$region0: #{transformer_forward.43}
  #allocation0 [shape = 'u32[]', space=smem, size = 0x4, offset = 0x4, fixed_abs, tag = 'smem constant byte address 0x4 - core index']
  #allocation1 [shape = 'u32[144,128]{1,0:T(1,128)}', space=vmem, size = 0x12000, scoped, tag = 'internal scratch']
  #allocation2 [shape = 'f32[16,64]{1,0:T(8,128)}', space=vmem, size = 0x2000, scoped, tag = 'scratch operand']
  %s0 = inlined_call_operand.vmem [shape: bf16[16,32], index: 0, kind: input, shape index: {}]
  %s1 = inlined_call_operand.vmem [shape: bf16[32,64], index: 1, kind: input, shape index: {}]
  %s2 = inlined_call_operand.vmem [shape: f32[1,64], index: 2, kind: input, shape index: {}]
  %s3 = inlined_call_operand.vmem [shape: bf16[16,64], index: 3, kind: output, shape index: {}]
  %s4 = sld [smem:[#allocation0]]
  $region30: #{transformer_forward.43} parent=0
    _
  %s6 = ssub.s32 1, %s4
  %s7 = scalar_select 0, %s6, %s4
  // Predicated region
  $region2: #{transformer_forward.43} parent=0 // pred_check
    _
  $region3: #{transformer_forward.43} parent=0 // pred_check_branch
    %9 = sbr.rel (0) target = $region5
  $region4: #{transformer_forward.43} parent=0 // pred_region
    _
  $region5: #{transformer_forward.43} parent=0 // pred_fallthru
    _
  // Predicated region
  $region6: #{transformer_forward.43} parent=0 // pred_check
    _
  $region7: #{transformer_forward.43} parent=0 // pred_check_branch
    %11 = sbr.rel (0) target = $region9
  $region8: #{transformer_forward.43} parent=0 // pred_region
    _
  $region9: #{transformer_forward.43} parent=0 // pred_fallthru
    _
  // Predicated region
  $region10: #{transformer_forward.43} parent=0 // pred_check
    _
  $region11: #{transformer_forward.43} parent=0 // pred_check_branch
    %13 = sbr.rel (0) target = $region13
  $region12: #{transformer_forward.43} parent=0 // pred_region
    _
  $region13: #{transformer_forward.43} parent=0 // pred_fallthru
    _
  %p15 = scmp.eq.s32.totalorder 0, 0
  // Predicated region
  $region14: #{transformer_forward.43} parent=0 // pred_check
    %p16 = pneg %p15
  $region15: #{transformer_forward.43} parent=0 // pred_check_branch
    %18 = sbr.rel (%p16) target = $region17
  $region16: #{transformer_forward.43} parent=0 // pred_region
    %vm19 = vcmask 523264
    %20 = vst.msk [vmem:[#allocation2] sm:$0xff] %vm19, 0.0
    %21 = vst.msk [vmem:[#allocation2 + $0x8] sm:$0xff] %vm19, 0.0
  $region17: #{transformer_forward.43} parent=0 // pred_fallthru
    _
  %v22 = vld [vmem:[#allocation2] sm:$0xff]
  %v23 = vld [vmem:[#allocation2 + $0x8] sm:$0xff]
  %v24 = vld [vmem:[%s0] sm:$0xf]
  %v25 = vld [vmem:[%s0 + $0x4] sm:$0xf]
  %v26 = vld [vmem:[%s1] sm:$0xf]
  %v27 = vld [vmem:[%s1 + $0x4] sm:$0xf]
  %v28 = vld [vmem:[%s1 + $0x8] sm:$0xf]
  %v29 = vld [vmem:[%s1 + $0xc] sm:$0xf]
  %v32 = vunpack.c.l.b16 %v24
  %v33 = vunpack.c.l.b16 %v25
  %v34 = vpack.c.b16 %v33, %v32
  %v39 = vunpack.c.l.b16 %v26
  %v40 = vunpack.c.l.b16 %v27
  %v41 = vunpack.c.l.b16 %v28
  %v42 = vunpack.c.l.b16 %v29
  %v43 = vpack.c.b16 %v40, %v39
  %v44 = vpack.c.b16 %v42, %v41
  %vm47 = vcmask 261120
  %v49 = vsel %vm47, %v34, 0
  %51 = vmatprep.subr.bf16.mxu0 0
  %52 = vmatpush1.bf16.msra.mxu0 0
  %53 = vmatprep.subr.bf16.mxu0 0
  %54 = vmatpush1.bf16.msra.mxu0 0
  %55 = vmatprep.subr.bf16.mxu0 0
  %56 = vmatpush1.bf16.msra.mxu0 0
  %57 = vmatprep.subr.bf16.mxu0 0
  %58 = vmatpush1.bf16.msra.mxu0 0
  %59 = vmatprep.subr.bf16.mxu0 0
  %60 = vmatpush1.bf16.msra.mxu0 0
  %61 = vmatprep.subr.bf16.mxu0 0
  %62 = vmatpush1.bf16.msra.mxu0 0
  %63 = vmatprep.subr.bf16.mxu0 0
  %64 = vmatpush1.bf16.msra.mxu0 %v44
  %65 = vmatprep.subr.bf16.mxu0 0
  %66 = vmatpush1.bf16.msra.mxu0 %v43
  %67 = vmatprep.subr.bf16.mxu0 0
  %68 = vmatpush2.bf16.msra.mxu0 0
  %69 = vmatprep.subr.bf16.mxu0 0
  %70 = vmatpush2.bf16.msra.mxu0 0
  %71 = vmatprep.subr.bf16.mxu0 0
  %72 = vmatpush2.bf16.msra.mxu0 0
  %73 = vmatprep.subr.bf16.mxu0 0
  %74 = vmatpush2.bf16.msra.mxu0 0
  %75 = vmatprep.subr.bf16.mxu0 0
  %76 = vmatpush2.bf16.msra.mxu0 0
  %77 = vmatprep.subr.bf16.mxu0 0
  %78 = vmatpush2.bf16.msra.mxu0 0
  %79 = vmatprep.subr.bf16.mxu0 0
  %80 = vmatpush2.bf16.msra.mxu0 0
  %81 = vmatprep.subr.bf16.mxu0 0
  %82 = vmatpush2.bf16.msra.mxu0 0
  %83 = vmatprep.mubr.bf16.mxu0 0
  %84 = vmatmul.mubr.bf16.gmra.mxu0 %v49
  %v85 = vpop.f32.mrf.mxu0
  %v86 = vadd.f32 0.0, %v85
  %v87 = vpop.f32.mrf.mxu0
  %v88 = vpop.f32.mrf.mxu0
  %v89 = vadd.f32 0.0, %v88
  %v90 = vpop.f32.mrf.mxu0
  %91 = vdwg.mxu0
  %v92 = vadd.f32 %v22, %v86
  %v93 = vadd.f32 %v23, %v89
  %vm94 = vcmask 523264
  %95 = vst.msk [vmem:[#allocation2] sm:$0xff] %vm94, %v92
  %96 = vst.msk [vmem:[#allocation2 + $0x8] sm:$0xff] %vm94, %v93
  // Predicated region
  $region18: #{transformer_forward.43} parent=0 // pred_check
    %p97 = pneg %p15
  $region19: #{transformer_forward.43} parent=0 // pred_check_branch
    %99 = sbr.rel (%p97) target = $region21
  $region20: #{transformer_forward.43} parent=0 // pred_region
    %v100 = vld [vmem:[#allocation2] sm:$0xff]
    %v101 = vld [vmem:[#allocation2 + $0x8] sm:$0xff]
    %v102 = vld [vmem:[%s2] sm:$0x1]
    %v104 = vlaneseq
    %v105 = vshrl.u32 %v104, 7
    %v106 = vsub.s32 0, %v105
    %v107 = vrot.slane %v102, %v106
    %v109 = vadd.f32 %v100, %v107
    %v110 = vadd.f32 %v101, %v107
    %v111 = vmax.f32 %v109, 0.0
    %v112 = vmax.f32 %v110, 0.0
    %v113 = vpack.c.bf16 %v112, %v111
    %v115 = vunpack.c.l.b16 %v113
    %v116 = vunpack.c.h.b16 %v113
    %v117 = vpack.c.b16 %v115, %v115
    %v118 = vpack.c.b16 %v116, %v116
    %vm121 = vcmask 519168
    %122 = vst.msk [vmem:[%s3] sm:$0xf] %vm121, %v117
    %123 = vst.msk [vmem:[%s3 + $0x4] sm:$0xf] %vm121, %v118
  $region21: #{transformer_forward.43} parent=0 // pred_fallthru
    _
  // Predicated region
  $region22: #{transformer_forward.43} parent=0 // pred_check
    _
  $region23: #{transformer_forward.43} parent=0 // pred_check_branch
    %125 = sbr.rel (0) target = $region25
  $region24: #{transformer_forward.43} parent=0 // pred_region
    _
  $region25: #{transformer_forward.43} parent=0 // pred_fallthru
    _
  // Predicated region
  $region26: #{transformer_forward.43} parent=0 // pred_check
    _
  $region27: #{transformer_forward.43} parent=0 // pred_check_branch
    %127 = sbr.rel (0) target = $region29
  $region28: #{transformer_forward.43} parent=0 // pred_region
    _
  $region29: #{transformer_forward.43} parent=0 // pred_fallthru
    _

// kernel: transformer_forward.44
$region0: #{transformer_forward.44}
  #allocation0 [shape = 'u32[]', space=smem, size = 0x4, offset = 0x4, fixed_abs, tag = 'smem constant byte address 0x4 - core index']
  #allocation1 [shape = 'u32[144,128]{1,0:T(1,128)}', space=vmem, size = 0x12000, scoped, tag = 'internal scratch']
  #allocation2 [shape = 'f32[16,32]{1,0:T(8,128)}', space=vmem, size = 0x2000, scoped, tag = 'scratch operand']
  %s0 = inlined_call_operand.vmem [shape: bf16[16,64], index: 0, kind: input, shape index: {}]
  %s1 = inlined_call_operand.vmem [shape: bf16[64,32], index: 1, kind: input, shape index: {}]
  %s2 = inlined_call_operand.vmem [shape: f32[1,32], index: 2, kind: input, shape index: {}]
  %s3 = inlined_call_operand.vmem [shape: bf16[16,32], index: 3, kind: output, shape index: {}]
  %s4 = sld [smem:[#allocation0]]
  $region30: #{transformer_forward.44} parent=0
    _
  %s6 = ssub.s32 1, %s4
  %s7 = scalar_select 0, %s6, %s4
  // Predicated region
  $region2: #{transformer_forward.44} parent=0 // pred_check
    _
  $region3: #{transformer_forward.44} parent=0 // pred_check_branch
    %9 = sbr.rel (0) target = $region5
  $region4: #{transformer_forward.44} parent=0 // pred_region
    _
  $region5: #{transformer_forward.44} parent=0 // pred_fallthru
    _
  // Predicated region
  $region6: #{transformer_forward.44} parent=0 // pred_check
    _
  $region7: #{transformer_forward.44} parent=0 // pred_check_branch
    %11 = sbr.rel (0) target = $region9
  $region8: #{transformer_forward.44} parent=0 // pred_region
    _
  $region9: #{transformer_forward.44} parent=0 // pred_fallthru
    _
  // Predicated region
  $region10: #{transformer_forward.44} parent=0 // pred_check
    _
  $region11: #{transformer_forward.44} parent=0 // pred_check_branch
    %13 = sbr.rel (0) target = $region13
  $region12: #{transformer_forward.44} parent=0 // pred_region
    _
  $region13: #{transformer_forward.44} parent=0 // pred_fallthru
    _
  %p15 = scmp.eq.s32.totalorder 0, 0
  // Predicated region
  $region14: #{transformer_forward.44} parent=0 // pred_check
    %p16 = pneg %p15
  $region15: #{transformer_forward.44} parent=0 // pred_check_branch
    %18 = sbr.rel (%p16) target = $region17
  $region16: #{transformer_forward.44} parent=0 // pred_region
    %vm19 = vcmask 261120
    %20 = vst.msk [vmem:[#allocation2] sm:$0xff] %vm19, 0.0
    %21 = vst.msk [vmem:[#allocation2 + $0x8] sm:$0xff] %vm19, 0.0
  $region17: #{transformer_forward.44} parent=0 // pred_fallthru
    _
  %v22 = vld [vmem:[#allocation2] sm:$0xff]
  %v23 = vld [vmem:[#allocation2 + $0x8] sm:$0xff]
  %v24 = vld [vmem:[%s0] sm:$0xf]
  %v25 = vld [vmem:[%s0 + $0x4] sm:$0xf]
  %v26 = vld [vmem:[%s1] sm:$0xf]
  %v27 = vld [vmem:[%s1 + $0x4] sm:$0xf]
  %v28 = vld [vmem:[%s1 + $0x8] sm:$0xf]
  %v29 = vld [vmem:[%s1 + $0xc] sm:$0xf]
  %v30 = vld [vmem:[%s1 + $0x10] sm:$0xf]
  %v31 = vld [vmem:[%s1 + $0x14] sm:$0xf]
  %v32 = vld [vmem:[%s1 + $0x18] sm:$0xf]
  %v33 = vld [vmem:[%s1 + $0x1c] sm:$0xf]
  %v36 = vunpack.c.l.b16 %v24
  %v37 = vunpack.c.l.b16 %v25
  %v38 = vpack.c.b16 %v37, %v36
  %v47 = vunpack.c.l.b16 %v26
  %v48 = vunpack.c.l.b16 %v27
  %v49 = vunpack.c.l.b16 %v28
  %v50 = vunpack.c.l.b16 %v29
  %v51 = vunpack.c.l.b16 %v30
  %v52 = vunpack.c.l.b16 %v31
  %v53 = vunpack.c.l.b16 %v32
  %v54 = vunpack.c.l.b16 %v33
  %v55 = vpack.c.b16 %v48, %v47
  %v56 = vpack.c.b16 %v50, %v49
  %v57 = vpack.c.b16 %v52, %v51
  %v58 = vpack.c.b16 %v54, %v53
  %vm63 = vcmask 523264
  %v65 = vsel %vm63, %v38, 0
  %67 = vmatprep.subr.bf16.mxu0 0
  %68 = vmatpush1.bf16.msra.mxu0 0
  %69 = vmatprep.subr.bf16.mxu0 0
  %70 = vmatpush1.bf16.msra.mxu0 0
  %71 = vmatprep.subr.bf16.mxu0 0
  %72 = vmatpush1.bf16.msra.mxu0 0
  %73 = vmatprep.subr.bf16.mxu0 0
  %74 = vmatpush1.bf16.msra.mxu0 0
  %75 = vmatprep.subr.bf16.mxu0 0
  %76 = vmatpush1.bf16.msra.mxu0 %v58
  %77 = vmatprep.subr.bf16.mxu0 0
  %78 = vmatpush1.bf16.msra.mxu0 %v57
  %79 = vmatprep.subr.bf16.mxu0 0
  %80 = vmatpush1.bf16.msra.mxu0 %v56
  %81 = vmatprep.subr.bf16.mxu0 0
  %82 = vmatpush1.bf16.msra.mxu0 %v55
  %83 = vmatprep.subr.bf16.mxu0 0
  %84 = vmatpush2.bf16.msra.mxu0 0
  %85 = vmatprep.subr.bf16.mxu0 0
  %86 = vmatpush2.bf16.msra.mxu0 0
  %87 = vmatprep.subr.bf16.mxu0 0
  %88 = vmatpush2.bf16.msra.mxu0 0
  %89 = vmatprep.subr.bf16.mxu0 0
  %90 = vmatpush2.bf16.msra.mxu0 0
  %91 = vmatprep.subr.bf16.mxu0 0
  %92 = vmatpush2.bf16.msra.mxu0 0
  %93 = vmatprep.subr.bf16.mxu0 0
  %94 = vmatpush2.bf16.msra.mxu0 0
  %95 = vmatprep.subr.bf16.mxu0 0
  %96 = vmatpush2.bf16.msra.mxu0 0
  %97 = vmatprep.subr.bf16.mxu0 0
  %98 = vmatpush2.bf16.msra.mxu0 0
  %99 = vmatprep.mubr.bf16.mxu0 0
  %100 = vmatmul.mubr.bf16.gmra.mxu0 %v65
  %v101 = vpop.f32.mrf.mxu0
  %v102 = vadd.f32 0.0, %v101
  %v103 = vpop.f32.mrf.mxu0
  %v104 = vpop.f32.mrf.mxu0
  %v105 = vadd.f32 0.0, %v104
  %v106 = vpop.f32.mrf.mxu0
  %107 = vdwg.mxu0
  %v108 = vadd.f32 %v22, %v102
  %v109 = vadd.f32 %v23, %v105
  %vm110 = vcmask 261120
  %111 = vst.msk [vmem:[#allocation2] sm:$0xff] %vm110, %v108
  %112 = vst.msk [vmem:[#allocation2 + $0x8] sm:$0xff] %vm110, %v109
  // Predicated region
  $region18: #{transformer_forward.44} parent=0 // pred_check
    %p113 = pneg %p15
  $region19: #{transformer_forward.44} parent=0 // pred_check_branch
    %115 = sbr.rel (%p113) target = $region21
  $region20: #{transformer_forward.44} parent=0 // pred_region
    %v116 = vld [vmem:[#allocation2] sm:$0xff]
    %v117 = vld [vmem:[#allocation2 + $0x8] sm:$0xff]
    %v118 = vld [vmem:[%s2] sm:$0x1]
    %v120 = vlaneseq
    %v121 = vshrl.u32 %v120, 7
    %v122 = vsub.s32 0, %v121
    %v123 = vrot.slane %v118, %v122
    %v125 = vadd.f32 %v116, %v123
    %v126 = vadd.f32 %v117, %v123
    %v127 = vpack.c.bf16 %v126, %v125
    %v129 = vunpack.c.l.b16 %v127
    %v130 = vunpack.c.h.b16 %v127
    %v131 = vpack.c.b16 %v129, %v129
    %v132 = vpack.c.b16 %v130, %v130
    %vm135 = vcmask 257024
    %136 = vst.msk [vmem:[%s3] sm:$0xf] %vm135, %v131
    %137 = vst.msk [vmem:[%s3 + $0x4] sm:$0xf] %vm135, %v132
  $region21: #{transformer_forward.44} parent=0 // pred_fallthru
    _
  // Predicated region
  $region22: #{transformer_forward.44} parent=0 // pred_check
    _
  $region23: #{transformer_forward.44} parent=0 // pred_check_branch
    %139 = sbr.rel (0) target = $region25
  $region24: #{transformer_forward.44} parent=0 // pred_region
    _
  $region25: #{transformer_forward.44} parent=0 // pred_fallthru
    _
  // Predicated region
  $region26: #{transformer_forward.44} parent=0 // pred_check
    _
  $region27: #{transformer_forward.44} parent=0 // pred_check_branch
    %141 = sbr.rel (0) target = $region29
  $region28: #{transformer_forward.44} parent=0 // pred_region
    _
  $region29: #{transformer_forward.44} parent=0 // pred_fallthru
    _

// kernel: transformer_forward.58
$region0: #{transformer_forward.58}
  #allocation0 [shape = 'u32[]', space=smem, size = 0x4, offset = 0x4, fixed_abs, tag = 'smem constant byte address 0x4 - core index']
  #allocation1 [shape = 'u32[144,128]{1,0:T(1,128)}', space=vmem, size = 0x12000, scoped, tag = 'internal scratch']
  #allocation2 [shape = 'f32[16,64]{1,0:T(8,128)}', space=vmem, size = 0x2000, scoped, tag = 'scratch operand']
  %s0 = inlined_call_operand.vmem [shape: bf16[16,32], index: 0, kind: input, shape index: {}]
  %s1 = inlined_call_operand.vmem [shape: bf16[32,64], index: 1, kind: input, shape index: {}]
  %s2 = inlined_call_operand.vmem [shape: f32[1,64], index: 2, kind: input, shape index: {}]
  %s3 = inlined_call_operand.vmem [shape: bf16[16,64], index: 3, kind: output, shape index: {}]
  %s4 = sld [smem:[#allocation0]]
  $region30: #{transformer_forward.58} parent=0
    _
  %s6 = ssub.s32 1, %s4
  %s7 = scalar_select 0, %s6, %s4
  // Predicated region
  $region2: #{transformer_forward.58} parent=0 // pred_check
    _
  $region3: #{transformer_forward.58} parent=0 // pred_check_branch
    %9 = sbr.rel (0) target = $region5
  $region4: #{transformer_forward.58} parent=0 // pred_region
    _
  $region5: #{transformer_forward.58} parent=0 // pred_fallthru
    _
  // Predicated region
  $region6: #{transformer_forward.58} parent=0 // pred_check
    _
  $region7: #{transformer_forward.58} parent=0 // pred_check_branch
    %11 = sbr.rel (0) target = $region9
  $region8: #{transformer_forward.58} parent=0 // pred_region
    _
  $region9: #{transformer_forward.58} parent=0 // pred_fallthru
    _
  // Predicated region
  $region10: #{transformer_forward.58} parent=0 // pred_check
    _
  $region11: #{transformer_forward.58} parent=0 // pred_check_branch
    %13 = sbr.rel (0) target = $region13
  $region12: #{transformer_forward.58} parent=0 // pred_region
    _
  $region13: #{transformer_forward.58} parent=0 // pred_fallthru
    _
  %p15 = scmp.eq.s32.totalorder 0, 0
  // Predicated region
  $region14: #{transformer_forward.58} parent=0 // pred_check
    %p16 = pneg %p15
  $region15: #{transformer_forward.58} parent=0 // pred_check_branch
    %18 = sbr.rel (%p16) target = $region17
  $region16: #{transformer_forward.58} parent=0 // pred_region
    %vm19 = vcmask 523264
    %20 = vst.msk [vmem:[#allocation2] sm:$0xff] %vm19, 0.0
    %21 = vst.msk [vmem:[#allocation2 + $0x8] sm:$0xff] %vm19, 0.0
  $region17: #{transformer_forward.58} parent=0 // pred_fallthru
    _
  %v22 = vld [vmem:[#allocation2] sm:$0xff]
  %v23 = vld [vmem:[#allocation2 + $0x8] sm:$0xff]
  %v24 = vld [vmem:[%s0] sm:$0xf]
  %v25 = vld [vmem:[%s0 + $0x4] sm:$0xf]
  %v26 = vld [vmem:[%s1] sm:$0xf]
  %v27 = vld [vmem:[%s1 + $0x4] sm:$0xf]
  %v28 = vld [vmem:[%s1 + $0x8] sm:$0xf]
  %v29 = vld [vmem:[%s1 + $0xc] sm:$0xf]
  %v32 = vunpack.c.l.b16 %v24
  %v33 = vunpack.c.l.b16 %v25
  %v34 = vpack.c.b16 %v33, %v32
  %v39 = vunpack.c.l.b16 %v26
  %v40 = vunpack.c.l.b16 %v27
  %v41 = vunpack.c.l.b16 %v28
  %v42 = vunpack.c.l.b16 %v29
  %v43 = vpack.c.b16 %v40, %v39
  %v44 = vpack.c.b16 %v42, %v41
  %vm47 = vcmask 261120
  %v49 = vsel %vm47, %v34, 0
  %51 = vmatprep.subr.bf16.mxu0 0
  %52 = vmatpush1.bf16.msra.mxu0 0
  %53 = vmatprep.subr.bf16.mxu0 0
  %54 = vmatpush1.bf16.msra.mxu0 0
  %55 = vmatprep.subr.bf16.mxu0 0
  %56 = vmatpush1.bf16.msra.mxu0 0
  %57 = vmatprep.subr.bf16.mxu0 0
  %58 = vmatpush1.bf16.msra.mxu0 0
  %59 = vmatprep.subr.bf16.mxu0 0
  %60 = vmatpush1.bf16.msra.mxu0 0
  %61 = vmatprep.subr.bf16.mxu0 0
  %62 = vmatpush1.bf16.msra.mxu0 0
  %63 = vmatprep.subr.bf16.mxu0 0
  %64 = vmatpush1.bf16.msra.mxu0 %v44
  %65 = vmatprep.subr.bf16.mxu0 0
  %66 = vmatpush1.bf16.msra.mxu0 %v43
  %67 = vmatprep.subr.bf16.mxu0 0
  %68 = vmatpush2.bf16.msra.mxu0 0
  %69 = vmatprep.subr.bf16.mxu0 0
  %70 = vmatpush2.bf16.msra.mxu0 0
  %71 = vmatprep.subr.bf16.mxu0 0
  %72 = vmatpush2.bf16.msra.mxu0 0
  %73 = vmatprep.subr.bf16.mxu0 0
  %74 = vmatpush2.bf16.msra.mxu0 0
  %75 = vmatprep.subr.bf16.mxu0 0
  %76 = vmatpush2.bf16.msra.mxu0 0
  %77 = vmatprep.subr.bf16.mxu0 0
  %78 = vmatpush2.bf16.msra.mxu0 0
  %79 = vmatprep.subr.bf16.mxu0 0
  %80 = vmatpush2.bf16.msra.mxu0 0
  %81 = vmatprep.subr.bf16.mxu0 0
  %82 = vmatpush2.bf16.msra.mxu0 0
  %83 = vmatprep.mubr.bf16.mxu0 0
  %84 = vmatmul.mubr.bf16.gmra.mxu0 %v49
  %v85 = vpop.f32.mrf.mxu0
  %v86 = vadd.f32 0.0, %v85
  %v87 = vpop.f32.mrf.mxu0
  %v88 = vpop.f32.mrf.mxu0
  %v89 = vadd.f32 0.0, %v88
  %v90 = vpop.f32.mrf.mxu0
  %91 = vdwg.mxu0
  %v92 = vadd.f32 %v22, %v86
  %v93 = vadd.f32 %v23, %v89
  %vm94 = vcmask 523264
  %95 = vst.msk [vmem:[#allocation2] sm:$0xff] %vm94, %v92
  %96 = vst.msk [vmem:[#allocation2 + $0x8] sm:$0xff] %vm94, %v93
  // Predicated region
  $region18: #{transformer_forward.58} parent=0 // pred_check
    %p97 = pneg %p15
  $region19: #{transformer_forward.58} parent=0 // pred_check_branch
    %99 = sbr.rel (%p97) target = $region21
  $region20: #{transformer_forward.58} parent=0 // pred_region
    %v100 = vld [vmem:[#allocation2] sm:$0xff]
    %v101 = vld [vmem:[#allocation2 + $0x8] sm:$0xff]
    %v102 = vld [vmem:[%s2] sm:$0x1]
    %v104 = vlaneseq
    %v105 = vshrl.u32 %v104, 7
    %v106 = vsub.s32 0, %v105
    %v107 = vrot.slane %v102, %v106
    %v109 = vadd.f32 %v100, %v107
    %v110 = vadd.f32 %v101, %v107
    %v111 = vpack.c.bf16 %v110, %v109
    %v113 = vunpack.c.l.b16 %v111
    %v114 = vunpack.c.h.b16 %v111
    %v115 = vpack.c.b16 %v113, %v113
    %v116 = vpack.c.b16 %v114, %v114
    %vm119 = vcmask 519168
    %120 = vst.msk [vmem:[%s3] sm:$0xf] %vm119, %v115
    %121 = vst.msk [vmem:[%s3 + $0x4] sm:$0xf] %vm119, %v116
  $region21: #{transformer_forward.58} parent=0 // pred_fallthru
    _
  // Predicated region
  $region22: #{transformer_forward.58} parent=0 // pred_check
    _
  $region23: #{transformer_forward.58} parent=0 // pred_check_branch
    %123 = sbr.rel (0) target = $region25
  $region24: #{transformer_forward.58} parent=0 // pred_region
    _
  $region25: #{transformer_forward.58} parent=0 // pred_fallthru
    _
  // Predicated region
  $region26: #{transformer_forward.58} parent=0 // pred_check
    _
  $region27: #{transformer_forward.58} parent=0 // pred_check_branch
    %125 = sbr.rel (0) target = $region29
  $region28: #{transformer_forward.58} parent=0 // pred_region
    _
  $region29: #{transformer_forward.58} parent=0 // pred_fallthru
    _

// kernel: transformer_forward.40
$region0: #{transformer_forward.40}
  #allocation0 [shape = 'u32[]', space=smem, size = 0x4, offset = 0x4, fixed_abs, tag = 'smem constant byte address 0x4 - core index']
  #allocation1 [shape = 'u32[144,128]{1,0:T(1,128)}', space=vmem, size = 0x12000, scoped, tag = 'internal scratch']
  #allocation2 [shape = 'f32[8,1]{1,0:T(8,128)}', space=vmem, size = 0x1000, scoped, tag = 'scratch operand']
  #allocation3 [shape = 'f32[8,1]{1,0:T(8,128)}', space=vmem, size = 0x1000, scoped, tag = 'scratch operand']
  #allocation4 [shape = 'f32[8,8]{1,0:T(8,128)}', space=vmem, size = 0x1000, scoped, tag = 'scratch operand']
  %s0 = inlined_call_operand.vmem [shape: bf16[2,4,8,8], index: 0, kind: input, shape index: {}]
  %s1 = inlined_call_operand.vmem [shape: bf16[2,4,8,8], index: 1, kind: input, shape index: {}]
  %s2 = inlined_call_operand.vmem [shape: bf16[2,4,8,8], index: 2, kind: input, shape index: {}]
  %s3 = inlined_call_operand.vmem [shape: f32[2,1,8], index: 3, kind: input, shape index: {}]
  %s4 = inlined_call_operand.vmem [shape: bf16[2,4,8,8], index: 4, kind: output, shape index: {}]
  %s5 = sld [smem:[#allocation0]]
  $region57: #{transformer_forward.40} parent=0
    _
  %s7 = ssub.s32 1, %s5
  %s8 = scalar_select 0, %s7, %s5
  loop: start=0, step=1, limit=10
  $region2: #{transformer_forward.40} parent=0 // loop_pre_header
    _
  $region3: #{transformer_forward.40} parent=0 // loop_header
    %s10 = sphi 0, %s14
    %p11 = scmp.ge.s32.totalorder %s10, 10
    %s17 = sphi 0, %s43
    %s18 = sphi 0, %s39
    %s19 = sphi 0, %s35
    %s20 = sphi 0, %s31
    %s21 = sphi 0, %s17
    %s22 = sphi 0, %s18
    %s23 = sphi 0, %s19
    %s24 = sphi 0, %s20
    %s25 = sphi 0, %s21
    %s26 = sphi 0, %s22
    %s27 = sphi 0, %s23
    %s28 = sphi 0, %s24
    %s50 = sphi 0, %s52
    %s53 = sphi 0, %s50
    %s54 = sphi 0, %s53
    %s70 = sphi 0, %s54
    %s80 = sphi 0, %s82
    %s83 = sphi 0, %s80
    %s84 = sphi 0, %s83
    %s100 = sphi 0, %s84
    %s110 = sphi 0, %s112
    %s113 = sphi 0, %s110
    %s114 = sphi 0, %s113
    %s130 = sphi 0, %s114
    %s138 = sphi 0, %s140
    %s141 = sphi 0, %s138
    %s142 = sphi 0, %s141
    %s158 = sphi 0, %s142
    %s168 = sphi 0, %s170
    %s171 = sphi 0, %s168
    %s172 = sphi 0, %s171
    %s188 = sphi 0, %s172
  $region4: #{transformer_forward.40} parent=0 // loop_header_branch
    %13 = sbr.rel (%p11) target = $region8
  $region5: #{transformer_forward.40} parent=0 // loop_body
    %s15 = ssub.s32 %s10, 1
    %s16 = ssub.s32 %s10, 2
    %s29 = sadd.s32 1, %s20
    %p30 = scmp.ge.s32.totalorder %s29, 1
    %s31 = scalar_select %p30, 0, %s29
    %s32 = sadd.s32 1, %s19
    %s33 = scalar_select %p30, %s32, %s19
    %p34 = scmp.ge.s32.totalorder %s33, 1
    %s35 = scalar_select %p34, 0, %s33
    %s36 = sadd.s32 1, %s18
    %s37 = scalar_select %p34, %s36, %s18
    %p38 = scmp.ge.s32.totalorder %s37, 4
    %s39 = scalar_select %p38, 0, %s37
    %s40 = sadd.s32 1, %s17
    %s41 = scalar_select %p38, %s40, %s17
    %p42 = scmp.ge.s32.totalorder %s41, 2
    %s43 = scalar_select %p42, 0, %s41
    %s44 = ssub.s32 %s17, %s43
    %s45 = ssub.s32 %s18, %s39
    %s46 = sor.u32 %s44, %s45
    %s47 = ssub.s32 %s19, %s35
    %s48 = sor.u32 %s46, %s47
    %p49 = scmp.eq.s32.totalorder %s48, 0
    %s51 = sadd.s32 %s50, 1
    %s52 = scalar_select %p49, %s50, %s51
    %p55 = pneg %p49
    %p56 = scmp.eq.s32.totalorder %s10, 7
    %p57 = por %p55, %p56
    %p58 = scmp.ne.s32.totalorder %s50, %s53
    %p59 = scmp.eq.s32.totalorder %s10, 0
    %p60 = por %p58, %p59
    %p61 = scmp.ne.s32.totalorder %s50, %s53
    %p62 = scmp.eq.s32.totalorder %s15, 7
    %p63 = por %p61, %p62
    %p64 = scmp.ne.s32.totalorder %s53, %s54
    %p65 = scmp.eq.s32.totalorder %s15, 0
    %p66 = por %p64, %p65
    %p67 = scmp.ne.s32.totalorder %s53, %s54
    %p68 = scmp.eq.s32.totalorder %s16, 7
    %p69 = por %p67, %p68
    %p71 = scmp.ne.s32.totalorder %s54, %s70
    %p72 = scmp.eq.s32.totalorder %s16, 0
    %p73 = por %p71, %p72
    %s74 = ssub.s32 %s17, %s43
    %s75 = ssub.s32 %s18, %s39
    %s76 = sor.u32 %s74, %s75
    %s77 = ssub.s32 %s20, %s31
    %s78 = sor.u32 %s76, %s77
    %p79 = scmp.eq.s32.totalorder %s78, 0
    %s81 = sadd.s32 %s80, 1
    %s82 = scalar_select %p79, %s80, %s81
    %p85 = pneg %p79
    %p86 = scmp.eq.s32.totalorder %s10, 7
    %p87 = por %p85, %p86
    %p88 = scmp.ne.s32.totalorder %s80, %s83
    %p89 = scmp.eq.s32.totalorder %s10, 0
    %p90 = por %p88, %p89
    %p91 = scmp.ne.s32.totalorder %s80, %s83
    %p92 = scmp.eq.s32.totalorder %s15, 7
    %p93 = por %p91, %p92
    %p94 = scmp.ne.s32.totalorder %s83, %s84
    %p95 = scmp.eq.s32.totalorder %s15, 0
    %p96 = por %p94, %p95
    %p97 = scmp.ne.s32.totalorder %s83, %s84
    %p98 = scmp.eq.s32.totalorder %s16, 7
    %p99 = por %p97, %p98
    %p101 = scmp.ne.s32.totalorder %s84, %s100
    %p102 = scmp.eq.s32.totalorder %s16, 0
    %p103 = por %p101, %p102
    %s104 = ssub.s32 %s17, %s43
    %s105 = ssub.s32 %s18, %s39
    %s106 = sor.u32 %s104, %s105
    %s107 = ssub.s32 %s20, %s31
    %s108 = sor.u32 %s106, %s107
    %p109 = scmp.eq.s32.totalorder %s108, 0
    %s111 = sadd.s32 %s110, 1
    %s112 = scalar_select %p109, %s110, %s111
    %p115 = pneg %p109
    %p116 = scmp.eq.s32.totalorder %s10, 7
    %p117 = por %p115, %p116
    %p118 = scmp.ne.s32.totalorder %s110, %s113
    %p119 = scmp.eq.s32.totalorder %s10, 0
    %p120 = por %p118, %p119
    %p121 = scmp.ne.s32.totalorder %s110, %s113
    %p122 = scmp.eq.s32.totalorder %s15, 7
    %p123 = por %p121, %p122
    %p124 = scmp.ne.s32.totalorder %s113, %s114
    %p125 = scmp.eq.s32.totalorder %s15, 0
    %p126 = por %p124, %p125
    %p127 = scmp.ne.s32.totalorder %s113, %s114
    %p128 = scmp.eq.s32.totalorder %s16, 7
    %p129 = por %p127, %p128
    %p131 = scmp.ne.s32.totalorder %s114, %s130
    %p132 = scmp.eq.s32.totalorder %s16, 0
    %p133 = por %p131, %p132
    %s134 = ssub.s32 %s17, %s43
    %s135 = ssub.s32 %s20, %s31
    %s136 = sor.u32 %s134, %s135
    %p137 = scmp.eq.s32.totalorder %s136, 0
    %s139 = sadd.s32 %s138, 1
    %s140 = scalar_select %p137, %s138, %s139
    %p143 = pneg %p137
    %p144 = scmp.eq.s32.totalorder %s10, 7
    %p145 = por %p143, %p144
    %p146 = scmp.ne.s32.totalorder %s138, %s141
    %p147 = scmp.eq.s32.totalorder %s10, 0
    %p148 = por %p146, %p147
    %p149 = scmp.ne.s32.totalorder %s138, %s141
    %p150 = scmp.eq.s32.totalorder %s15, 7
    %p151 = por %p149, %p150
    %p152 = scmp.ne.s32.totalorder %s141, %s142
    %p153 = scmp.eq.s32.totalorder %s15, 0
    %p154 = por %p152, %p153
    %p155 = scmp.ne.s32.totalorder %s141, %s142
    %p156 = scmp.eq.s32.totalorder %s16, 7
    %p157 = por %p155, %p156
    %p159 = scmp.ne.s32.totalorder %s142, %s158
    %p160 = scmp.eq.s32.totalorder %s16, 0
    %p161 = por %p159, %p160
    %s162 = ssub.s32 %s17, %s43
    %s163 = ssub.s32 %s18, %s39
    %s164 = sor.u32 %s162, %s163
    %s165 = ssub.s32 %s19, %s35
    %s166 = sor.u32 %s164, %s165
    %p167 = scmp.eq.s32.totalorder %s166, 0
    %s169 = sadd.s32 %s168, 1
    %s170 = scalar_select %p167, %s168, %s169
    %p173 = pneg %p167
    %p174 = scmp.eq.s32.totalorder %s10, 7
    %p175 = por %p173, %p174
    %p176 = scmp.ne.s32.totalorder %s168, %s171
    %p177 = scmp.eq.s32.totalorder %s10, 0
    %p178 = por %p176, %p177
    %p179 = scmp.ne.s32.totalorder %s168, %s171
    %p180 = scmp.eq.s32.totalorder %s15, 7
    %p181 = por %p179, %p180
    %p182 = scmp.ne.s32.totalorder %s171, %s172
    %p183 = scmp.eq.s32.totalorder %s15, 0
    %p184 = por %p182, %p183
    %p185 = scmp.ne.s32.totalorder %s171, %s172
    %p186 = scmp.eq.s32.totalorder %s16, 7
    %p187 = por %p185, %p186
    %p189 = scmp.ne.s32.totalorder %s172, %s188
    %p190 = scmp.eq.s32.totalorder %s16, 0
    %p191 = por %p189, %p190
    %p192 = scmp.le.s32.totalorder 1, %s10
    %p193 = scmp.lt.s32.totalorder %s10, 9
    %p194 = pnand %p192, %p193
    %p195 = pneg %p194
    // Predicated region
    $region9: #{transformer_forward.40} parent=5 // pred_check
      _
    $region10: #{transformer_forward.40} parent=5 // pred_check_branch
      %197 = sbr.rel (%p194) target = $region12
    $region11: #{transformer_forward.40} parent=5 // pred_region
      %s198 = ssub.s32 %s10, 1
    $region12: #{transformer_forward.40} parent=5 // pred_fallthru
      _
    %p199 = scmp.lt.s32.totalorder %s10, 8
    // Predicated region
    $region13: #{transformer_forward.40} parent=5 // pred_check
      %p200 = pneg %p199
    $region14: #{transformer_forward.40} parent=5 // pred_check_branch
      %202 = sbr.rel (%p200) target = $region16
    $region15: #{transformer_forward.40} parent=5 // pred_region
      // Predicated region
      $region17: #{transformer_forward.40} parent=15 // pred_check
        %p203 = pneg %p60
      $region18: #{transformer_forward.40} parent=15 // pred_check_branch
        %205 = sbr.rel (%p203) target = $region20
      $region19: #{transformer_forward.40} parent=15 // pred_region
        %p206 = scmp.lt.s32.totalorder %s17, 1
        %s207 = scalar_select %p206, %s17, 1
        %p208 = scmp.lt.s32.totalorder %s18, 3
        %s209 = scalar_select %p208, %s18, 3
        %p210 = scmp.lt.s32.totalorder %s19, 0
        %s211 = scalar_select %p210, %s19, 0
        %s212 = sadd.s32 %s211, %s209
        %s213 = smul.addr %s207, 4
        %s214 = sadd.s32 %s212, %s213
        %s215 = smul.addr %s214, 4
        %s216 = scalar_lea.vmem %s0, %s215
      $region20: #{transformer_forward.40} parent=15 // pred_fallthru
        _
      // Predicated region
      $region21: #{transformer_forward.40} parent=15 // pred_check
        %p217 = pneg %p90
      $region22: #{transformer_forward.40} parent=15 // pred_check_branch
        %219 = sbr.rel (%p217) target = $region24
      $region23: #{transformer_forward.40} parent=15 // pred_region
        %p220 = scmp.lt.s32.totalorder %s17, 1
        %s221 = scalar_select %p220, %s17, 1
        %p222 = scmp.lt.s32.totalorder %s18, 3
        %s223 = scalar_select %p222, %s18, 3
        %p224 = scmp.lt.s32.totalorder %s20, 0
        %s225 = scalar_select %p224, %s20, 0
        %s226 = sadd.s32 %s225, %s223
        %s227 = smul.addr %s221, 4
        %s228 = sadd.s32 %s226, %s227
        %s229 = smul.addr %s228, 4
        %s230 = scalar_lea.vmem %s1, %s229
      $region24: #{transformer_forward.40} parent=15 // pred_fallthru
        _
      // Predicated region
      $region25: #{transformer_forward.40} parent=15 // pred_check
        %p231 = pneg %p120
      $region26: #{transformer_forward.40} parent=15 // pred_check_branch
        %233 = sbr.rel (%p231) target = $region28
      $region27: #{transformer_forward.40} parent=15 // pred_region
        %p234 = scmp.lt.s32.totalorder %s17, 1
        %s235 = scalar_select %p234, %s17, 1
        %p236 = scmp.lt.s32.totalorder %s18, 3
        %s237 = scalar_select %p236, %s18, 3
        %p238 = scmp.lt.s32.totalorder %s20, 0
        %s239 = scalar_select %p238, %s20, 0
        %s240 = sadd.s32 %s239, %s237
        %s241 = smul.addr %s235, 4
        %s242 = sadd.s32 %s240, %s241
        %s243 = smul.addr %s242, 4
        %s244 = scalar_lea.vmem %s2, %s243
      $region28: #{transformer_forward.40} parent=15 // pred_fallthru
        _
      // Predicated region
      $region29: #{transformer_forward.40} parent=15 // pred_check
        %p245 = pneg %p148
      $region30: #{transformer_forward.40} parent=15 // pred_check_branch
        %247 = sbr.rel (%p245) target = $region32
      $region31: #{transformer_forward.40} parent=15 // pred_region
        %p248 = scmp.lt.s32.totalorder %s17, 1
        %s249 = scalar_select %p248, %s17, 1
        %p250 = scmp.lt.s32.totalorder %s20, 0
        %s251 = scalar_select %p250, %s20, 0
        %s252 = sadd.s32 %s251, %s249
        %s253 = scalar_lea.vmem %s3, %s252
      $region32: #{transformer_forward.40} parent=15 // pred_fallthru
        _
    $region16: #{transformer_forward.40} parent=5 // pred_fallthru
      _
    %p254 = scmp.le.s32.totalorder 1, %s10
    %p255 = scmp.lt.s32.totalorder %s10, 9
    %p256 = pnand %p254, %p255
    %p257 = pneg %p256
    // Predicated region
    $region33: #{transformer_forward.40} parent=5 // pred_check
      _
    $region34: #{transformer_forward.40} parent=5 // pred_check_branch
      %259 = sbr.rel (%p256) target = $region36
    $region35: #{transformer_forward.40} parent=5 // pred_region
      %s260 = ssub.s32 %s10, 1
      %p261 = scmp.lt.s32.totalorder %s21, 1
      %s262 = scalar_select %p261, %s21, 1
      %p263 = scmp.lt.s32.totalorder %s22, 3
      %s264 = scalar_select %p263, %s22, 3
      %p265 = scmp.lt.s32.totalorder %s23, 0
      %s266 = scalar_select %p265, %s23, 0
      %s267 = sadd.s32 %s266, %s264
      %s268 = smul.addr %s262, 4
      %s269 = sadd.s32 %s267, %s268
      %s270 = smul.addr %s269, 4
      %s271 = scalar_lea.vmem %s0, %s270
      %p272 = pneg %p66
      %p273 = pneg %p63
      %p274 = scmp.lt.s32.totalorder %s21, 1
      %s275 = scalar_select %p274, %s21, 1
      %p276 = scmp.lt.s32.totalorder %s22, 3
      %s277 = scalar_select %p276, %s22, 3
      %p278 = scmp.lt.s32.totalorder %s24, 0
      %s279 = scalar_select %p278, %s24, 0
      %s280 = sadd.s32 %s279, %s277
      %s281 = smul.addr %s275, 4
      %s282 = sadd.s32 %s280, %s281
      %s283 = smul.addr %s282, 4
      %s284 = scalar_lea.vmem %s1, %s283
      %p285 = pneg %p96
      %p286 = pneg %p93
      %p287 = scmp.lt.s32.totalorder %s21, 1
      %s288 = scalar_select %p287, %s21, 1
      %p289 = scmp.lt.s32.totalorder %s22, 3
      %s290 = scalar_select %p289, %s22, 3
      %p291 = scmp.lt.s32.totalorder %s24, 0
      %s292 = scalar_select %p291, %s24, 0
      %s293 = sadd.s32 %s292, %s290
      %s294 = smul.addr %s288, 4
      %s295 = sadd.s32 %s293, %s294
      %s296 = smul.addr %s295, 4
      %s297 = scalar_lea.vmem %s2, %s296
      %p298 = pneg %p126
      %p299 = pneg %p123
      %p300 = scmp.lt.s32.totalorder %s21, 1
      %s301 = scalar_select %p300, %s21, 1
      %p302 = scmp.lt.s32.totalorder %s24, 0
      %s303 = scalar_select %p302, %s24, 0
      %s304 = sadd.s32 %s303, %s301
      %s305 = scalar_lea.vmem %s3, %s304
      %p306 = pneg %p154
      %p307 = pneg %p151
      %p308 = pneg %p184
      %p309 = pneg %p181
      %p310 = scmp.lt.s32.totalorder %s21, 1
      %s311 = scalar_select %p310, %s21, 1
      %p312 = scmp.lt.s32.totalorder %s22, 3
      %s313 = scalar_select %p312, %s22, 3
      %p314 = scmp.lt.s32.totalorder %s23, 0
      %s315 = scalar_select %p314, %s23, 0
      %s316 = sadd.s32 %s315, %s313
      %s317 = smul.addr %s311, 4
      %s318 = sadd.s32 %s316, %s317
      %s319 = smul.addr %s318, 4
      %s320 = scalar_lea.vmem %s4, %s319
      %p321 = scmp.lt.s32.totalorder %s21, 1
      %s322 = scalar_select %p321, %s21, 1
      %p323 = scmp.lt.s32.totalorder %s22, 3
      %s324 = scalar_select %p323, %s22, 3
      %p325 = scmp.lt.s32.totalorder %s23, 0
      %s326 = scalar_select %p325, %s23, 0
      %s327 = sadd.s32 %s326, %s324
      %s328 = smul.addr %s322, 4
      %s329 = sadd.s32 %s327, %s328
      %s330 = smul.addr %s329, 4
      %s331 = scalar_lea.vmem %s0, %s330
      %p332 = scmp.lt.s32.totalorder %s21, 1
      %s333 = scalar_select %p332, %s21, 1
      %p334 = scmp.lt.s32.totalorder %s22, 3
      %s335 = scalar_select %p334, %s22, 3
      %p336 = scmp.lt.s32.totalorder %s24, 0
      %s337 = scalar_select %p336, %s24, 0
      %s338 = sadd.s32 %s337, %s335
      %s339 = smul.addr %s333, 4
      %s340 = sadd.s32 %s338, %s339
      %s341 = smul.addr %s340, 4
      %s342 = scalar_lea.vmem %s1, %s341
      %p343 = scmp.lt.s32.totalorder %s21, 1
      %s344 = scalar_select %p343, %s21, 1
      %p345 = scmp.lt.s32.totalorder %s22, 3
      %s346 = scalar_select %p345, %s22, 3
      %p347 = scmp.lt.s32.totalorder %s24, 0
      %s348 = scalar_select %p347, %s24, 0
      %s349 = sadd.s32 %s348, %s346
      %s350 = smul.addr %s344, 4
      %s351 = sadd.s32 %s349, %s350
      %s352 = smul.addr %s351, 4
      %s353 = scalar_lea.vmem %s2, %s352
      %p354 = scmp.lt.s32.totalorder %s21, 1
      %s355 = scalar_select %p354, %s21, 1
      %p356 = scmp.lt.s32.totalorder %s24, 0
      %s357 = scalar_select %p356, %s24, 0
      %s358 = sadd.s32 %s357, %s355
      %s359 = scalar_lea.vmem %s3, %s358
      %p360 = scmp.lt.s32.totalorder %s21, 1
      %s361 = scalar_select %p360, %s21, 1
      %p362 = scmp.lt.s32.totalorder %s22, 3
      %s363 = scalar_select %p362, %s22, 3
      %p364 = scmp.lt.s32.totalorder %s23, 0
      %s365 = scalar_select %p364, %s23, 0
      %s366 = sadd.s32 %s365, %s363
      %s367 = smul.addr %s361, 4
      %s368 = sadd.s32 %s366, %s367
      %s369 = smul.addr %s368, 4
      %s370 = scalar_lea.vmem %s4, %s369
      %p372 = scmp.eq.s32.totalorder %s24, 0
      // Predicated region
      $region37: #{transformer_forward.40} parent=35 // pred_check
        %p373 = pneg %p372
      $region38: #{transformer_forward.40} parent=35 // pred_check_branch
        %375 = sbr.rel (%p373) target = $region40
      $region39: #{transformer_forward.40} parent=35 // pred_region
        %vm376 = vcmask 7168
        %377 = vst.msk [vmem:[#allocation2] sm:$0xff] %vm376, -1e+30
        %378 = vst.msk [vmem:[#allocation3] sm:$0xff] %vm376, 0.0
        %vm379 = vcmask 64512
        %380 = vst.msk [vmem:[#allocation4] sm:$0xff] %vm379, 0.0
      $region40: #{transformer_forward.40} parent=35 // pred_fallthru
        _
      %v381 = vld [vmem:[%s331] sm:$0xf]
      %v382 = vld [vmem:[%s342] sm:$0xf]
      %vm383 = vcmask 64512
      %v385 = vsel %vm383, %v381, 0
      %v388 = vsel %vm383, %v382, 0
      %390 = vmatprep.subr.bf16.mxu0 0
      %391 = vmatpush1.bf16.xpose.msra.mxu0 0
      %392 = vmatprep.subr.bf16.mxu0 0
      %393 = vmatpush1.bf16.xpose.msra.mxu0 0
      %394 = vmatprep.subr.bf16.mxu0 0
      %395 = vmatpush1.bf16.xpose.msra.mxu0 0
      %396 = vmatprep.subr.bf16.mxu0 0
      %397 = vmatpush1.bf16.xpose.msra.mxu0 0
      %398 = vmatprep.subr.bf16.mxu0 0
      %399 = vmatpush1.bf16.xpose.msra.mxu0 0
      %400 = vmatprep.subr.bf16.mxu0 0
      %401 = vmatpush1.bf16.xpose.msra.mxu0 0
      %402 = vmatprep.subr.bf16.mxu0 0
      %403 = vmatpush1.bf16.xpose.msra.mxu0 0
      %404 = vmatprep.subr.bf16.mxu0 0
      %405 = vmatpush1.bf16.xpose.msra.mxu0 %v388
      %406 = vmatprep.subr.bf16.mxu0 0
      %407 = vmatpush2.bf16.xpose.msra.mxu0 0
      %408 = vmatprep.subr.bf16.mxu0 0
      %409 = vmatpush2.bf16.xpose.msra.mxu0 0
      %410 = vmatprep.subr.bf16.mxu0 0
      %411 = vmatpush2.bf16.xpose.msra.mxu0 0
      %412 = vmatprep.subr.bf16.mxu0 0
      %413 = vmatpush2.bf16.xpose.msra.mxu0 0
      %414 = vmatprep.subr.bf16.mxu0 0
      %415 = vmatpush2.bf16.xpose.msra.mxu0 0
      %416 = vmatprep.subr.bf16.mxu0 0
      %417 = vmatpush2.bf16.xpose.msra.mxu0 0
      %418 = vmatprep.subr.bf16.mxu0 0
      %419 = vmatpush2.bf16.xpose.msra.mxu0 0
      %420 = vmatprep.subr.bf16.mxu0 0
      %421 = vmatpush2.bf16.xpose.msra.mxu0 0
      %422 = vmatprep.mubr.bf16.mxu0 0
      %423 = vmatmul.mubr.bf16.gmra.mxu0 %v385
      %v424 = vpop.f32.mrf.mxu0
      %v425 = vadd.f32 0.0, %v424
      %v426 = vpop.f32.mrf.mxu0
      %v427 = vpop.f32.mrf.mxu0
      %v428 = vpop.f32.mrf.mxu0
      %429 = vdwg.mxu0
      %v430 = vld [vmem:[%s359] sm:$0x1]
      %vm431 = vcmp.gt.f32.partialorder %v430, 0.0
      %v432 = vsel %vm431, 1, 0
      %v433 = vlaneseq
      %v434 = vshrl.u32 %v433, 7
      %v435 = vsub.s32 0, %v434
      %v436 = vrot.slane %v432, %v435
      %vm437 = vcmp.eq.s32.totalorder %v436, 1
      %v438 = vsel %vm437, %v425, -1e+30
      %v439 = vld [vmem:[#allocation2] sm:$0xff]
      %v440 = vsel %vm383, %v438, -inf
      %441 = vmax.xlane.f32.xlu0 %v440
      %v442 = vpop.xlane.xlu0 %441
      %v443 = vmax.f32 %v439, %v442
      %v444 = vsub.f32 %v439, %v443
      %v445 = vmul.f32 %v444, 1.442695
      %v446 = vpow.pop %v445
      %448 = vset.pattern.permute.xlu0 0
      %449 = vperm.xlu0 %448, %v443
      %v450 = vpop.permute.xlu0 %449
      %v452 = vsub.f32 %v438, %v450
      %v453 = vmul.f32 %v452, 1.442695
      %v454 = vpow.pop %v453
      %v455 = vld [vmem:[#allocation3] sm:$0xff]
      %v456 = vmul.f32 %v446, %v455
      %v457 = vsel %vm383, %v454, 0.0
      %458 = vadd.xlane.f32.xlu0 %v457
      %v459 = vpop.xlane.xlu0 %458
      %v460 = vadd.f32 %v456, %v459
      %vm461 = vcmask 7168
      %462 = vst.msk [vmem:[#allocation3] sm:$0xff] %vm461, %v460
      %v463 = vld [vmem:[#allocation4] sm:$0xff]
      %465 = vset.pattern.permute.xlu0 0
      %466 = vperm.xlu0 %465, %v446
      %v467 = vpop.permute.xlu0 %466
      %v469 = vmul.f32 %v467, %v463
      %v470 = vpack.c.bf16 %v454, %v454
      %v471 = vld [vmem:[%s353] sm:$0xf]
      %v473 = vsel %vm383, %v470, 0
      %vm475 = vcmask 1043456
      %v477 = vsel %vm475, %v471, 0
      %479 = vmatprep.subr.bf16.mxu0 0
      %480 = vmatpush1.bf16.msra.mxu0 0
      %481 = vmatprep.subr.bf16.mxu0 0
      %482 = vmatpush1.bf16.msra.mxu0 0
      %483 = vmatprep.subr.bf16.mxu0 0
      %484 = vmatpush1.bf16.msra.mxu0 0
      %485 = vmatprep.subr.bf16.mxu0 0
      %486 = vmatpush1.bf16.msra.mxu0 0
      %487 = vmatprep.subr.bf16.mxu0 0
      %488 = vmatpush1.bf16.msra.mxu0 0
      %489 = vmatprep.subr.bf16.mxu0 0
      %490 = vmatpush1.bf16.msra.mxu0 0
      %491 = vmatprep.subr.bf16.mxu0 0
      %492 = vmatpush1.bf16.msra.mxu0 0
      %493 = vmatprep.subr.bf16.mxu0 0
      %494 = vmatpush1.bf16.msra.mxu0 %v477
      %495 = vmatprep.subr.bf16.mxu0 0
      %496 = vmatpush2.bf16.msra.mxu0 0
      %497 = vmatprep.subr.bf16.mxu0 0
      %498 = vmatpush2.bf16.msra.mxu0 0
      %499 = vmatprep.subr.bf16.mxu0 0
      %500 = vmatpush2.bf16.msra.mxu0 0
      %501 = vmatprep.subr.bf16.mxu0 0
      %502 = vmatpush2.bf16.msra.mxu0 0
      %503 = vmatprep.subr.bf16.mxu0 0
      %504 = vmatpush2.bf16.msra.mxu0 0
      %505 = vmatprep.subr.bf16.mxu0 0
      %506 = vmatpush2.bf16.msra.mxu0 0
      %507 = vmatprep.subr.bf16.mxu0 0
      %508 = vmatpush2.bf16.msra.mxu0 0
      %509 = vmatprep.subr.bf16.mxu0 0
      %510 = vmatpush2.bf16.msra.mxu0 0
      %511 = vmatprep.mubr.bf16.mxu0 0
      %512 = vmatmul.mubr.bf16.gmra.mxu0 %v473
      %v513 = vpop.f32.mrf.mxu0
      %v514 = vadd.f32 0.0, %v513
      %v515 = vpop.f32.mrf.mxu0
      %v516 = vpop.f32.mrf.mxu0
      %v517 = vpop.f32.mrf.mxu0
      %518 = vdwg.mxu0
      %v519 = vadd.f32 %v469, %v514
      %520 = vst.msk [vmem:[#allocation4] sm:$0xff] %vm383, %v519
      %521 = vst.msk [vmem:[#allocation2] sm:$0xff] %vm461, %v443
      // Predicated region
      $region41: #{transformer_forward.40} parent=35 // pred_check
        %p522 = pneg %p372
      $region42: #{transformer_forward.40} parent=35 // pred_check_branch
        %524 = sbr.rel (%p522) target = $region44
      $region43: #{transformer_forward.40} parent=35 // pred_region
        %v525 = vld [vmem:[#allocation3] sm:$0xff]
        %v526 = vrcp.pop %v525
        %v527 = vld [vmem:[#allocation4] sm:$0xff]
        %529 = vset.pattern.permute.xlu0 0
        %530 = vperm.xlu0 %529, %v526
        %v531 = vpop.permute.xlu0 %530
        %v533 = vmul.f32 %v527, %v531
        %v534 = vpack.c.bf16 %v533, %v533
        %vm535 = vcmask 60416
        %536 = vst.msk [vmem:[%s370] sm:$0xf] %vm535, %v534
      $region44: #{transformer_forward.40} parent=35 // pred_fallthru
        _
      %p537 = scmp.lt.s32.totalorder %s21, 1
      %s538 = scalar_select %p537, %s21, 1
      %p539 = scmp.lt.s32.totalorder %s22, 3
      %s540 = scalar_select %p539, %s22, 3
      %p541 = scmp.lt.s32.totalorder %s23, 0
      %s542 = scalar_select %p541, %s23, 0
      %s543 = sadd.s32 %s542, %s540
      %s544 = smul.addr %s538, 4
      %s545 = sadd.s32 %s543, %s544
      %s546 = smul.addr %s545, 4
      %s547 = scalar_lea.vmem %s4, %s546
      // Predicated region
      $region45: #{transformer_forward.40} parent=35 // pred_check
        %p548 = pneg %p181
      $region46: #{transformer_forward.40} parent=35 // pred_check_branch
        %550 = sbr.rel (%p548) target = $region48
      $region47: #{transformer_forward.40} parent=35 // pred_region
        _
      $region48: #{transformer_forward.40} parent=35 // pred_fallthru
        _
    $region36: #{transformer_forward.40} parent=5 // pred_fallthru
      _
    %p551 = scmp.le.s32.totalorder 2, %s10
    // Predicated region
    $region49: #{transformer_forward.40} parent=5 // pred_check
      %p552 = pneg %p551
    $region50: #{transformer_forward.40} parent=5 // pred_check_branch
      %554 = sbr.rel (%p552) target = $region52
    $region51: #{transformer_forward.40} parent=5 // pred_region
      %s555 = ssub.s32 %s10, 2
      // Predicated region
      $region53: #{transformer_forward.40} parent=51 // pred_check
        %p556 = pneg %p187
      $region54: #{transformer_forward.40} parent=51 // pred_check_branch
        %558 = sbr.rel (%p556) target = $region56
      $region55: #{transformer_forward.40} parent=51 // pred_region
        %p559 = scmp.lt.s32.totalorder %s25, 1
        %s560 = scalar_select %p559, %s25, 1
        %p561 = scmp.lt.s32.totalorder %s26, 3
        %s562 = scalar_select %p561, %s26, 3
        %p563 = scmp.lt.s32.totalorder %s27, 0
        %s564 = scalar_select %p563, %s27, 0
        %s565 = sadd.s32 %s564, %s562
        %s566 = smul.addr %s560, 4
        %s567 = sadd.s32 %s565, %s566
        %s568 = smul.addr %s567, 4
        %s569 = scalar_lea.vmem %s4, %s568
      $region56: #{transformer_forward.40} parent=51 // pred_fallthru
        _
    $region52: #{transformer_forward.40} parent=5 // pred_fallthru
      _
  $region6: #{transformer_forward.40} parent=0 // loop_footer
    %s14 = sadd.s32 1, %s10
  $region7: #{transformer_forward.40} parent=0 // loop_footer_branch
    %9 = sbr.rel target = $region3
  $region8: #{transformer_forward.40} parent=0 // loop_exit
    _

// kernel: transformer_forward.77
$region0: #{transformer_forward.77}
  #allocation0 [shape = 'u32[]', space=smem, size = 0x4, offset = 0x4, fixed_abs, tag = 'smem constant byte address 0x4 - core index']
  #allocation1 [shape = 'u32[144,128]{1,0:T(1,128)}', space=vmem, size = 0x12000, scoped, tag = 'internal scratch']
  #allocation2 [shape = 'f32[16,64]{1,0:T(8,128)}', space=vmem, size = 0x2000, scoped, tag = 'scratch operand']
  %s0 = inlined_call_operand.vmem [shape: bf16[16,32], index: 0, kind: input, shape index: {}]
  %s1 = inlined_call_operand.vmem [shape: bf16[32,64], index: 1, kind: input, shape index: {}]
  %s2 = inlined_call_operand.vmem [shape: f32[1,64], index: 2, kind: input, shape index: {}]
  %s3 = inlined_call_operand.hbm [shape: f32[16,64], index: 3, kind: output, shape index: {}]
  %s4 = sld [smem:[#allocation0]]
  $region30: #{transformer_forward.77} parent=0
    _
  %s6 = ssub.s32 1, %s4
  %s7 = scalar_select 0, %s6, %s4
  $region1: #{transformer_forward.77} parent=0
    #allocation3 [shape = 'u8[8192]{0}', space=vmem, size = 0x2000, scoped, tag = 'output window, operand 0, single buffered']
    #allocation4 [shape = 's32[1]{0}', space=sflag, size = 0x4, scoped, tag = 'scoped memory for transformer_forward.77']
    %8 = vsyncpa [#allocation4], 0
    // Predicated region
    $region2: #{transformer_forward.77} parent=1 // pred_check
      _
    $region3: #{transformer_forward.77} parent=1 // pred_check_branch
      %10 = sbr.rel (0) target = $region5
    $region4: #{transformer_forward.77} parent=1 // pred_region
      _
    $region5: #{transformer_forward.77} parent=1 // pred_fallthru
      _
    // Predicated region
    $region6: #{transformer_forward.77} parent=1 // pred_check
      _
    $region7: #{transformer_forward.77} parent=1 // pred_check_branch
      %12 = sbr.rel (0) target = $region9
    $region8: #{transformer_forward.77} parent=1 // pred_region
      _
    $region9: #{transformer_forward.77} parent=1 // pred_fallthru
      _
    // Predicated region
    $region10: #{transformer_forward.77} parent=1 // pred_check
      _
    $region11: #{transformer_forward.77} parent=1 // pred_check_branch
      %14 = sbr.rel (0) target = $region13
    $region12: #{transformer_forward.77} parent=1 // pred_region
      _
    $region13: #{transformer_forward.77} parent=1 // pred_fallthru
      _
    %p16 = scmp.eq.s32.totalorder 0, 0
    // Predicated region
    $region14: #{transformer_forward.77} parent=1 // pred_check
      %p17 = pneg %p16
    $region15: #{transformer_forward.77} parent=1 // pred_check_branch
      %19 = sbr.rel (%p17) target = $region17
    $region16: #{transformer_forward.77} parent=1 // pred_region
      %vm20 = vcmask 523264
      %21 = vst.msk [vmem:[#allocation2] sm:$0xff] %vm20, 0.0
      %22 = vst.msk [vmem:[#allocation2 + $0x8] sm:$0xff] %vm20, 0.0
    $region17: #{transformer_forward.77} parent=1 // pred_fallthru
      _
    %v23 = vld [vmem:[#allocation2] sm:$0xff]
    %v24 = vld [vmem:[#allocation2 + $0x8] sm:$0xff]
    %v25 = vld [vmem:[%s0] sm:$0xf]
    %v26 = vld [vmem:[%s0 + $0x4] sm:$0xf]
    %v27 = vld [vmem:[%s1] sm:$0xf]
    %v28 = vld [vmem:[%s1 + $0x4] sm:$0xf]
    %v29 = vld [vmem:[%s1 + $0x8] sm:$0xf]
    %v30 = vld [vmem:[%s1 + $0xc] sm:$0xf]
    %v33 = vunpack.c.l.b16 %v25
    %v34 = vunpack.c.l.b16 %v26
    %v35 = vpack.c.b16 %v34, %v33
    %v40 = vunpack.c.l.b16 %v27
    %v41 = vunpack.c.l.b16 %v28
    %v42 = vunpack.c.l.b16 %v29
    %v43 = vunpack.c.l.b16 %v30
    %v44 = vpack.c.b16 %v41, %v40
    %v45 = vpack.c.b16 %v43, %v42
    %vm48 = vcmask 261120
    %v50 = vsel %vm48, %v35, 0
    %52 = vmatprep.subr.bf16.mxu0 0
    %53 = vmatpush1.bf16.msra.mxu0 0
    %54 = vmatprep.subr.bf16.mxu0 0
    %55 = vmatpush1.bf16.msra.mxu0 0
    %56 = vmatprep.subr.bf16.mxu0 0
    %57 = vmatpush1.bf16.msra.mxu0 0
    %58 = vmatprep.subr.bf16.mxu0 0
    %59 = vmatpush1.bf16.msra.mxu0 0
    %60 = vmatprep.subr.bf16.mxu0 0
    %61 = vmatpush1.bf16.msra.mxu0 0
    %62 = vmatprep.subr.bf16.mxu0 0
    %63 = vmatpush1.bf16.msra.mxu0 0
    %64 = vmatprep.subr.bf16.mxu0 0
    %65 = vmatpush1.bf16.msra.mxu0 %v45
    %66 = vmatprep.subr.bf16.mxu0 0
    %67 = vmatpush1.bf16.msra.mxu0 %v44
    %68 = vmatprep.subr.bf16.mxu0 0
    %69 = vmatpush2.bf16.msra.mxu0 0
    %70 = vmatprep.subr.bf16.mxu0 0
    %71 = vmatpush2.bf16.msra.mxu0 0
    %72 = vmatprep.subr.bf16.mxu0 0
    %73 = vmatpush2.bf16.msra.mxu0 0
    %74 = vmatprep.subr.bf16.mxu0 0
    %75 = vmatpush2.bf16.msra.mxu0 0
    %76 = vmatprep.subr.bf16.mxu0 0
    %77 = vmatpush2.bf16.msra.mxu0 0
    %78 = vmatprep.subr.bf16.mxu0 0
    %79 = vmatpush2.bf16.msra.mxu0 0
    %80 = vmatprep.subr.bf16.mxu0 0
    %81 = vmatpush2.bf16.msra.mxu0 0
    %82 = vmatprep.subr.bf16.mxu0 0
    %83 = vmatpush2.bf16.msra.mxu0 0
    %84 = vmatprep.mubr.bf16.mxu0 0
    %85 = vmatmul.mubr.bf16.gmra.mxu0 %v50
    %v86 = vpop.f32.mrf.mxu0
    %v87 = vadd.f32 0.0, %v86
    %v88 = vpop.f32.mrf.mxu0
    %v89 = vpop.f32.mrf.mxu0
    %v90 = vadd.f32 0.0, %v89
    %v91 = vpop.f32.mrf.mxu0
    %92 = vdwg.mxu0
    %v93 = vadd.f32 %v23, %v87
    %v94 = vadd.f32 %v24, %v90
    %vm95 = vcmask 523264
    %96 = vst.msk [vmem:[#allocation2] sm:$0xff] %vm95, %v93
    %97 = vst.msk [vmem:[#allocation2 + $0x8] sm:$0xff] %vm95, %v94
    // Predicated region
    $region18: #{transformer_forward.77} parent=1 // pred_check
      %p98 = pneg %p16
    $region19: #{transformer_forward.77} parent=1 // pred_check_branch
      %100 = sbr.rel (%p98) target = $region21
    $region20: #{transformer_forward.77} parent=1 // pred_region
      %v101 = vld [vmem:[#allocation2] sm:$0xff]
      %v102 = vld [vmem:[#allocation2 + $0x8] sm:$0xff]
      %v103 = vld [vmem:[%s2] sm:$0x1]
      %v105 = vlaneseq
      %v106 = vshrl.u32 %v105, 7
      %v107 = vsub.s32 0, %v106
      %v108 = vrot.slane %v103, %v107
      %v110 = vadd.f32 %v101, %v108
      %v111 = vadd.f32 %v102, %v108
      %112 = vst.msk [vmem:[#allocation3] sm:$0xff] %vm95, %v110
      %113 = vst.msk [vmem:[#allocation3 + $0x8] sm:$0xff] %vm95, %v111
    $region21: #{transformer_forward.77} parent=1 // pred_fallthru
      _
    // Predicated region
    $region22: #{transformer_forward.77} parent=1 // pred_check
      _
    $region23: #{transformer_forward.77} parent=1 // pred_check_branch
      %115 = sbr.rel (0) target = $region25
    $region24: #{transformer_forward.77} parent=1 // pred_region
      %s117 = ssub.s32 256, 256
      %118 = vsyncadd [#allocation4], %s117
      %s119 = sshll.u32 [#allocation3], 4
      %s120 = int_to_ptr.vmem [resolvable:$true] %s119
      %125 = dma.vmem_to_hbm [thread:$0]  %s120, 256, %s3, [#allocation4], 128, 128, 8
    $region25: #{transformer_forward.77} parent=1 // pred_fallthru
      _
    // Predicated region
    $region26: #{transformer_forward.77} parent=1 // pred_check
      _
    $region27: #{transformer_forward.77} parent=1 // pred_check_branch
      %127 = sbr.rel (0) target = $region29
    $region28: #{transformer_forward.77} parent=1 // pred_region
      %128 = dma.done [#allocation4], 256
    $region29: #{transformer_forward.77} parent=1 // pred_fallthru
      _
    %129 = vsyncpa [#allocation4], 1

</llo_original>
